<compile_context>
chip_gen: v7x
topology: tpu7x:2x2x1
jax: 0.10.0
libtpu: 0.0.40
codegen_flags: <defaults>
</compile_context>

<pallas_src>
import functools

import jax
import jax.numpy as jnp
from jax.experimental import pallas as pl
from jax.experimental.pallas import tpu as pltpu


# ----------------------------------------------------------------------------
# hardware-aware budgets
# ----------------------------------------------------------------------------

def _round_up(x, m):
    return ((x + m - 1) // m) * m


def _vmem_capacity_bytes():
    try:
        return int(pltpu.get_tpu_info().vmem_capacity_bytes)
    except Exception:
        return 64 * 1024 * 1024            # conservative (v7x-sized) fallback


def _is_v5():
    try:
        return "v5" in jax.devices()[0].device_kind.lower()
    except Exception:
        return False


_VMEM_CAP = _vmem_capacity_bytes()
# scoped limit: ~3/4 of physical, capped (v5e/v6e ~96 MiB; v7x 48 MiB)
_VMEM_LIMIT = max(32 << 20, min(100 << 20, (_VMEM_CAP * 3) // 4))
# per-kernel live-footprint budget (double-buffered tiles + temporaries) with headroom
_TILE_BUDGET = _VMEM_LIMIT // 2
_PROD_F32 = _is_v5()                        # v5e has no bf16 VALU -> f32 outer product


def _cparams(grid_rank):
    return pltpu.CompilerParams(
        dimension_semantics=("parallel",) * grid_rank,
        vmem_limit_bytes=_VMEM_LIMIT,
    )


# ----------------------------------------------------------------------------
# tile-size selection (explicit per-step footprints)
# ----------------------------------------------------------------------------

def _divisors_desc(n, step=8):
    out = [t for t in range(step, n + 1, step) if n % t == 0]
    out.sort(reverse=True)
    return out or [n]


def _pick_tile(cands, fits, grid_count):
    """Largest candidate that fits; mild preference for an even total grid size
    (balances v7x's two TensorCores)."""
    feas = [t for t in cands if fits(t)]
    if not feas:
        return cands[-1]
    best = feas[0]
    for t in feas:
        if grid_count(t) % 2 == 0 and 2 * t >= best:
            return t
    return best


def _mlp_row_tile(R, Din, H, Dout, in_bytes, out_bytes, max_tile=2048):
    w_bytes = 2 * ((Din * H + H * Dout) * 2 + (H + Dout) * 4)
    per_row = 2 * Din * in_bytes + 2 * Dout * out_bytes + 6 * H + 4 * Dout + 2 * Din
    tr = (_TILE_BUDGET - w_bytes) // max(per_row, 1)
    tr = max(8, min(max_tile, (tr // 8) * 8))
    return min(tr, _round_up(R, 8))


def _pair_i_tile(B, L, inner, c_z):
    if L % 8 != 0:
        return L
    prod_b = 4 if _PROD_F32 else 2
    resident = 2 * (L * inner * 4 + L * c_z * 4) + 4 * inner * c_z * 2   # q, qd, weights
    per_i = (L * (12 * c_z                     # z / pos / out tiles, bf16, double-buffered
                  + inner * (prod_b + 2)       # outer-product temporary
                  + 16 * c_z)                  # pp / upcasts / y f32 temporaries
             + 2 * inner * 4)                  # k tile
    def fits(ti):
        return resident + ti * per_i <= _TILE_BUDGET
    return _pick_tile(_divisors_desc(L), fits, lambda ti: B * (L // ti))


def _sym_tile(B, L, c_z, disto, with_rec, with_oh):
    if L % 8 != 0:
        return L
    per = 8 * c_z + 12 * c_z + 8 * disto + (4 * disto if with_oh else 0)
    if with_rec:
        per += 8 * disto + 8 * disto
    w_bytes = 2 * ((c_z * c_z + 2 * c_z * disto) * 2 + (c_z + disto) * 4)
    def fits(ts):
        return w_bytes + ts * ts * per <= _TILE_BUDGET
    return _pick_tile(_divisors_desc(L), fits, lambda ts: B * (L // ts) * (L // ts))


# lane-preserving (a, b, c) -> (b, a, c) swap inside a kernel (no HBM round-trip)
if hasattr(pltpu, "einshape"):
    def _swap_leading(x):
        return pltpu.einshape("abc->bac", x)
else:  # older jax fallback
    def _swap_leading(x):
        return jnp.swapaxes(x, 0, 1)


# ----------------------------------------------------------------------------
# Pallas kernels
# ----------------------------------------------------------------------------

def _mlp_kernel(x_ref, w1_ref, b1_ref, w2_ref, b2_ref, o_ref):
    # bf16 MXU operands, f32 accumulation.
    x = x_ref[...].astype(jnp.bfloat16)
    h = jnp.dot(x, w1_ref[...], preferred_element_type=jnp.float32) + b1_ref[...]
    h = jnp.maximum(h, 0.0).astype(jnp.bfloat16)
    y = jnp.dot(h, w2_ref[...], preferred_element_type=jnp.float32) + b2_ref[...]
    o_ref[...] = y.astype(o_ref.dtype)


def _ln_proj_kernel(x_ref, g_ref, beta_ref, w_ref, b_ref, o_ref):
    # LayerNorm math in f32 (v5e-safe); only the dot operands in bf16.
    x = x_ref[...].astype(jnp.float32)
    mu = jnp.mean(x, axis=-1, keepdims=True)
    var = jnp.mean((x - mu) ** 2, axis=-1, keepdims=True)   # biased, like torch LN
    xn = (x - mu) * jax.lax.rsqrt(var + 1e-5)
    xn = (xn * g_ref[...] + beta_ref[...]).astype(jnp.bfloat16)
    y = jnp.dot(xn, w_ref[...], preferred_element_type=jnp.float32) + b_ref[...]
    o_ref[...] = y.astype(o_ref.dtype)


def _pair_kernel(q_ref, k_ref, qd_ref, z_ref, pos_ref, wp_ref, wd_ref, o_ref, *, prod_f32):
    # Fused SequenceToPair outer-product + o_proj + concat + trunk projection.
    #   out[i,j] = z_proj[i,j] + pos[i,j] + (q[j]*k[i])@Wp' + qd[j] - (k[i]@Wd')
    # (z_proj / pos / bias terms are pre-folded outside; all bf16 in HBM.)
    q = q_ref[0]                               # (L, inner)  f32, resident over i-tiles
    k = k_ref[0]                               # (TI, inner) f32, current i-tile
    qd = qd_ref[0]                             # (L, c_z)    f32, resident (hoisted q @ Wd')
    ti, inner = k.shape
    ln = q.shape[0]
    c_z = qd.shape[-1]

    kb = k.astype(jnp.bfloat16)
    kd = jnp.dot(kb, wd_ref[...], preferred_element_type=jnp.float32)           # (TI, c_z)

    if prod_f32:                               # v5e: no bf16 VALU
        prod = (k[:, None, :] * q[None, :, :]).astype(jnp.bfloat16)
    else:                                      # v6e/v7x: halve the largest temporary
        prod = kb[:, None, :] * q.astype(jnp.bfloat16)[None, :, :]               # (TI,L,inner)
    pp = jnp.dot(prod.reshape(ti * ln, inner), wp_ref[...],
                 preferred_element_type=jnp.float32).reshape(ti, ln, c_z)

    y = (pp + z_ref[0].astype(jnp.float32) + pos_ref[0].astype(jnp.float32)
         + qd[None, :, :] - kd[:, None, :])
    o_ref[...] = y[None].astype(o_ref.dtype)


def _sym_kernel(*refs, with_rec, with_oh):
    # Fused symmetrization + recycle-add + fc_out MLP (+ fused one-hot(argmax)):
    #   preds[i,j] = MLP(s_z_p[i,j] + s_z_p[j,i] + rec[i,j] + rec[j,i])
    # where rec is injected post-W1 via (onehot_ij + onehot_ji) @ (rec_w @ W1), and
    # 2*rec_b is folded into b1_eff.
    idx = 2
    x1_ref, x2_ref = refs[0], refs[1]
    if with_rec:
        oh1_ref, oh2_ref, rw1_ref = refs[2], refs[3], refs[4]
        idx = 5
    w1_ref, b1_ref, w2_ref, b2_ref = refs[idx:idx + 4]
    preds_ref = refs[idx + 4]
    oh_out_ref = refs[idx + 5] if with_oh else None

    x1 = x1_ref[0].astype(jnp.float32)                    # (TS, TS, C)
    x2t = _swap_leading(x2_ref[0].astype(jnp.float32))    # (TS, TS, C) transposed view
    ts = x1.shape[0]
    c = x1.shape[-1]
    d = w2_ref.shape[-1]

    s = (x1 + x2t).reshape(ts * ts, c).astype(jnp.bfloat16)
    h = jnp.dot(s, w1_ref[...], preferred_element_type=jnp.float32) + b1_ref[...]
    if with_rec:
        o1 = oh1_ref[0].astype(jnp.float32)
        o2t = _swap_leading(oh2_ref[0].astype(jnp.float32))
        oh = (o1 + o2t).reshape(ts * ts, d).astype(jnp.bfloat16)
        h = h + jnp.dot(oh, rw1_ref[...], preferred_element_type=jnp.float32)
    h = jnp.maximum(h, 0.0).astype(jnp.bfloat16)
    y = jnp.dot(h, w2_ref[...], preferred_element_type=jnp.float32) + b2_ref[...]
    preds_ref[...] = y.reshape(1, ts, ts, d).astype(preds_ref.dtype)

    if with_oh:
        # exact one-hot(argmax, first occurrence) for the next recycle iteration;
        # computed here so preds is never re-read from HBM.
        iota = jax.lax.broadcasted_iota(jnp.int32, y.shape, 1).astype(jnp.float32)
        m = jnp.max(y, axis=-1, keepdims=True)
        first = jnp.min(jnp.where(y >= m, iota, float(d)), axis=-1, keepdims=True)
        oh_next = (iota == first).astype(jnp.bfloat16)
        oh_out_ref[...] = oh_next.reshape(1, ts, ts, d)


# ----------------------------------------------------------------------------
# Pallas wrappers
# ----------------------------------------------------------------------------

def pallas_mlp(x2d, w1, b1, w2, b2, out_dtype=jnp.float32):
    R, Din = x2d.shape
    H, Dout = w1.shape[1], w2.shape[1]
    TR = _mlp_row_tile(R, Din, H, Dout,
                       jnp.dtype(x2d.dtype).itemsize, jnp.dtype(out_dtype).itemsize)
    return pl.pallas_call(
        _mlp_kernel,
        out_shape=jax.ShapeDtypeStruct((R, Dout), out_dtype),
        grid=(pl.cdiv(R, TR),),                # partial tail block, no jnp.pad round-trip
        in_specs=[
            pl.BlockSpec((TR, Din), lambda i: (i, 0)),
            pl.BlockSpec((Din, H), lambda i: (0, 0)),
            pl.BlockSpec((1, H), lambda i: (0, 0)),
            pl.BlockSpec((H, Dout), lambda i: (0, 0)),
            pl.BlockSpec((1, Dout), lambda i: (0, 0)),
        ],
        out_specs=pl.BlockSpec((TR, Dout), lambda i: (i, 0)),
        compiler_params=_cparams(1),
    )(x2d, w1.astype(jnp.bfloat16), b1.reshape(1, -1).astype(jnp.float32),
      w2.astype(jnp.bfloat16), b2.reshape(1, -1).astype(jnp.float32))


def pallas_ln_linear(x2d, gamma, beta, w, b):
    R, Din = x2d.shape
    Dout = w.shape[1]
    TR = _mlp_row_tile(R, Din, Din, Dout, 4, 4)
    return pl.pallas_call(
        _ln_proj_kernel,
        out_shape=jax.ShapeDtypeStruct((R, Dout), jnp.float32),
        grid=(pl.cdiv(R, TR),),
        in_specs=[
            pl.BlockSpec((TR, Din), lambda i: (i, 0)),
            pl.BlockSpec((1, Din), lambda i: (0, 0)),
            pl.BlockSpec((1, Din), lambda i: (0, 0)),
            pl.BlockSpec((Din, Dout), lambda i: (0, 0)),
            pl.BlockSpec((1, Dout), lambda i: (0, 0)),
        ],
        out_specs=pl.BlockSpec((TR, Dout), lambda i: (i, 0)),
        compiler_params=_cparams(1),
    )(x2d, gamma.reshape(1, -1).astype(jnp.float32), beta.reshape(1, -1).astype(jnp.float32),
      w.astype(jnp.bfloat16), b.reshape(1, -1).astype(jnp.float32))


def pallas_pair_proj(q, k, qd, z_proj, pos, wp_f, wd_f):
    """Fused SequenceToPair outer + o_proj + concat + projection -> bf16 (B,L,L,c_z)."""
    B, L, inner = q.shape
    c_z = qd.shape[-1]
    TI = _pair_i_tile(B, L, inner, c_z)
    kern = functools.partial(_pair_kernel, prod_f32=_PROD_F32)
    return pl.pallas_call(
        kern,
        out_shape=jax.ShapeDtypeStruct((B, L, L, c_z), jnp.bfloat16),
        grid=(B, pl.cdiv(L, TI)),
        in_specs=[
            pl.BlockSpec((1, L, inner), lambda b, i: (b, 0, 0)),        # q (resident)
            pl.BlockSpec((1, TI, inner), lambda b, i: (b, i, 0)),       # k i-tile
            pl.BlockSpec((1, L, c_z), lambda b, i: (b, 0, 0)),          # qd (resident, hoisted)
            pl.BlockSpec((1, TI, L, c_z), lambda b, i: (b, i, 0, 0)),   # pre-projected s_z, bf16
            pl.BlockSpec((1, TI, L, c_z), lambda b, i: (b, i, 0, 0)),   # pos (pre-folded), bf16
            pl.BlockSpec((inner, c_z), lambda b, i: (0, 0)),
            pl.BlockSpec((inner, c_z), lambda b, i: (0, 0)),
        ],
        out_specs=pl.BlockSpec((1, TI, L, c_z), lambda b, i: (b, i, 0, 0)),
        compiler_params=_cparams(2),
    )(q, k, qd, z_proj, pos, wp_f.astype(jnp.bfloat16), wd_f.astype(jnp.bfloat16))


def pallas_sym_mlp(s_z_p, oh_prev, w1, b1_eff, w2, b2, rec_w1, want_oh):
    """preds = fc_out(sym + recycle); symmetrization + recycle + argmax one-hot fused."""
    B, L, _, C = s_z_p.shape
    D = w2.shape[1]
    with_rec = oh_prev is not None
    TS = _sym_tile(B, L, C, D, with_rec, want_oh)
    kern = functools.partial(_sym_kernel, with_rec=with_rec, with_oh=want_oh)

    in_specs = [
        pl.BlockSpec((1, TS, TS, C), lambda b, i, j: (b, i, j, 0)),
        pl.BlockSpec((1, TS, TS, C), lambda b, i, j: (b, j, i, 0)),
    ]
    args = [s_z_p, s_z_p]
    if with_rec:
        in_specs += [
            pl.BlockSpec((1, TS, TS, D), lambda b, i, j: (b, i, j, 0)),
            pl.BlockSpec((1, TS, TS, D), lambda b, i, j: (b, j, i, 0)),
            pl.BlockSpec((D, C), lambda b, i, j: (0, 0)),
        ]
        args += [oh_prev, oh_prev, rec_w1.astype(jnp.bfloat16)]
    in_specs += [
        pl.BlockSpec((C, C), lambda b, i, j: (0, 0)),
        pl.BlockSpec((1, C), lambda b, i, j: (0, 0)),
        pl.BlockSpec((C, D), lambda b, i, j: (0, 0)),
        pl.BlockSpec((1, D), lambda b, i, j: (0, 0)),
    ]
    args += [w1.astype(jnp.bfloat16), b1_eff.reshape(1, -1).astype(jnp.float32),
             w2.astype(jnp.bfloat16), b2.reshape(1, -1).astype(jnp.float32)]

    preds_spec = pl.BlockSpec((1, TS, TS, D), lambda b, i, j: (b, i, j, 0))
    if want_oh:
        out_shape = (jax.ShapeDtypeStruct((B, L, L, D), jnp.float32),
                     jax.ShapeDtypeStruct((B, L, L, D), jnp.bfloat16))
        out_specs = (preds_spec,
                     pl.BlockSpec((1, TS, TS, D), lambda b, i, j: (b, i, j, 0)))
    else:
        out_shape = jax.ShapeDtypeStruct((B, L, L, D), jnp.float32)
        out_specs = preds_spec

    return pl.pallas_call(
        kern,
        out_shape=out_shape,
        grid=(B, L // TS, L // TS),
        in_specs=in_specs,
        out_specs=out_specs,
        compiler_params=_cparams(3),
    )(*args)


# ----------------------------------------------------------------------------
# Model pieces (tiny weight folds / gathers stay in plain JAX; heavy math in Pallas)
# ----------------------------------------------------------------------------

def folding_trunk(fold, s_s, z_proj, mask, num_recycling):
    B, L, c_s = s_s.shape
    c_z = z_proj.shape[-1]
    inner = fold["s2p_proj_w"].shape[1] // 2

    # --- exact weight folds (tiny trace-time matmuls, f32) -----------------------------
    w2p = fold["proj_w"][c_z:2 * c_z]          # projection columns for the seq->pair term
    w3p = fold["proj_w"][2 * c_z:]             # projection columns for the pos term
    wp_f = fold["s2p_o_w"][:inner] @ w2p       # prod path:  o_proj @ projection
    wd_f = fold["s2p_o_w"][inner:] @ w2p       # diff path:  o_proj @ projection
    b_eff = fold["proj_b"] + fold["s2p_o_b"] @ w2p
    # pos embedding table pre-multiplied by the projection, effective bias folded in
    pos_tab = fold["rel_emb"] @ w3p + b_eff[None, :]

    # --- SequenceToPair front half: LN + proj, extended with the hoisted q @ Wd' columns
    w_ext = jnp.concatenate(
        [fold["s2p_proj_w"], fold["s2p_proj_w"][:, :inner] @ wd_f], axis=1)
    b_ext = jnp.concatenate([fold["s2p_proj_b"], fold["s2p_proj_b"][:inner] @ wd_f])
    s = pallas_ln_linear(s_s.reshape(-1, c_s), fold["ln_g"], fold["ln_b"], w_ext, b_ext)
    s = s.reshape(B, L, 2 * inner + c_z)
    q, k, qd = s[..., :inner], s[..., inner:2 * inner], s[..., 2 * inner:]

    # --- RelativePosition: masked clipped index -> gather from the pre-folded table ----
    # (pair_mask only zeroes the index, exactly like the torch reference.)
    pair_mask = mask[:, None, :] * mask[:, :, None]
    residx = jnp.broadcast_to(jnp.arange(L, dtype=jnp.int32)[None, :], (B, L))
    bins = (fold["rel_emb"].shape[0] - 2) // 2
    diff = residx[:, None, :] - residx[:, :, None]
    diff = jnp.clip(diff, -bins, bins) + bins + 1
    diff = jnp.where(pair_mask == 0, 0, diff)
    pos = pos_tab.astype(jnp.bfloat16)[diff]                # (B, L, L, c_z) bf16 (glue gather)

    # --- fused pair projection: s_z_p = projection([s_z | seq2pair | pos]) (bf16) ------
    s_z_p = pallas_pair_proj(q, k, qd, z_proj, pos, wp_f, wd_f)

    # --- recycling loop -----------------------------------------------------------------
    # TODO(synk): MiniFormer is not defined in the reference source; treated as identity.
    w1 = fold["fco_w1"]
    b1_eff = fold["fco_b1"] + 2.0 * (fold["rec_b"] @ w1)     # 2*rec_b through fc_out's W1
    rec_w1 = fold["rec_w"] @ w1                              # recycle rows pre-projected by W1
    oh_prev = None
    preds = pair = None
    for it in range(num_recycling + 1):
        is_last = it == num_recycling
        if is_last:
            # Returned pair rep: s_z_c = s_z_p + recycle(dists_{it-1}).
            # Iteration 0 uses dists = all-zeros VECTOR (torch.zeros), so recycle() = bias only.
            rec = fold["rec_b"]
            if oh_prev is not None:
                rec = rec + fold["rec_w"][jnp.argmax(oh_prev, axis=-1)]
            pair = s_z_p.astype(jnp.float32) + rec
        out = pallas_sym_mlp(s_z_p, oh_prev, w1, b1_eff,
                             fold["fco_w2"], fold["fco_b2"], rec_w1,
                             want_oh=not is_last)
        if is_last:
            preds = out
        else:
            preds, oh_prev = out
    return preds, pair


def minifold_forward(params, lm_repr, lm_attn, mask, num_recycling=0):
    """MiniFoldModel.forward (use_structure_module=False path).

    lm_repr: (B, L, embed_dim)   -- stands in for lm representations (external ESM LM)
    lm_attn: (B, L, L, attn_dim) -- stands in for flattened lm attentions (bf16 ok)
    mask:    (B, L) int {0,1}
    """
    B, L, E = lm_repr.shape
    A = lm_attn.shape[-1]
    c_z = params["fold"]["proj_w"].shape[1]

    s_s = pallas_mlp(lm_repr.reshape(-1, E), *params["fc_s"],
                     out_dtype=jnp.float32).reshape(B, L, -1)

    # fc_z with the trunk projection's s_z columns folded into its second layer:
    # emits the already-projected pair term directly, stored bf16 in HBM.
    w1z, b1z, w2z, b2z = params["fc_z"]
    wz = params["fold"]["proj_w"][:c_z]
    z_proj = pallas_mlp(lm_attn.reshape(-1, A), w1z, b1z, w2z @ wz, b2z @ wz,
                        out_dtype=jnp.bfloat16).reshape(B, L, L, c_z)

    preds, pair = folding_trunk(params["fold"], s_s, z_proj, mask, num_recycling)
    return {"preds": preds, "pair": pair}


# ----------------------------------------------------------------------------
# Deterministic parameter init (shapes follow the torch module, scaled down)
# ----------------------------------------------------------------------------

def init_params(key, embed_dim, attn_dim, c_s, c_z, bins, disto_bins):
    ks = jax.random.split(key, 18)
    w = lambda k, shape, s=0.05: (s * jax.random.normal(k, shape)).astype(jnp.float32)
    inner = c_z // 2
    return {
        "fc_s": (w(ks[0], (embed_dim, c_s)), w(ks[1], (c_s,)),
                 w(ks[2], (c_s, c_s)), w(ks[3], (c_s,))),
        "fc_z": (w(ks[4], (attn_dim, c_z)), w(ks[5], (c_z,)),
                 w(ks[6], (c_z, c_z)), w(ks[7], (c_z,))),
        "fold": {
            "rel_emb": w(ks[8], (2 * bins + 2, c_z)),
            "ln_g": jnp.ones((c_s,), jnp.float32),
            "ln_b": jnp.zeros((c_s,), jnp.float32),
            "s2p_proj_w": w(ks[9], (c_s, 2 * inner)),
            "s2p_proj_b": jnp.zeros((2 * inner,), jnp.float32),   # zeroed in torch init
            # torch zero-inits o_proj; kept nonzero here so the prod/diff kernel paths
            # are actually exercised numerically by the test.
            "s2p_o_w": w(ks[16], (2 * inner, c_z)),
            "s2p_o_b": w(ks[17], (c_z,)),
            "proj_w": w(ks[10], (3 * c_z, c_z)),
            "proj_b": w(ks[11], (c_z,)),
            "rec_w": w(ks[12], (disto_bins, c_z)),
            "rec_b": w(ks[13], (c_z,)),
            "fco_w1": w(ks[14], (c_z, c_z)),
            "fco_b1": jnp.zeros((c_z,), jnp.float32),
            "fco_w2": w(ks[15], (c_z, disto_bins)),
            "fco_b2": jnp.zeros((disto_bins,), jnp.float32),
        },
    }


# ----------------------------------------------------------------------------
# Main
# ----------------------------------------------------------------------------

if __name__ == "__main__":
    B, L = 2, 8                   # batch, sequence length
    embed_dim, attn_dim = 32, 16  # stand-ins for ESM repr / attention dims
    c_s, c_z = 64, 32             # scaled-down 1024 / 128
    bins, disto_bins = 4, 16      # scaled-down 32 / 64

    key = jax.random.PRNGKey(0)
    kp, kr, ka = jax.random.split(key, 3)
    params = init_params(kp, embed_dim, attn_dim, c_s, c_z, bins, disto_bins)

    lm_repr = jax.random.normal(kr, (B, L, embed_dim), jnp.float32)
    # keep the big LM-attention tensor bf16 in HBM (it only feeds bf16 MXU matmuls)
    lm_attn = jax.random.normal(ka, (B, L, L, attn_dim), jnp.float32).astype(jnp.bfloat16)
    mask = jnp.ones((B, L), jnp.int32).at[1, -2:].set(0)

    # num_recycling=1 exercises both sym-kernel variants (bias-only and recycle-fused).
    fwd = jax.jit(functools.partial(minifold_forward, num_recycling=1))
    out = fwd(params, lm_repr, lm_attn, mask)
    jax.block_until_ready(out)

    assert out["preds"].shape == (B, L, L, disto_bins)
    assert out["pair"].shape == (B, L, L, c_z)
    assert jnp.all(jnp.isfinite(out["preds"]))
    assert jnp.all(jnp.isfinite(out["pair"]))
    print("KERNEL_OK")
</pallas_src>

<mosaic_0001>
module attributes {stable_mosaic.version = 11 : i64} {
  func.func @_mlp_kernel(%arg0: i32, %arg1: memref<16x32xf32, #tpu.memory_space<vmem>>, %arg2: memref<32x64xbf16, #tpu.memory_space<vmem>>, %arg3: memref<1x64xf32, #tpu.memory_space<vmem>>, %arg4: memref<64x64xbf16, #tpu.memory_space<vmem>>, %arg5: memref<1x64xf32, #tpu.memory_space<vmem>>, %arg6: memref<16x64xf32, #tpu.memory_space<vmem>>) attributes {dimension_semantics = [#tpu.dimension_semantics<parallel>], iteration_bounds = array<i64: 1>, scalar_prefetch = 0 : i64, scratch_operands = 0 : i64, tpu.core_type = #tpu.core_type<tc>, window_params = [{transform_indices = @transform_0, window_bounds = array<i64: 16, 32>}, {pipeline_mode = #tpu.pipeline_mode<synchronous>, transform_indices = @transform_1, window_bounds = array<i64: 32, 64>}, {pipeline_mode = #tpu.pipeline_mode<synchronous>, transform_indices = @transform_2, window_bounds = array<i64: 1, 64>}, {pipeline_mode = #tpu.pipeline_mode<synchronous>, transform_indices = @transform_3, window_bounds = array<i64: 64, 64>}, {pipeline_mode = #tpu.pipeline_mode<synchronous>, transform_indices = @transform_4, window_bounds = array<i64: 1, 64>}, {transform_indices = @transform_5, window_bounds = array<i64: 16, 64>}]} {
    %c0 = arith.constant 0 : index
    %c0_0 = arith.constant 0 : index
    %0 = vector.load %arg1[%c0, %c0_0] : memref<16x32xf32, #tpu.memory_space<vmem>>, vector<16x32xf32>
    %1 = arith.truncf %0 : vector<16x32xf32> to vector<16x32xbf16>
    %c0_1 = arith.constant 0 : index
    %c0_2 = arith.constant 0 : index
    %2 = vector.load %arg2[%c0_1, %c0_2] : memref<32x64xbf16, #tpu.memory_space<vmem>>, vector<32x64xbf16>
    %cst = arith.constant dense<0.000000e+00> : vector<16x64xf32>
    %3 = tpu.matmul %1, %2, %cst {dimension_numbers = #tpu.dot_dimension_numbers<[1], [0], [0], [1], [0, 0, 1, 1], [], []>} : vector<16x32xbf16>, vector<32x64xbf16>, vector<16x64xf32> -> vector<16x64xf32>
    %c0_3 = arith.constant 0 : index
    %c0_4 = arith.constant 0 : index
    %4 = vector.load %arg3[%c0_3, %c0_4] : memref<1x64xf32, #tpu.memory_space<vmem>>, vector<1x64xf32>
    %5 = vector.broadcast %4 : vector<1x64xf32> to vector<16x64xf32>
    %6 = arith.addf %3, %5 : vector<16x64xf32>
    %cst_5 = arith.constant 0.000000e+00 : f32
    %7 = vector.broadcast %cst_5 : f32 to vector<16x64xf32>
    %8 = arith.maximumf %6, %7 : vector<16x64xf32>
    %9 = arith.truncf %8 : vector<16x64xf32> to vector<16x64xbf16>
    %c0_6 = arith.constant 0 : index
    %c0_7 = arith.constant 0 : index
    %10 = vector.load %arg4[%c0_6, %c0_7] : memref<64x64xbf16, #tpu.memory_space<vmem>>, vector<64x64xbf16>
    %cst_8 = arith.constant dense<0.000000e+00> : vector<16x64xf32>
    %11 = tpu.matmul %9, %10, %cst_8 {dimension_numbers = #tpu.dot_dimension_numbers<[1], [0], [0], [1], [0, 0, 1, 1], [], []>} : vector<16x64xbf16>, vector<64x64xbf16>, vector<16x64xf32> -> vector<16x64xf32>
    %c0_9 = arith.constant 0 : index
    %c0_10 = arith.constant 0 : index
    %12 = vector.load %arg5[%c0_9, %c0_10] : memref<1x64xf32, #tpu.memory_space<vmem>>, vector<1x64xf32>
    %13 = vector.broadcast %12 : vector<1x64xf32> to vector<16x64xf32>
    %14 = arith.addf %11, %13 : vector<16x64xf32>
    %c0_11 = arith.constant 0 : index
    %c0_12 = arith.constant 0 : index
    %15 = vector.load %arg6[%c0_11, %c0_12] : memref<16x64xf32, #tpu.memory_space<vmem>>, vector<16x64xf32>
    tpu.vector_store %arg6[%c0_11, %c0_12], %14 {strides = array<i32>} : memref<16x64xf32, #tpu.memory_space<vmem>>, vector<16x64xf32>,
    return
  }
  func.func @transform_0(%arg0: i32) -> (i32, i32) {
    %c0_i32 = arith.constant 0 : i32
    %c0_i32_0 = arith.constant 0 : i32
    return %arg0, %c0_i32 : i32, i32
  }
  func.func @transform_1(%arg0: i32) -> (i32, i32) {
    %c0_i32 = arith.constant 0 : i32
    %c0_i32_0 = arith.constant 0 : i32
    %c0_i32_1 = arith.constant 0 : i32
    return %c0_i32, %c0_i32_0 : i32, i32
  }
  func.func @transform_2(%arg0: i32) -> (i32, i32) {
    %c0_i32 = arith.constant 0 : i32
    %c0_i32_0 = arith.constant 0 : i32
    %c0_i32_1 = arith.constant 0 : i32
    return %c0_i32, %c0_i32_0 : i32, i32
  }
  func.func @transform_3(%arg0: i32) -> (i32, i32) {
    %c0_i32 = arith.constant 0 : i32
    %c0_i32_0 = arith.constant 0 : i32
    %c0_i32_1 = arith.constant 0 : i32
    return %c0_i32, %c0_i32_0 : i32, i32
  }
  func.func @transform_4(%arg0: i32) -> (i32, i32) {
    %c0_i32 = arith.constant 0 : i32
    %c0_i32_0 = arith.constant 0 : i32
    %c0_i32_1 = arith.constant 0 : i32
    return %c0_i32, %c0_i32_0 : i32, i32
  }
  func.func @transform_5(%arg0: i32) -> (i32, i32) {
    %c0_i32 = arith.constant 0 : i32
    %c0_i32_0 = arith.constant 0 : i32
    return %arg0, %c0_i32 : i32, i32
  }
}

module attributes {stable_mosaic.version = 11 : i64} {
  func.func @_ln_proj_kernel(%arg0: i32, %arg1: memref<16x64xf32, #tpu.memory_space<vmem>>, %arg2: memref<1x64xf32, #tpu.memory_space<vmem>>, %arg3: memref<1x64xf32, #tpu.memory_space<vmem>>, %arg4: memref<64x64xbf16, #tpu.memory_space<vmem>>, %arg5: memref<1x64xf32, #tpu.memory_space<vmem>>, %arg6: memref<16x64xf32, #tpu.memory_space<vmem>>) attributes {dimension_semantics = [#tpu.dimension_semantics<parallel>], iteration_bounds = array<i64: 1>, scalar_prefetch = 0 : i64, scratch_operands = 0 : i64, tpu.core_type = #tpu.core_type<tc>, window_params = [{transform_indices = @transform_0, window_bounds = array<i64: 16, 64>}, {pipeline_mode = #tpu.pipeline_mode<synchronous>, transform_indices = @transform_1, window_bounds = array<i64: 1, 64>}, {pipeline_mode = #tpu.pipeline_mode<synchronous>, transform_indices = @transform_2, window_bounds = array<i64: 1, 64>}, {pipeline_mode = #tpu.pipeline_mode<synchronous>, transform_indices = @transform_3, window_bounds = array<i64: 64, 64>}, {pipeline_mode = #tpu.pipeline_mode<synchronous>, transform_indices = @transform_4, window_bounds = array<i64: 1, 64>}, {transform_indices = @transform_5, window_bounds = array<i64: 16, 64>}]} {
    %c0 = arith.constant 0 : index
    %c0_0 = arith.constant 0 : index
    %0 = vector.load %arg1[%c0, %c0_0] : memref<16x64xf32, #tpu.memory_space<vmem>>, vector<16x64xf32>
    %cst = arith.constant dense<0.000000e+00> : vector<16xf32>
    %1 = vector.multi_reduction <add>, %0, %cst [1] : vector<16x64xf32> to vector<16xf32>
    %2 = vector.shape_cast %1 : vector<16xf32> to vector<16x1xf32>
    %cst_1 = arith.constant 6.400000e+01 : f32
    %3 = vector.broadcast %cst_1 : f32 to vector<16x1xf32>
    %4 = arith.divf %2, %3 : vector<16x1xf32>
    %5 = vector.broadcast %4 : vector<16x1xf32> to vector<16x64xf32>
    %6 = arith.subf %0, %5 : vector<16x64xf32>
    %7 = arith.mulf %6, %6 : vector<16x64xf32>
    %cst_2 = arith.constant dense<0.000000e+00> : vector<16xf32>
    %8 = vector.multi_reduction <add>, %7, %cst_2 [1] : vector<16x64xf32> to vector<16xf32>
    %9 = vector.shape_cast %8 : vector<16xf32> to vector<16x1xf32>
    %cst_3 = arith.constant 6.400000e+01 : f32
    %10 = vector.broadcast %cst_3 : f32 to vector<16x1xf32>
    %11 = arith.divf %9, %10 : vector<16x1xf32>
    %12 = vector.broadcast %4 : vector<16x1xf32> to vector<16x64xf32>
    %13 = arith.subf %0, %12 : vector<16x64xf32>
    %cst_4 = arith.constant 9.99999974E-6 : f32
    %14 = vector.broadcast %cst_4 : f32 to vector<16x1xf32>
    %15 = arith.addf %11, %14 : vector<16x1xf32>
    %16 = math.rsqrt %15 : vector<16x1xf32>
    %17 = vector.broadcast %16 : vector<16x1xf32> to vector<16x64xf32>
    %18 = arith.mulf %13, %17 : vector<16x64xf32>
    %c0_5 = arith.constant 0 : index
    %c0_6 = arith.constant 0 : index
    %19 = vector.load %arg2[%c0_5, %c0_6] : memref<1x64xf32, #tpu.memory_space<vmem>>, vector<1x64xf32>
    %20 = vector.broadcast %19 : vector<1x64xf32> to vector<16x64xf32>
    %21 = arith.mulf %18, %20 : vector<16x64xf32>
    %c0_7 = arith.constant 0 : index
    %c0_8 = arith.constant 0 : index
    %22 = vector.load %arg3[%c0_7, %c0_8] : memref<1x64xf32, #tpu.memory_space<vmem>>, vector<1x64xf32>
    %23 = vector.broadcast %22 : vector<1x64xf32> to vector<16x64xf32>
    %24 = arith.addf %21, %23 : vector<16x64xf32>
    %25 = arith.truncf %24 : vector<16x64xf32> to vector<16x64xbf16>
    %c0_9 = arith.constant 0 : index
    %c0_10 = arith.constant 0 : index
    %26 = vector.load %arg4[%c0_9, %c0_10] : memref<64x64xbf16, #tpu.memory_space<vmem>>, vector<64x64xbf16>
    %cst_11 = arith.constant dense<0.000000e+00> : vector<16x64xf32>
    %27 = tpu.matmul %25, %26, %cst_11 {dimension_numbers = #tpu.dot_dimension_numbers<[1], [0], [0], [1], [0, 0, 1, 1], [], []>} : vector<16x64xbf16>, vector<64x64xbf16>, vector<16x64xf32> -> vector<16x64xf32>
    %c0_12 = arith.constant 0 : index
    %c0_13 = arith.constant 0 : index
    %28 = vector.load %arg5[%c0_12, %c0_13] : memref<1x64xf32, #tpu.memory_space<vmem>>, vector<1x64xf32>
    %29 = vector.broadcast %28 : vector<1x64xf32> to vector<16x64xf32>
    %30 = arith.addf %27, %29 : vector<16x64xf32>
    %c0_14 = arith.constant 0 : index
    %c0_15 = arith.constant 0 : index
    %31 = vector.load %arg6[%c0_14, %c0_15] : memref<16x64xf32, #tpu.memory_space<vmem>>, vector<16x64xf32>
    tpu.vector_store %arg6[%c0_14, %c0_15], %30 {strides = array<i32>} : memref<16x64xf32, #tpu.memory_space<vmem>>, vector<16x64xf32>,
    return
  }
  func.func @transform_0(%arg0: i32) -> (i32, i32) {
    %c0_i32 = arith.constant 0 : i32
    %c0_i32_0 = arith.constant 0 : i32
    return %arg0, %c0_i32 : i32, i32
  }
  func.func @transform_1(%arg0: i32) -> (i32, i32) {
    %c0_i32 = arith.constant 0 : i32
    %c0_i32_0 = arith.constant 0 : i32
    %c0_i32_1 = arith.constant 0 : i32
    return %c0_i32, %c0_i32_0 : i32, i32
  }
  func.func @transform_2(%arg0: i32) -> (i32, i32) {
    %c0_i32 = arith.constant 0 : i32
    %c0_i32_0 = arith.constant 0 : i32
    %c0_i32_1 = arith.constant 0 : i32
    return %c0_i32, %c0_i32_0 : i32, i32
  }
  func.func @transform_3(%arg0: i32) -> (i32, i32) {
    %c0_i32 = arith.constant 0 : i32
    %c0_i32_0 = arith.constant 0 : i32
    %c0_i32_1 = arith.constant 0 : i32
    return %c0_i32, %c0_i32_0 : i32, i32
  }
  func.func @transform_4(%arg0: i32) -> (i32, i32) {
    %c0_i32 = arith.constant 0 : i32
    %c0_i32_0 = arith.constant 0 : i32
    %c0_i32_1 = arith.constant 0 : i32
    return %c0_i32, %c0_i32_0 : i32, i32
  }
  func.func @transform_5(%arg0: i32) -> (i32, i32) {
    %c0_i32 = arith.constant 0 : i32
    %c0_i32_0 = arith.constant 0 : i32
    return %arg0, %c0_i32 : i32, i32
  }
}

module attributes {stable_mosaic.version = 11 : i64} {
  func.func @_mlp_kernel(%arg0: i32, %arg1: memref<128x16xbf16, #tpu.memory_space<vmem>>, %arg2: memref<16x32xbf16, #tpu.memory_space<vmem>>, %arg3: memref<1x32xf32, #tpu.memory_space<vmem>>, %arg4: memref<32x32xbf16, #tpu.memory_space<vmem>>, %arg5: memref<1x32xf32, #tpu.memory_space<vmem>>, %arg6: memref<128x32xbf16, #tpu.memory_space<vmem>>) attributes {dimension_semantics = [#tpu.dimension_semantics<parallel>], iteration_bounds = array<i64: 1>, scalar_prefetch = 0 : i64, scratch_operands = 0 : i64, tpu.core_type = #tpu.core_type<tc>, window_params = [{transform_indices = @transform_0, window_bounds = array<i64: 128, 16>}, {pipeline_mode = #tpu.pipeline_mode<synchronous>, transform_indices = @transform_1, window_bounds = array<i64: 16, 32>}, {pipeline_mode = #tpu.pipeline_mode<synchronous>, transform_indices = @transform_2, window_bounds = array<i64: 1, 32>}, {pipeline_mode = #tpu.pipeline_mode<synchronous>, transform_indices = @transform_3, window_bounds = array<i64: 32, 32>}, {pipeline_mode = #tpu.pipeline_mode<synchronous>, transform_indices = @transform_4, window_bounds = array<i64: 1, 32>}, {transform_indices = @transform_5, window_bounds = array<i64: 128, 32>}]} {
    %c0 = arith.constant 0 : index
    %c0_0 = arith.constant 0 : index
    %0 = vector.load %arg1[%c0, %c0_0] : memref<128x16xbf16, #tpu.memory_space<vmem>>, vector<128x16xbf16>
    %c0_1 = arith.constant 0 : index
    %c0_2 = arith.constant 0 : index
    %1 = vector.load %arg2[%c0_1, %c0_2] : memref<16x32xbf16, #tpu.memory_space<vmem>>, vector<16x32xbf16>
    %cst = arith.constant dense<0.000000e+00> : vector<128x32xf32>
    %2 = tpu.matmul %0, %1, %cst {dimension_numbers = #tpu.dot_dimension_numbers<[1], [0], [0], [1], [0, 0, 1, 1], [], []>} : vector<128x16xbf16>, vector<16x32xbf16>, vector<128x32xf32> -> vector<128x32xf32>
    %c0_3 = arith.constant 0 : index
    %c0_4 = arith.constant 0 : index
    %3 = vector.load %arg3[%c0_3, %c0_4] : memref<1x32xf32, #tpu.memory_space<vmem>>, vector<1x32xf32>
    %4 = vector.broadcast %3 : vector<1x32xf32> to vector<128x32xf32>
    %5 = arith.addf %2, %4 : vector<128x32xf32>
    %cst_5 = arith.constant 0.000000e+00 : f32
    %6 = vector.broadcast %cst_5 : f32 to vector<128x32xf32>
    %7 = arith.maximumf %5, %6 : vector<128x32xf32>
    %8 = arith.truncf %7 : vector<128x32xf32> to vector<128x32xbf16>
    %c0_6 = arith.constant 0 : index
    %c0_7 = arith.constant 0 : index
    %9 = vector.load %arg4[%c0_6, %c0_7] : memref<32x32xbf16, #tpu.memory_space<vmem>>, vector<32x32xbf16>
    %cst_8 = arith.constant dense<0.000000e+00> : vector<128x32xf32>
    %10 = tpu.matmul %8, %9, %cst_8 {dimension_numbers = #tpu.dot_dimension_numbers<[1], [0], [0], [1], [0, 0, 1, 1], [], []>} : vector<128x32xbf16>, vector<32x32xbf16>, vector<128x32xf32> -> vector<128x32xf32>
    %c0_9 = arith.constant 0 : index
    %c0_10 = arith.constant 0 : index
    %11 = vector.load %arg5[%c0_9, %c0_10] : memref<1x32xf32, #tpu.memory_space<vmem>>, vector<1x32xf32>
    %12 = vector.broadcast %11 : vector<1x32xf32> to vector<128x32xf32>
    %13 = arith.addf %10, %12 : vector<128x32xf32>
    %14 = arith.truncf %13 : vector<128x32xf32> to vector<128x32xbf16>
    %c0_11 = arith.constant 0 : index
    %c0_12 = arith.constant 0 : index
    %15 = vector.load %arg6[%c0_11, %c0_12] : memref<128x32xbf16, #tpu.memory_space<vmem>>, vector<128x32xbf16>
    tpu.vector_store %arg6[%c0_11, %c0_12], %14 {strides = array<i32>} : memref<128x32xbf16, #tpu.memory_space<vmem>>, vector<128x32xbf16>,
    return
  }
  func.func @transform_0(%arg0: i32) -> (i32, i32) {
    %c0_i32 = arith.constant 0 : i32
    %c0_i32_0 = arith.constant 0 : i32
    return %arg0, %c0_i32 : i32, i32
  }
  func.func @transform_1(%arg0: i32) -> (i32, i32) {
    %c0_i32 = arith.constant 0 : i32
    %c0_i32_0 = arith.constant 0 : i32
    %c0_i32_1 = arith.constant 0 : i32
    return %c0_i32, %c0_i32_0 : i32, i32
  }
  func.func @transform_2(%arg0: i32) -> (i32, i32) {
    %c0_i32 = arith.constant 0 : i32
    %c0_i32_0 = arith.constant 0 : i32
    %c0_i32_1 = arith.constant 0 : i32
    return %c0_i32, %c0_i32_0 : i32, i32
  }
  func.func @transform_3(%arg0: i32) -> (i32, i32) {
    %c0_i32 = arith.constant 0 : i32
    %c0_i32_0 = arith.constant 0 : i32
    %c0_i32_1 = arith.constant 0 : i32
    return %c0_i32, %c0_i32_0 : i32, i32
  }
  func.func @transform_4(%arg0: i32) -> (i32, i32) {
    %c0_i32 = arith.constant 0 : i32
    %c0_i32_0 = arith.constant 0 : i32
    %c0_i32_1 = arith.constant 0 : i32
    return %c0_i32, %c0_i32_0 : i32, i32
  }
  func.func @transform_5(%arg0: i32) -> (i32, i32) {
    %c0_i32 = arith.constant 0 : i32
    %c0_i32_0 = arith.constant 0 : i32
    return %arg0, %c0_i32 : i32, i32
  }
}

module attributes {stable_mosaic.version = 11 : i64} {
  func.func @_pair_kernel(%arg0: i32, %arg1: i32, %arg2: memref<1x8x16xf32, #tpu.memory_space<vmem>>, %arg3: memref<1x8x16xf32, #tpu.memory_space<vmem>>, %arg4: memref<1x8x32xf32, #tpu.memory_space<vmem>>, %arg5: memref<1x8x8x32xbf16, #tpu.memory_space<vmem>>, %arg6: memref<1x8x8x32xbf16, #tpu.memory_space<vmem>>, %arg7: memref<16x32xbf16, #tpu.memory_space<vmem>>, %arg8: memref<16x32xbf16, #tpu.memory_space<vmem>>, %arg9: memref<1x8x8x32xbf16, #tpu.memory_space<vmem>>) attributes {dimension_semantics = [#tpu.dimension_semantics<parallel>, #tpu.dimension_semantics<parallel>], iteration_bounds = array<i64: 2, 1>, scalar_prefetch = 0 : i64, scratch_operands = 0 : i64, tpu.core_type = #tpu.core_type<tc>, window_params = [{transform_indices = @transform_0, window_bounds = array<i64: 1, 8, 16>}, {transform_indices = @transform_1, window_bounds = array<i64: 1, 8, 16>}, {transform_indices = @transform_2, window_bounds = array<i64: 1, 8, 32>}, {transform_indices = @transform_3, window_bounds = array<i64: 1, 8, 8, 32>}, {transform_indices = @transform_4, window_bounds = array<i64: 1, 8, 8, 32>}, {pipeline_mode = #tpu.pipeline_mode<synchronous>, transform_indices = @transform_5, window_bounds = array<i64: 16, 32>}, {pipeline_mode = #tpu.pipeline_mode<synchronous>, transform_indices = @transform_6, window_bounds = array<i64: 16, 32>}, {transform_indices = @transform_7, window_bounds = array<i64: 1, 8, 8, 32>}]} {
    %c0 = arith.constant 0 : index
    %c0_0 = arith.constant 0 : index
    %c0_1 = arith.constant 0 : index
    %0 = vector.load %arg2[%c0, %c0_0, %c0_1] : memref<1x8x16xf32, #tpu.memory_space<vmem>>, vector<1x8x16xf32>
    %1 = vector.shape_cast %0 : vector<1x8x16xf32> to vector<8x16xf32>
    %c0_2 = arith.constant 0 : index
    %c0_3 = arith.constant 0 : index
    %c0_4 = arith.constant 0 : index
    %2 = vector.load %arg3[%c0_2, %c0_3, %c0_4] : memref<1x8x16xf32, #tpu.memory_space<vmem>>, vector<1x8x16xf32>
    %3 = vector.shape_cast %2 : vector<1x8x16xf32> to vector<8x16xf32>
    %c0_5 = arith.constant 0 : index
    %c0_6 = arith.constant 0 : index
    %c0_7 = arith.constant 0 : index
    %4 = vector.load %arg4[%c0_5, %c0_6, %c0_7] : memref<1x8x32xf32, #tpu.memory_space<vmem>>, vector<1x8x32xf32>
    %5 = vector.shape_cast %4 : vector<1x8x32xf32> to vector<8x32xf32>
    %6 = arith.truncf %3 : vector<8x16xf32> to vector<8x16xbf16>
    %c0_8 = arith.constant 0 : index
    %c0_9 = arith.constant 0 : index
    %7 = vector.load %arg8[%c0_8, %c0_9] : memref<16x32xbf16, #tpu.memory_space<vmem>>, vector<16x32xbf16>
    %cst = arith.constant dense<0.000000e+00> : vector<8x32xf32>
    %8 = tpu.matmul %6, %7, %cst {dimension_numbers = #tpu.dot_dimension_numbers<[1], [0], [0], [1], [0, 0, 1, 1], [], []>} : vector<8x16xbf16>, vector<16x32xbf16>, vector<8x32xf32> -> vector<8x32xf32>
    %9 = vector.shape_cast %6 : vector<8x16xbf16> to vector<8x1x16xbf16>
    %10 = arith.truncf %1 : vector<8x16xf32> to vector<8x16xbf16>
    %11 = vector.shape_cast %10 : vector<8x16xbf16> to vector<1x8x16xbf16>
    %12 = vector.broadcast %9 : vector<8x1x16xbf16> to vector<8x8x16xbf16>
    %13 = vector.broadcast %11 : vector<1x8x16xbf16> to vector<8x8x16xbf16>
    %14 = arith.mulf %12, %13 : vector<8x8x16xbf16>
    %15 = vector.shape_cast %14 : vector<8x8x16xbf16> to vector<64x16xbf16>
    %c0_10 = arith.constant 0 : index
    %c0_11 = arith.constant 0 : index
    %16 = vector.load %arg7[%c0_10, %c0_11] : memref<16x32xbf16, #tpu.memory_space<vmem>>, vector<16x32xbf16>
    %cst_12 = arith.constant dense<0.000000e+00> : vector<64x32xf32>
    %17 = tpu.matmul %15, %16, %cst_12 {dimension_numbers = #tpu.dot_dimension_numbers<[1], [0], [0], [1], [0, 0, 1, 1], [], []>} : vector<64x16xbf16>, vector<16x32xbf16>, vector<64x32xf32> -> vector<64x32xf32>
    %18 = vector.shape_cast %17 : vector<64x32xf32> to vector<8x8x32xf32>
    %c0_13 = arith.constant 0 : index
    %c0_14 = arith.constant 0 : index
    %c0_15 = arith.constant 0 : index
    %c0_16 = arith.constant 0 : index
    %19 = vector.load %arg5[%c0_13, %c0_14, %c0_15, %c0_16] : memref<1x8x8x32xbf16, #tpu.memory_space<vmem>>, vector<1x8x8x32xbf16>
    %20 = vector.shape_cast %19 : vector<1x8x8x32xbf16> to vector<8x8x32xbf16>
    %21 = arith.extf %20 : vector<8x8x32xbf16> to vector<8x8x32xf32>
    %22 = arith.addf %18, %21 : vector<8x8x32xf32>
    %c0_17 = arith.constant 0 : index
    %c0_18 = arith.constant 0 : index
    %c0_19 = arith.constant 0 : index
    %c0_20 = arith.constant 0 : index
    %23 = vector.load %arg6[%c0_17, %c0_18, %c0_19, %c0_20] : memref<1x8x8x32xbf16, #tpu.memory_space<vmem>>, vector<1x8x8x32xbf16>
    %24 = vector.shape_cast %23 : vector<1x8x8x32xbf16> to vector<8x8x32xbf16>
    %25 = arith.extf %24 : vector<8x8x32xbf16> to vector<8x8x32xf32>
    %26 = arith.addf %22, %25 : vector<8x8x32xf32>
    %27 = vector.shape_cast %5 : vector<8x32xf32> to vector<1x8x32xf32>
    %28 = vector.broadcast %27 : vector<1x8x32xf32> to vector<8x8x32xf32>
    %29 = arith.addf %26, %28 : vector<8x8x32xf32>
    %30 = vector.shape_cast %8 : vector<8x32xf32> to vector<8x1x32xf32>
    %31 = vector.broadcast %30 : vector<8x1x32xf32> to vector<8x8x32xf32>
    %32 = arith.subf %29, %31 : vector<8x8x32xf32>
    %33 = vector.shape_cast %32 : vector<8x8x32xf32> to vector<1x8x8x32xf32>
    %34 = arith.truncf %33 : vector<1x8x8x32xf32> to vector<1x8x8x32xbf16>
    %c0_21 = arith.constant 0 : index
    %c0_22 = arith.constant 0 : index
    %c0_23 = arith.constant 0 : index
    %c0_24 = arith.constant 0 : index
    %35 = vector.load %arg9[%c0_21, %c0_22, %c0_23, %c0_24] : memref<1x8x8x32xbf16, #tpu.memory_space<vmem>>, vector<1x8x8x32xbf16>
    tpu.vector_store %arg9[%c0_21, %c0_22, %c0_23, %c0_24], %34 {strides = array<i32>} : memref<1x8x8x32xbf16, #tpu.memory_space<vmem>>, vector<1x8x8x32xbf16>,
    return
  }
  func.func @transform_0(%arg0: i32, %arg1: i32) -> (i32, i32, i32) {
    %c0_i32 = arith.constant 0 : i32
    %c0_i32_0 = arith.constant 0 : i32
    %c0_i32_1 = arith.constant 0 : i32
    return %arg0, %c0_i32, %c0_i32_0 : i32, i32, i32
  }
  func.func @transform_1(%arg0: i32, %arg1: i32) -> (i32, i32, i32) {
    %c0_i32 = arith.constant 0 : i32
    %c0_i32_0 = arith.constant 0 : i32
    return %arg0, %arg1, %c0_i32 : i32, i32, i32
  }
  func.func @transform_2(%arg0: i32, %arg1: i32) -> (i32, i32, i32) {
    %c0_i32 = arith.constant 0 : i32
    %c0_i32_0 = arith.constant 0 : i32
    %c0_i32_1 = arith.constant 0 : i32
    return %arg0, %c0_i32, %c0_i32_0 : i32, i32, i32
  }
  func.func @transform_3(%arg0: i32, %arg1: i32) -> (i32, i32, i32, i32) {
    %c0_i32 = arith.constant 0 : i32
    %c0_i32_0 = arith.constant 0 : i32
    %c0_i32_1 = arith.constant 0 : i32
    return %arg0, %arg1, %c0_i32, %c0_i32_0 : i32, i32, i32, i32
  }
  func.func @transform_4(%arg0: i32, %arg1: i32) -> (i32, i32, i32, i32) {
    %c0_i32 = arith.constant 0 : i32
    %c0_i32_0 = arith.constant 0 : i32
    %c0_i32_1 = arith.constant 0 : i32
    return %arg0, %arg1, %c0_i32, %c0_i32_0 : i32, i32, i32, i32
  }
  func.func @transform_5(%arg0: i32, %arg1: i32) -> (i32, i32) {
    %c0_i32 = arith.constant 0 : i32
    %c0_i32_0 = arith.constant 0 : i32
    %c0_i32_1 = arith.constant 0 : i32
    return %c0_i32, %c0_i32_0 : i32, i32
  }
  func.func @transform_6(%arg0: i32, %arg1: i32) -> (i32, i32) {
    %c0_i32 = arith.constant 0 : i32
    %c0_i32_0 = arith.constant 0 : i32
    %c0_i32_1 = arith.constant 0 : i32
    return %c0_i32, %c0_i32_0 : i32, i32
  }
  func.func @transform_7(%arg0: i32, %arg1: i32) -> (i32, i32, i32, i32) {
    %c0_i32 = arith.constant 0 : i32
    %c0_i32_0 = arith.constant 0 : i32
    %c0_i32_1 = arith.constant 0 : i32
    return %arg0, %arg1, %c0_i32, %c0_i32_0 : i32, i32, i32, i32
  }
}

module attributes {stable_mosaic.version = 11 : i64} {
  func.func @_sym_kernel(%arg0: i32, %arg1: i32, %arg2: i32, %arg3: memref<1x8x8x32xbf16, #tpu.memory_space<vmem>>, %arg4: memref<1x8x8x32xbf16, #tpu.memory_space<vmem>>, %arg5: memref<32x32xbf16, #tpu.memory_space<vmem>>, %arg6: memref<1x32xf32, #tpu.memory_space<vmem>>, %arg7: memref<32x16xbf16, #tpu.memory_space<vmem>>, %arg8: memref<1x16xf32, #tpu.memory_space<vmem>>, %arg9: memref<1x8x8x16xf32, #tpu.memory_space<vmem>>, %arg10: memref<1x8x8x16xbf16, #tpu.memory_space<vmem>>) attributes {dimension_semantics = [#tpu.dimension_semantics<parallel>, #tpu.dimension_semantics<parallel>, #tpu.dimension_semantics<parallel>], iteration_bounds = array<i64: 2, 1, 1>, scalar_prefetch = 0 : i64, scratch_operands = 0 : i64, tpu.core_type = #tpu.core_type<tc>, window_params = [{transform_indices = @transform_0, window_bounds = array<i64: 1, 8, 8, 32>}, {transform_indices = @transform_1, window_bounds = array<i64: 1, 8, 8, 32>}, {pipeline_mode = #tpu.pipeline_mode<synchronous>, transform_indices = @transform_2, window_bounds = array<i64: 32, 32>}, {pipeline_mode = #tpu.pipeline_mode<synchronous>, transform_indices = @transform_3, window_bounds = array<i64: 1, 32>}, {pipeline_mode = #tpu.pipeline_mode<synchronous>, transform_indices = @transform_4, window_bounds = array<i64: 32, 16>}, {pipeline_mode = #tpu.pipeline_mode<synchronous>, transform_indices = @transform_5, window_bounds = array<i64: 1, 16>}, {transform_indices = @transform_6, window_bounds = array<i64: 1, 8, 8, 16>}, {transform_indices = @transform_7, window_bounds = array<i64: 1, 8, 8, 16>}]} {
    %c0 = arith.constant 0 : index
    %c0_0 = arith.constant 0 : index
    %c0_1 = arith.constant 0 : index
    %c0_2 = arith.constant 0 : index
    %0 = vector.load %arg3[%c0, %c0_0, %c0_1, %c0_2] : memref<1x8x8x32xbf16, #tpu.memory_space<vmem>>, vector<1x8x8x32xbf16>
    %1 = vector.shape_cast %0 : vector<1x8x8x32xbf16> to vector<8x8x32xbf16>
    %2 = arith.extf %1 : vector<8x8x32xbf16> to vector<8x8x32xf32>
    %c0_3 = arith.constant 0 : index
    %c0_4 = arith.constant 0 : index
    %c0_5 = arith.constant 0 : index
    %c0_6 = arith.constant 0 : index
    %3 = vector.load %arg4[%c0_3, %c0_4, %c0_5, %c0_6] : memref<1x8x8x32xbf16, #tpu.memory_space<vmem>>, vector<1x8x8x32xbf16>
    %4 = vector.shape_cast %3 : vector<1x8x8x32xbf16> to vector<8x8x32xbf16>
    %5 = arith.extf %4 : vector<8x8x32xbf16> to vector<8x8x32xf32>
    %6 = tpu.transpose %5, [1, 0, 2] : vector<8x8x32xf32> -> vector<8x8x32xf32>
    %7 = arith.addf %2, %6 : vector<8x8x32xf32>
    %8 = vector.shape_cast %7 : vector<8x8x32xf32> to vector<64x32xf32>
    %9 = arith.truncf %8 : vector<64x32xf32> to vector<64x32xbf16>
    %c0_7 = arith.constant 0 : index
    %c0_8 = arith.constant 0 : index
    %10 = vector.load %arg5[%c0_7, %c0_8] : memref<32x32xbf16, #tpu.memory_space<vmem>>, vector<32x32xbf16>
    %cst = arith.constant dense<0.000000e+00> : vector<64x32xf32>
    %11 = tpu.matmul %9, %10, %cst {dimension_numbers = #tpu.dot_dimension_numbers<[1], [0], [0], [1], [0, 0, 1, 1], [], []>} : vector<64x32xbf16>, vector<32x32xbf16>, vector<64x32xf32> -> vector<64x32xf32>
    %c0_9 = arith.constant 0 : index
    %c0_10 = arith.constant 0 : index
    %12 = vector.load %arg6[%c0_9, %c0_10] : memref<1x32xf32, #tpu.memory_space<vmem>>, vector<1x32xf32>
    %13 = vector.broadcast %12 : vector<1x32xf32> to vector<64x32xf32>
    %14 = arith.addf %11, %13 : vector<64x32xf32>
    %cst_11 = arith.constant 0.000000e+00 : f32
    %15 = vector.broadcast %cst_11 : f32 to vector<64x32xf32>
    %16 = arith.maximumf %14, %15 : vector<64x32xf32>
    %17 = arith.truncf %16 : vector<64x32xf32> to vector<64x32xbf16>
    %c0_12 = arith.constant 0 : index
    %c0_13 = arith.constant 0 : index
    %18 = vector.load %arg7[%c0_12, %c0_13] : memref<32x16xbf16, #tpu.memory_space<vmem>>, vector<32x16xbf16>
    %cst_14 = arith.constant dense<0.000000e+00> : vector<64x16xf32>
    %19 = tpu.matmul %17, %18, %cst_14 {dimension_numbers = #tpu.dot_dimension_numbers<[1], [0], [0], [1], [0, 0, 1, 1], [], []>} : vector<64x32xbf16>, vector<32x16xbf16>, vector<64x16xf32> -> vector<64x16xf32>
    %c0_15 = arith.constant 0 : index
    %c0_16 = arith.constant 0 : index
    %20 = vector.load %arg8[%c0_15, %c0_16] : memref<1x16xf32, #tpu.memory_space<vmem>>, vector<1x16xf32>
    %21 = vector.broadcast %20 : vector<1x16xf32> to vector<64x16xf32>
    %22 = arith.addf %19, %21 : vector<64x16xf32>
    %23 = vector.shape_cast %22 : vector<64x16xf32> to vector<1x8x8x16xf32>
    %c0_17 = arith.constant 0 : index
    %c0_18 = arith.constant 0 : index
    %c0_19 = arith.constant 0 : index
    %c0_20 = arith.constant 0 : index
    %24 = vector.load %arg9[%c0_17, %c0_18, %c0_19, %c0_20] : memref<1x8x8x16xf32, #tpu.memory_space<vmem>>, vector<1x8x8x16xf32>
    tpu.vector_store %arg9[%c0_17, %c0_18, %c0_19, %c0_20], %23 {strides = array<i32>} : memref<1x8x8x16xf32, #tpu.memory_space<vmem>>, vector<1x8x8x16xf32>,
    %25 = tpu.iota {dimensions = array<i32: 1>} : vector<64x16xi32>
    %26 = arith.sitofp %25 : vector<64x16xi32> to vector<64x16xf32>
    %cst_21 = arith.constant dense<0xFF800000> : vector<64xf32>
    %27 = vector.multi_reduction <maximumf>, %22, %cst_21 [1] : vector<64x16xf32> to vector<64xf32>
    %28 = vector.shape_cast %27 : vector<64xf32> to vector<64x1xf32>
    %29 = vector.broadcast %28 : vector<64x1xf32> to vector<64x16xf32>
    %30 = arith.cmpf oge, %22, %29 : vector<64x16xf32>
    %cst_22 = arith.constant 1.600000e+01 : f32
    %31 = vector.broadcast %cst_22 : f32 to vector<64x16xf32>
    %32 = arith.select %30, %26, %31 : vector<64x16xi1>, vector<64x16xf32>
    %cst_23 = arith.constant dense<0x7F800000> : vector<64xf32>
    %33 = vector.multi_reduction <minimumf>, %32, %cst_23 [1] : vector<64x16xf32> to vector<64xf32>
    %34 = vector.shape_cast %33 : vector<64xf32> to vector<64x1xf32>
    %35 = vector.broadcast %34 : vector<64x1xf32> to vector<64x16xf32>
    %36 = arith.cmpf oeq, %26, %35 : vector<64x16xf32>
    %37 = arith.extui %36 : vector<64x16xi1> to vector<64x16xi32>
    %38 = arith.sitofp %37 : vector<64x16xi32> to vector<64x16xf32>
    %39 = arith.truncf %38 : vector<64x16xf32> to vector<64x16xbf16>
    %40 = vector.shape_cast %39 : vector<64x16xbf16> to vector<1x8x8x16xbf16>
    %c0_24 = arith.constant 0 : index
    %c0_25 = arith.constant 0 : index
    %c0_26 = arith.constant 0 : index
    %c0_27 = arith.constant 0 : index
    %41 = vector.load %arg10[%c0_24, %c0_25, %c0_26, %c0_27] : memref<1x8x8x16xbf16, #tpu.memory_space<vmem>>, vector<1x8x8x16xbf16>
    tpu.vector_store %arg10[%c0_24, %c0_25, %c0_26, %c0_27], %40 {strides = array<i32>} : memref<1x8x8x16xbf16, #tpu.memory_space<vmem>>, vector<1x8x8x16xbf16>,
    return
  }
  func.func @transform_0(%arg0: i32, %arg1: i32, %arg2: i32) -> (i32, i32, i32, i32) {
    %c0_i32 = arith.constant 0 : i32
    %c0_i32_0 = arith.constant 0 : i32
    return %arg0, %arg1, %arg2, %c0_i32 : i32, i32, i32, i32
  }
  func.func @transform_1(%arg0: i32, %arg1: i32, %arg2: i32) -> (i32, i32, i32, i32) {
    %c0_i32 = arith.constant 0 : i32
    %c0_i32_0 = arith.constant 0 : i32
    return %arg0, %arg2, %arg1, %c0_i32 : i32, i32, i32, i32
  }
  func.func @transform_2(%arg0: i32, %arg1: i32, %arg2: i32) -> (i32, i32) {
    %c0_i32 = arith.constant 0 : i32
    %c0_i32_0 = arith.constant 0 : i32
    %c0_i32_1 = arith.constant 0 : i32
    return %c0_i32, %c0_i32_0 : i32, i32
  }
  func.func @transform_3(%arg0: i32, %arg1: i32, %arg2: i32) -> (i32, i32) {
    %c0_i32 = arith.constant 0 : i32
    %c0_i32_0 = arith.constant 0 : i32
    %c0_i32_1 = arith.constant 0 : i32
    return %c0_i32, %c0_i32_0 : i32, i32
  }
  func.func @transform_4(%arg0: i32, %arg1: i32, %arg2: i32) -> (i32, i32) {
    %c0_i32 = arith.constant 0 : i32
    %c0_i32_0 = arith.constant 0 : i32
    %c0_i32_1 = arith.constant 0 : i32
    return %c0_i32, %c0_i32_0 : i32, i32
  }
  func.func @transform_5(%arg0: i32, %arg1: i32, %arg2: i32) -> (i32, i32) {
    %c0_i32 = arith.constant 0 : i32
    %c0_i32_0 = arith.constant 0 : i32
    %c0_i32_1 = arith.constant 0 : i32
    return %c0_i32, %c0_i32_0 : i32, i32
  }
  func.func @transform_6(%arg0: i32, %arg1: i32, %arg2: i32) -> (i32, i32, i32, i32) {
    %c0_i32 = arith.constant 0 : i32
    %c0_i32_0 = arith.constant 0 : i32
    return %arg0, %arg1, %arg2, %c0_i32 : i32, i32, i32, i32
  }
  func.func @transform_7(%arg0: i32, %arg1: i32, %arg2: i32) -> (i32, i32, i32, i32) {
    %c0_i32 = arith.constant 0 : i32
    %c0_i32_0 = arith.constant 0 : i32
    return %arg0, %arg1, %arg2, %c0_i32 : i32, i32, i32, i32
  }
}

module attributes {stable_mosaic.version = 11 : i64} {
  func.func @_sym_kernel(%arg0: i32, %arg1: i32, %arg2: i32, %arg3: memref<1x8x8x32xbf16, #tpu.memory_space<vmem>>, %arg4: memref<1x8x8x32xbf16, #tpu.memory_space<vmem>>, %arg5: memref<1x8x8x16xbf16, #tpu.memory_space<vmem>>, %arg6: memref<1x8x8x16xbf16, #tpu.memory_space<vmem>>, %arg7: memref<16x32xbf16, #tpu.memory_space<vmem>>, %arg8: memref<32x32xbf16, #tpu.memory_space<vmem>>, %arg9: memref<1x32xf32, #tpu.memory_space<vmem>>, %arg10: memref<32x16xbf16, #tpu.memory_space<vmem>>, %arg11: memref<1x16xf32, #tpu.memory_space<vmem>>, %arg12: memref<1x8x8x16xf32, #tpu.memory_space<vmem>>) attributes {dimension_semantics = [#tpu.dimension_semantics<parallel>, #tpu.dimension_semantics<parallel>, #tpu.dimension_semantics<parallel>], iteration_bounds = array<i64: 2, 1, 1>, scalar_prefetch = 0 : i64, scratch_operands = 0 : i64, tpu.core_type = #tpu.core_type<tc>, window_params = [{transform_indices = @transform_0, window_bounds = array<i64: 1, 8, 8, 32>}, {transform_indices = @transform_1, window_bounds = array<i64: 1, 8, 8, 32>}, {transform_indices = @transform_2, window_bounds = array<i64: 1, 8, 8, 16>}, {transform_indices = @transform_3, window_bounds = array<i64: 1, 8, 8, 16>}, {pipeline_mode = #tpu.pipeline_mode<synchronous>, transform_indices = @transform_4, window_bounds = array<i64: 16, 32>}, {pipeline_mode = #tpu.pipeline_mode<synchronous>, transform_indices = @transform_5, window_bounds = array<i64: 32, 32>}, {pipeline_mode = #tpu.pipeline_mode<synchronous>, transform_indices = @transform_6, window_bounds = array<i64: 1, 32>}, {pipeline_mode = #tpu.pipeline_mode<synchronous>, transform_indices = @transform_7, window_bounds = array<i64: 32, 16>}, {pipeline_mode = #tpu.pipeline_mode<synchronous>, transform_indices = @transform_8, window_bounds = array<i64: 1, 16>}, {transform_indices = @transform_9, window_bounds = array<i64: 1, 8, 8, 16>}]} {
    %c0 = arith.constant 0 : index
    %c0_0 = arith.constant 0 : index
    %c0_1 = arith.constant 0 : index
    %c0_2 = arith.constant 0 : index
    %0 = vector.load %arg3[%c0, %c0_0, %c0_1, %c0_2] : memref<1x8x8x32xbf16, #tpu.memory_space<vmem>>, vector<1x8x8x32xbf16>
    %1 = vector.shape_cast %0 : vector<1x8x8x32xbf16> to vector<8x8x32xbf16>
    %2 = arith.extf %1 : vector<8x8x32xbf16> to vector<8x8x32xf32>
    %c0_3 = arith.constant 0 : index
    %c0_4 = arith.constant 0 : index
    %c0_5 = arith.constant 0 : index
    %c0_6 = arith.constant 0 : index
    %3 = vector.load %arg4[%c0_3, %c0_4, %c0_5, %c0_6] : memref<1x8x8x32xbf16, #tpu.memory_space<vmem>>, vector<1x8x8x32xbf16>
    %4 = vector.shape_cast %3 : vector<1x8x8x32xbf16> to vector<8x8x32xbf16>
    %5 = arith.extf %4 : vector<8x8x32xbf16> to vector<8x8x32xf32>
    %6 = tpu.transpose %5, [1, 0, 2] : vector<8x8x32xf32> -> vector<8x8x32xf32>
    %7 = arith.addf %2, %6 : vector<8x8x32xf32>
    %8 = vector.shape_cast %7 : vector<8x8x32xf32> to vector<64x32xf32>
    %9 = arith.truncf %8 : vector<64x32xf32> to vector<64x32xbf16>
    %c0_7 = arith.constant 0 : index
    %c0_8 = arith.constant 0 : index
    %10 = vector.load %arg8[%c0_7, %c0_8] : memref<32x32xbf16, #tpu.memory_space<vmem>>, vector<32x32xbf16>
    %cst = arith.constant dense<0.000000e+00> : vector<64x32xf32>
    %11 = tpu.matmul %9, %10, %cst {dimension_numbers = #tpu.dot_dimension_numbers<[1], [0], [0], [1], [0, 0, 1, 1], [], []>} : vector<64x32xbf16>, vector<32x32xbf16>, vector<64x32xf32> -> vector<64x32xf32>
    %c0_9 = arith.constant 0 : index
    %c0_10 = arith.constant 0 : index
    %12 = vector.load %arg9[%c0_9, %c0_10] : memref<1x32xf32, #tpu.memory_space<vmem>>, vector<1x32xf32>
    %13 = vector.broadcast %12 : vector<1x32xf32> to vector<64x32xf32>
    %14 = arith.addf %11, %13 : vector<64x32xf32>
    %c0_11 = arith.constant 0 : index
    %c0_12 = arith.constant 0 : index
    %c0_13 = arith.constant 0 : index
    %c0_14 = arith.constant 0 : index
    %15 = vector.load %arg5[%c0_11, %c0_12, %c0_13, %c0_14] : memref<1x8x8x16xbf16, #tpu.memory_space<vmem>>, vector<1x8x8x16xbf16>
    %16 = vector.shape_cast %15 : vector<1x8x8x16xbf16> to vector<8x8x16xbf16>
    %17 = arith.extf %16 : vector<8x8x16xbf16> to vector<8x8x16xf32>
    %c0_15 = arith.constant 0 : index
    %c0_16 = arith.constant 0 : index
    %c0_17 = arith.constant 0 : index
    %c0_18 = arith.constant 0 : index
    %18 = vector.load %arg6[%c0_15, %c0_16, %c0_17, %c0_18] : memref<1x8x8x16xbf16, #tpu.memory_space<vmem>>, vector<1x8x8x16xbf16>
    %19 = vector.shape_cast %18 : vector<1x8x8x16xbf16> to vector<8x8x16xbf16>
    %20 = arith.extf %19 : vector<8x8x16xbf16> to vector<8x8x16xf32>
    %21 = tpu.transpose %20, [1, 0, 2] : vector<8x8x16xf32> -> vector<8x8x16xf32>
    %22 = arith.addf %17, %21 : vector<8x8x16xf32>
    %23 = vector.shape_cast %22 : vector<8x8x16xf32> to vector<64x16xf32>
    %24 = arith.truncf %23 : vector<64x16xf32> to vector<64x16xbf16>
    %c0_19 = arith.constant 0 : index
    %c0_20 = arith.constant 0 : index
    %25 = vector.load %arg7[%c0_19, %c0_20] : memref<16x32xbf16, #tpu.memory_space<vmem>>, vector<16x32xbf16>
    %cst_21 = arith.constant dense<0.000000e+00> : vector<64x32xf32>
    %26 = tpu.matmul %24, %25, %cst_21 {dimension_numbers = #tpu.dot_dimension_numbers<[1], [0], [0], [1], [0, 0, 1, 1], [], []>} : vector<64x16xbf16>, vector<16x32xbf16>, vector<64x32xf32> -> vector<64x32xf32>
    %27 = arith.addf %14, %26 : vector<64x32xf32>
    %cst_22 = arith.constant 0.000000e+00 : f32
    %28 = vector.broadcast %cst_22 : f32 to vector<64x32xf32>
    %29 = arith.maximumf %27, %28 : vector<64x32xf32>
    %30 = arith.truncf %29 : vector<64x32xf32> to vector<64x32xbf16>
    %c0_23 = arith.constant 0 : index
    %c0_24 = arith.constant 0 : index
    %31 = vector.load %arg10[%c0_23, %c0_24] : memref<32x16xbf16, #tpu.memory_space<vmem>>, vector<32x16xbf16>
    %cst_25 = arith.constant dense<0.000000e+00> : vector<64x16xf32>
    %32 = tpu.matmul %30, %31, %cst_25 {dimension_numbers = #tpu.dot_dimension_numbers<[1], [0], [0], [1], [0, 0, 1, 1], [], []>} : vector<64x32xbf16>, vector<32x16xbf16>, vector<64x16xf32> -> vector<64x16xf32>
    %c0_26 = arith.constant 0 : index
    %c0_27 = arith.constant 0 : index
    %33 = vector.load %arg11[%c0_26, %c0_27] : memref<1x16xf32, #tpu.memory_space<vmem>>, vector<1x16xf32>
    %34 = vector.broadcast %33 : vector<1x16xf32> to vector<64x16xf32>
    %35 = arith.addf %32, %34 : vector<64x16xf32>
    %36 = vector.shape_cast %35 : vector<64x16xf32> to vector<1x8x8x16xf32>
    %c0_28 = arith.constant 0 : index
    %c0_29 = arith.constant 0 : index
    %c0_30 = arith.constant 0 : index
    %c0_31 = arith.constant 0 : index
    %37 = vector.load %arg12[%c0_28, %c0_29, %c0_30, %c0_31] : memref<1x8x8x16xf32, #tpu.memory_space<vmem>>, vector<1x8x8x16xf32>
    tpu.vector_store %arg12[%c0_28, %c0_29, %c0_30, %c0_31], %36 {strides = array<i32>} : memref<1x8x8x16xf32, #tpu.memory_space<vmem>>, vector<1x8x8x16xf32>,
    return
  }
  func.func @transform_0(%arg0: i32, %arg1: i32, %arg2: i32) -> (i32, i32, i32, i32) {
    %c0_i32 = arith.constant 0 : i32
    %c0_i32_0 = arith.constant 0 : i32
    return %arg0, %arg1, %arg2, %c0_i32 : i32, i32, i32, i32
  }
  func.func @transform_1(%arg0: i32, %arg1: i32, %arg2: i32) -> (i32, i32, i32, i32) {
    %c0_i32 = arith.constant 0 : i32
    %c0_i32_0 = arith.constant 0 : i32
    return %arg0, %arg2, %arg1, %c0_i32 : i32, i32, i32, i32
  }
  func.func @transform_2(%arg0: i32, %arg1: i32, %arg2: i32) -> (i32, i32, i32, i32) {
    %c0_i32 = arith.constant 0 : i32
    %c0_i32_0 = arith.constant 0 : i32
    return %arg0, %arg1, %arg2, %c0_i32 : i32, i32, i32, i32
  }
  func.func @transform_3(%arg0: i32, %arg1: i32, %arg2: i32) -> (i32, i32, i32, i32) {
    %c0_i32 = arith.constant 0 : i32
    %c0_i32_0 = arith.constant 0 : i32
    return %arg0, %arg2, %arg1, %c0_i32 : i32, i32, i32, i32
  }
  func.func @transform_4(%arg0: i32, %arg1: i32, %arg2: i32) -> (i32, i32) {
    %c0_i32 = arith.constant 0 : i32
    %c0_i32_0 = arith.constant 0 : i32
    %c0_i32_1 = arith.constant 0 : i32
    return %c0_i32, %c0_i32_0 : i32, i32
  }
  func.func @transform_5(%arg0: i32, %arg1: i32, %arg2: i32) -> (i32, i32) {
    %c0_i32 = arith.constant 0 : i32
    %c0_i32_0 = arith.constant 0 : i32
    %c0_i32_1 = arith.constant 0 : i32
    return %c0_i32, %c0_i32_0 : i32, i32
  }
  func.func @transform_6(%arg0: i32, %arg1: i32, %arg2: i32) -> (i32, i32) {
    %c0_i32 = arith.constant 0 : i32
    %c0_i32_0 = arith.constant 0 : i32
    %c0_i32_1 = arith.constant 0 : i32
    return %c0_i32, %c0_i32_0 : i32, i32
  }
  func.func @transform_7(%arg0: i32, %arg1: i32, %arg2: i32) -> (i32, i32) {
    %c0_i32 = arith.constant 0 : i32
    %c0_i32_0 = arith.constant 0 : i32
    %c0_i32_1 = arith.constant 0 : i32
    return %c0_i32, %c0_i32_0 : i32, i32
  }
  func.func @transform_8(%arg0: i32, %arg1: i32, %arg2: i32) -> (i32, i32) {
    %c0_i32 = arith.constant 0 : i32
    %c0_i32_0 = arith.constant 0 : i32
    %c0_i32_1 = arith.constant 0 : i32
    return %c0_i32, %c0_i32_0 : i32, i32
  }
  func.func @transform_9(%arg0: i32, %arg1: i32, %arg2: i32) -> (i32, i32, i32, i32) {
    %c0_i32 = arith.constant 0 : i32
    %c0_i32_0 = arith.constant 0 : i32
    return %arg0, %arg1, %arg2, %c0_i32 : i32, i32, i32, i32
  }
}

</mosaic_0001>

<llo_original>
// kernel: minifold_forward.6
$region0: #{minifold_forward.6}
  #allocation0 [shape = 'u32[]', space=smem, size = 0x4, offset = 0x4, fixed_abs, tag = 'smem constant byte address 0x4 - core index']
  #allocation1 [shape = 'u32[144,128]{1,0:T(1,128)}', space=vmem, size = 0x12000, scoped, tag = 'internal scratch']
  %s0 = inlined_call_operand.vmem [shape: f32[16,32], index: 0, kind: input, shape index: {}]
  %s1 = inlined_call_operand.vmem [shape: bf16[32,64], index: 1, kind: input, shape index: {}]
  %s2 = inlined_call_operand.vmem [shape: f32[1,64], index: 2, kind: input, shape index: {}]
  %s3 = inlined_call_operand.vmem [shape: bf16[64,64], index: 3, kind: input, shape index: {}]
  %s4 = inlined_call_operand.vmem [shape: f32[1,64], index: 4, kind: input, shape index: {}]
  %s5 = inlined_call_operand.vmem [shape: f32[16,64], index: 5, kind: output, shape index: {}]
  %s6 = sld [smem:[#allocation0]]
  $region30: #{minifold_forward.6} parent=0
    _
  %s8 = ssub.s32 1, %s6
  %s9 = scalar_select 0, %s8, %s6
  // Predicated region
  $region2: #{minifold_forward.6} parent=0 // pred_check
    _
  $region3: #{minifold_forward.6} parent=0 // pred_check_branch
    %11 = sbr.rel (0) target = $region5
  $region4: #{minifold_forward.6} parent=0 // pred_region
    _
  $region5: #{minifold_forward.6} parent=0 // pred_fallthru
    _
  // Predicated region
  $region6: #{minifold_forward.6} parent=0 // pred_check
    _
  $region7: #{minifold_forward.6} parent=0 // pred_check_branch
    %13 = sbr.rel (0) target = $region9
  $region8: #{minifold_forward.6} parent=0 // pred_region
    _
  $region9: #{minifold_forward.6} parent=0 // pred_fallthru
    _
  // Predicated region
  $region10: #{minifold_forward.6} parent=0 // pred_check
    _
  $region11: #{minifold_forward.6} parent=0 // pred_check_branch
    %15 = sbr.rel (0) target = $region13
  $region12: #{minifold_forward.6} parent=0 // pred_region
    _
  $region13: #{minifold_forward.6} parent=0 // pred_fallthru
    _
  // Predicated region
  $region14: #{minifold_forward.6} parent=0 // pred_check
    _
  $region15: #{minifold_forward.6} parent=0 // pred_check_branch
    %17 = sbr.rel (0) target = $region17
  $region16: #{minifold_forward.6} parent=0 // pred_region
    _
  $region17: #{minifold_forward.6} parent=0 // pred_fallthru
    _
  // Predicated region
  $region18: #{minifold_forward.6} parent=0 // pred_check
    _
  $region19: #{minifold_forward.6} parent=0 // pred_check_branch
    %19 = sbr.rel (0) target = $region21
  $region20: #{minifold_forward.6} parent=0 // pred_region
    _
  $region21: #{minifold_forward.6} parent=0 // pred_fallthru
    _
  %v21 = vld [vmem:[%s0] sm:$0xff]
  %v22 = vld [vmem:[%s0 + $0x8] sm:$0xff]
  %v23 = vpack.c.bf16 %v22, %v21
  %v24 = vld [vmem:[%s1] sm:$0xf]
  %v25 = vld [vmem:[%s1 + $0x4] sm:$0xf]
  %v26 = vld [vmem:[%s1 + $0x8] sm:$0xf]
  %v27 = vld [vmem:[%s1 + $0xc] sm:$0xf]
  %v28 = vld [vmem:[%s2] sm:$0x1]
  %v30 = vlaneseq
  %v31 = vshrl.u32 %v30, 7
  %v32 = vsub.s32 0, %v31
  %v33 = vrot.slane %v28, %v32
  %v39 = vunpack.c.l.b16 %v24
  %v40 = vunpack.c.l.b16 %v25
  %v41 = vunpack.c.l.b16 %v26
  %v42 = vunpack.c.l.b16 %v27
  %v43 = vpack.c.b16 %v40, %v39
  %v44 = vpack.c.b16 %v42, %v41
  %vm47 = vcmask 261120
  %v49 = vsel %vm47, %v23, 0
  %51 = vmatprep.subr.bf16.mxu0 0
  %52 = vmatpush1.bf16.msra.mxu0 %v43
  %53 = vmatprep.subr.bf16.mxu0 0
  %54 = vmatpush1.bf16.msra.mxu0 %v44
  %55 = vmatprep.subr.bf16.mxu0 0
  %56 = vmatpush1.bf16.msra.mxu0 0
  %57 = vmatprep.subr.bf16.mxu0 0
  %58 = vmatpush1.bf16.msra.mxu0 0
  %59 = vmatprep.subr.bf16.mxu0 0
  %60 = vmatpush1.bf16.msra.mxu0 0
  %61 = vmatprep.subr.bf16.mxu0 0
  %62 = vmatpush1.bf16.msra.mxu0 0
  %63 = vmatprep.subr.bf16.mxu0 0
  %64 = vmatpush1.bf16.msra.mxu0 0
  %65 = vmatprep.subr.bf16.mxu0 0
  %66 = vmatpush1.bf16.msra.mxu0 0
  %67 = vmatprep.subr.bf16.mxu0 0
  %68 = vmatpush1.bf16.msra.mxu0 0
  %69 = vmatprep.subr.bf16.mxu0 0
  %70 = vmatpush1.bf16.msra.mxu0 0
  %71 = vmatprep.subr.bf16.mxu0 0
  %72 = vmatpush1.bf16.msra.mxu0 0
  %73 = vmatprep.subr.bf16.mxu0 0
  %74 = vmatpush1.bf16.msra.mxu0 0
  %75 = vmatprep.subr.bf16.mxu0 0
  %76 = vmatpush1.bf16.msra.mxu0 0
  %77 = vmatprep.subr.bf16.mxu0 0
  %78 = vmatpush1.bf16.msra.mxu0 0
  %79 = vmatprep.subr.bf16.mxu0 0
  %80 = vmatpush1.bf16.msra.mxu0 0
  %81 = vmatprep.subr.bf16.mxu0 0
  %82 = vmatpush1.bf16.msra.mxu0 0
  %83 = vmatprep.mubr.bf16.mxu0 0
  %84 = vmatmul.mubr.bf16.gmra.mrb[0].mxu0 %v49
  %v85 = vpop.f32.mrb[0].mxu0
  %v86 = vadd.f32 %v33, %v85
  %v87 = vpop.f32.mrb[0].mxu0
  %v88 = vpop.f32.mrb[0].mxu0
  %v89 = vadd.f32 %v33, %v88
  %v90 = vpop.f32.mrb[0].mxu0
  %91 = vdwg.mxu0
  %v92 = vmax.f32 %v86, 0.0
  %v93 = vmax.f32 %v89, 0.0
  %v94 = vpack.c.bf16 %v93, %v92
  %v95 = vld [vmem:[%s3] sm:$0xf]
  %v96 = vld [vmem:[%s3 + $0x4] sm:$0xf]
  %v97 = vld [vmem:[%s3 + $0x8] sm:$0xf]
  %v98 = vld [vmem:[%s3 + $0xc] sm:$0xf]
  %v99 = vld [vmem:[%s3 + $0x10] sm:$0xf]
  %v100 = vld [vmem:[%s3 + $0x14] sm:$0xf]
  %v101 = vld [vmem:[%s3 + $0x18] sm:$0xf]
  %v102 = vld [vmem:[%s3 + $0x1c] sm:$0xf]
  %v103 = vld [vmem:[%s4] sm:$0x1]
  %v105 = vlaneseq
  %v106 = vshrl.u32 %v105, 7
  %v107 = vsub.s32 0, %v106
  %v108 = vrot.slane %v103, %v107
  %v118 = vunpack.c.l.b16 %v95
  %v119 = vunpack.c.l.b16 %v96
  %v120 = vunpack.c.l.b16 %v97
  %v121 = vunpack.c.l.b16 %v98
  %v122 = vunpack.c.l.b16 %v99
  %v123 = vunpack.c.l.b16 %v100
  %v124 = vunpack.c.l.b16 %v101
  %v125 = vunpack.c.l.b16 %v102
  %v126 = vpack.c.b16 %v119, %v118
  %v127 = vpack.c.b16 %v121, %v120
  %v128 = vpack.c.b16 %v123, %v122
  %v129 = vpack.c.b16 %v125, %v124
  %vm134 = vcmask 523264
  %v136 = vsel %vm134, %v94, 0
  %138 = vmatprep.subr.bf16.mxu0 0
  %139 = vmatpush1.bf16.msra.mxu0 %v126
  %140 = vmatprep.subr.bf16.mxu0 0
  %141 = vmatpush1.bf16.msra.mxu0 %v127
  %142 = vmatprep.subr.bf16.mxu0 0
  %143 = vmatpush1.bf16.msra.mxu0 %v128
  %144 = vmatprep.subr.bf16.mxu0 0
  %145 = vmatpush1.bf16.msra.mxu0 %v129
  %146 = vmatprep.subr.bf16.mxu0 0
  %147 = vmatpush1.bf16.msra.mxu0 0
  %148 = vmatprep.subr.bf16.mxu0 0
  %149 = vmatpush1.bf16.msra.mxu0 0
  %150 = vmatprep.subr.bf16.mxu0 0
  %151 = vmatpush1.bf16.msra.mxu0 0
  %152 = vmatprep.subr.bf16.mxu0 0
  %153 = vmatpush1.bf16.msra.mxu0 0
  %154 = vmatprep.subr.bf16.mxu0 0
  %155 = vmatpush1.bf16.msra.mxu0 0
  %156 = vmatprep.subr.bf16.mxu0 0
  %157 = vmatpush1.bf16.msra.mxu0 0
  %158 = vmatprep.subr.bf16.mxu0 0
  %159 = vmatpush1.bf16.msra.mxu0 0
  %160 = vmatprep.subr.bf16.mxu0 0
  %161 = vmatpush1.bf16.msra.mxu0 0
  %162 = vmatprep.subr.bf16.mxu0 0
  %163 = vmatpush1.bf16.msra.mxu0 0
  %164 = vmatprep.subr.bf16.mxu0 0
  %165 = vmatpush1.bf16.msra.mxu0 0
  %166 = vmatprep.subr.bf16.mxu0 0
  %167 = vmatpush1.bf16.msra.mxu0 0
  %168 = vmatprep.subr.bf16.mxu0 0
  %169 = vmatpush1.bf16.msra.mxu0 0
  %170 = vmatprep.mubr.bf16.mxu0 0
  %171 = vmatmul.mubr.bf16.gmra.mrb[0].mxu0 %v136
  %v172 = vpop.f32.mrb[0].mxu0
  %v173 = vadd.f32 %v108, %v172
  %v174 = vpop.f32.mrb[0].mxu0
  %v175 = vpop.f32.mrb[0].mxu0
  %v176 = vadd.f32 %v108, %v175
  %v177 = vpop.f32.mrb[0].mxu0
  %178 = vdwg.mxu0
  %179 = vst.msk [vmem:[%s5] sm:$0xff] %vm134, %v173
  %180 = vst.msk [vmem:[%s5 + $0x8] sm:$0xff] %vm134, %v176
  // Predicated region
  $region22: #{minifold_forward.6} parent=0 // pred_check
    _
  $region23: #{minifold_forward.6} parent=0 // pred_check_branch
    %182 = sbr.rel (0) target = $region25
  $region24: #{minifold_forward.6} parent=0 // pred_region
    _
  $region25: #{minifold_forward.6} parent=0 // pred_fallthru
    _
  // Predicated region
  $region26: #{minifold_forward.6} parent=0 // pred_check
    _
  $region27: #{minifold_forward.6} parent=0 // pred_check_branch
    %184 = sbr.rel (0) target = $region29
  $region28: #{minifold_forward.6} parent=0 // pred_region
    _
  $region29: #{minifold_forward.6} parent=0 // pred_fallthru
    _

// kernel: minifold_forward.8
$region0: #{minifold_forward.8}
  #allocation0 [shape = 'u32[]', space=smem, size = 0x4, offset = 0x4, fixed_abs, tag = 'smem constant byte address 0x4 - core index']
  #allocation1 [shape = 'u32[144,128]{1,0:T(1,128)}', space=vmem, size = 0x12000, scoped, tag = 'internal scratch']
  %s0 = inlined_call_operand.vmem [shape: f32[16,64], index: 0, kind: input, shape index: {}]
  %s1 = inlined_call_operand.vmem [shape: f32[1,64], index: 1, kind: input, shape index: {}]
  %s2 = inlined_call_operand.vmem [shape: f32[1,64], index: 2, kind: input, shape index: {}]
  %s3 = inlined_call_operand.vmem [shape: bf16[64,64], index: 3, kind: input, shape index: {}]
  %s4 = inlined_call_operand.vmem [shape: f32[1,64], index: 4, kind: input, shape index: {}]
  %s5 = inlined_call_operand.vmem [shape: f32[16,64], index: 5, kind: output, shape index: {}]
  %s6 = sld [smem:[#allocation0]]
  $region30: #{minifold_forward.8} parent=0
    _
  %s8 = ssub.s32 1, %s6
  %s9 = scalar_select 0, %s8, %s6
  // Predicated region
  $region2: #{minifold_forward.8} parent=0 // pred_check
    _
  $region3: #{minifold_forward.8} parent=0 // pred_check_branch
    %11 = sbr.rel (0) target = $region5
  $region4: #{minifold_forward.8} parent=0 // pred_region
    _
  $region5: #{minifold_forward.8} parent=0 // pred_fallthru
    _
  // Predicated region
  $region6: #{minifold_forward.8} parent=0 // pred_check
    _
  $region7: #{minifold_forward.8} parent=0 // pred_check_branch
    %13 = sbr.rel (0) target = $region9
  $region8: #{minifold_forward.8} parent=0 // pred_region
    _
  $region9: #{minifold_forward.8} parent=0 // pred_fallthru
    _
  // Predicated region
  $region10: #{minifold_forward.8} parent=0 // pred_check
    _
  $region11: #{minifold_forward.8} parent=0 // pred_check_branch
    %15 = sbr.rel (0) target = $region13
  $region12: #{minifold_forward.8} parent=0 // pred_region
    _
  $region13: #{minifold_forward.8} parent=0 // pred_fallthru
    _
  // Predicated region
  $region14: #{minifold_forward.8} parent=0 // pred_check
    _
  $region15: #{minifold_forward.8} parent=0 // pred_check_branch
    %17 = sbr.rel (0) target = $region17
  $region16: #{minifold_forward.8} parent=0 // pred_region
    _
  $region17: #{minifold_forward.8} parent=0 // pred_fallthru
    _
  // Predicated region
  $region18: #{minifold_forward.8} parent=0 // pred_check
    _
  $region19: #{minifold_forward.8} parent=0 // pred_check_branch
    %19 = sbr.rel (0) target = $region21
  $region20: #{minifold_forward.8} parent=0 // pred_region
    _
  $region21: #{minifold_forward.8} parent=0 // pred_fallthru
    _
  %v21 = vld [vmem:[%s0] sm:$0xff]
  %v22 = vld [vmem:[%s0 + $0x8] sm:$0xff]
  %vm23 = vcmask 523264
  %v24 = vsel %vm23, %v21, 0.0
  %25 = vadd.xlane.f32.xlu0 %v24
  %v26 = vpop.xlane.xlu0 %25
  %v27 = vsel %vm23, %v22, 0.0
  %28 = vadd.xlane.f32.xlu0 %v27
  %v29 = vpop.xlane.xlu0 %28
  %v30 = vrcp.pop 64.0
  %v31 = vmul.f32 %v26, %v30
  %v32 = vmul.f32 %v29, %v30
  %v33 = vsub.f32 %v21, %v31
  %v34 = vsub.f32 %v22, %v32
  %v35 = vmul.f32 %v33, %v33
  %v36 = vmul.f32 %v34, %v34
  %v37 = vsel %vm23, %v35, 0.0
  %38 = vadd.xlane.f32.xlu0 %v37
  %v39 = vpop.xlane.xlu0 %38
  %v40 = vsel %vm23, %v36, 0.0
  %41 = vadd.xlane.f32.xlu0 %v40
  %v42 = vpop.xlane.xlu0 %41
  %v43 = vmul.f32 %v39, %v30
  %v44 = vmul.f32 %v42, %v30
  %v45 = vadd.f32 %v43, 1e-05
  %v46 = vadd.f32 %v44, 1e-05
  %v47 = vrsqrt.pop %v45
  %v48 = vrsqrt.pop %v46
  %v49 = vmul.f32 %v33, %v47
  %v50 = vmul.f32 %v34, %v48
  %v51 = vld [vmem:[%s1] sm:$0x1]
  %v53 = vlaneseq
  %v54 = vshrl.u32 %v53, 7
  %v55 = vsub.s32 0, %v54
  %v56 = vrot.slane %v51, %v55
  %v58 = vmul.f32 %v49, %v56
  %v59 = vmul.f32 %v50, %v56
  %v60 = vld [vmem:[%s2] sm:$0x1]
  %v62 = vlaneseq
  %v63 = vshrl.u32 %v62, 7
  %v64 = vsub.s32 0, %v63
  %v65 = vrot.slane %v60, %v64
  %v67 = vadd.f32 %v58, %v65
  %v68 = vadd.f32 %v59, %v65
  %v69 = vpack.c.bf16 %v68, %v67
  %v70 = vld [vmem:[%s3] sm:$0xf]
  %v71 = vld [vmem:[%s3 + $0x4] sm:$0xf]
  %v72 = vld [vmem:[%s3 + $0x8] sm:$0xf]
  %v73 = vld [vmem:[%s3 + $0xc] sm:$0xf]
  %v74 = vld [vmem:[%s3 + $0x10] sm:$0xf]
  %v75 = vld [vmem:[%s3 + $0x14] sm:$0xf]
  %v76 = vld [vmem:[%s3 + $0x18] sm:$0xf]
  %v77 = vld [vmem:[%s3 + $0x1c] sm:$0xf]
  %v78 = vld [vmem:[%s4] sm:$0x1]
  %v80 = vlaneseq
  %v81 = vshrl.u32 %v80, 7
  %v82 = vsub.s32 0, %v81
  %v83 = vrot.slane %v78, %v82
  %v93 = vunpack.c.l.b16 %v70
  %v94 = vunpack.c.l.b16 %v71
  %v95 = vunpack.c.l.b16 %v72
  %v96 = vunpack.c.l.b16 %v73
  %v97 = vunpack.c.l.b16 %v74
  %v98 = vunpack.c.l.b16 %v75
  %v99 = vunpack.c.l.b16 %v76
  %v100 = vunpack.c.l.b16 %v77
  %v101 = vpack.c.b16 %v94, %v93
  %v102 = vpack.c.b16 %v96, %v95
  %v103 = vpack.c.b16 %v98, %v97
  %v104 = vpack.c.b16 %v100, %v99
  %v110 = vsel %vm23, %v69, 0
  %112 = vmatprep.subr.bf16.mxu0 0
  %113 = vmatpush1.bf16.msra.mxu0 %v101
  %114 = vmatprep.subr.bf16.mxu0 0
  %115 = vmatpush1.bf16.msra.mxu0 %v102
  %116 = vmatprep.subr.bf16.mxu0 0
  %117 = vmatpush1.bf16.msra.mxu0 %v103
  %118 = vmatprep.subr.bf16.mxu0 0
  %119 = vmatpush1.bf16.msra.mxu0 %v104
  %120 = vmatprep.subr.bf16.mxu0 0
  %121 = vmatpush1.bf16.msra.mxu0 0
  %122 = vmatprep.subr.bf16.mxu0 0
  %123 = vmatpush1.bf16.msra.mxu0 0
  %124 = vmatprep.subr.bf16.mxu0 0
  %125 = vmatpush1.bf16.msra.mxu0 0
  %126 = vmatprep.subr.bf16.mxu0 0
  %127 = vmatpush1.bf16.msra.mxu0 0
  %128 = vmatprep.subr.bf16.mxu0 0
  %129 = vmatpush1.bf16.msra.mxu0 0
  %130 = vmatprep.subr.bf16.mxu0 0
  %131 = vmatpush1.bf16.msra.mxu0 0
  %132 = vmatprep.subr.bf16.mxu0 0
  %133 = vmatpush1.bf16.msra.mxu0 0
  %134 = vmatprep.subr.bf16.mxu0 0
  %135 = vmatpush1.bf16.msra.mxu0 0
  %136 = vmatprep.subr.bf16.mxu0 0
  %137 = vmatpush1.bf16.msra.mxu0 0
  %138 = vmatprep.subr.bf16.mxu0 0
  %139 = vmatpush1.bf16.msra.mxu0 0
  %140 = vmatprep.subr.bf16.mxu0 0
  %141 = vmatpush1.bf16.msra.mxu0 0
  %142 = vmatprep.subr.bf16.mxu0 0
  %143 = vmatpush1.bf16.msra.mxu0 0
  %144 = vmatprep.mubr.bf16.mxu0 0
  %145 = vmatmul.mubr.bf16.gmra.mrb[0].mxu0 %v110
  %v146 = vpop.f32.mrb[0].mxu0
  %v147 = vadd.f32 %v83, %v146
  %v148 = vpop.f32.mrb[0].mxu0
  %v149 = vpop.f32.mrb[0].mxu0
  %v150 = vadd.f32 %v83, %v149
  %v151 = vpop.f32.mrb[0].mxu0
  %152 = vdwg.mxu0
  %153 = vst.msk [vmem:[%s5] sm:$0xff] %vm23, %v147
  %154 = vst.msk [vmem:[%s5 + $0x8] sm:$0xff] %vm23, %v150
  // Predicated region
  $region22: #{minifold_forward.8} parent=0 // pred_check
    _
  $region23: #{minifold_forward.8} parent=0 // pred_check_branch
    %156 = sbr.rel (0) target = $region25
  $region24: #{minifold_forward.8} parent=0 // pred_region
    _
  $region25: #{minifold_forward.8} parent=0 // pred_fallthru
    _
  // Predicated region
  $region26: #{minifold_forward.8} parent=0 // pred_check
    _
  $region27: #{minifold_forward.8} parent=0 // pred_check_branch
    %158 = sbr.rel (0) target = $region29
  $region28: #{minifold_forward.8} parent=0 // pred_region
    _
  $region29: #{minifold_forward.8} parent=0 // pred_fallthru
    _

// kernel: minifold_forward.7
$region0: #{minifold_forward.7}
  #allocation0 [shape = 'u32[]', space=smem, size = 0x4, offset = 0x4, fixed_abs, tag = 'smem constant byte address 0x4 - core index']
  #allocation1 [shape = 'u32[144,128]{1,0:T(1,128)}', space=vmem, size = 0x12000, scoped, tag = 'internal scratch']
  %s0 = inlined_call_operand.vmem [shape: bf16[128,16], index: 0, kind: input, shape index: {}]
  %s1 = inlined_call_operand.vmem [shape: bf16[16,32], index: 1, kind: input, shape index: {}]
  %s2 = inlined_call_operand.vmem [shape: f32[1,32], index: 2, kind: input, shape index: {}]
  %s3 = inlined_call_operand.vmem [shape: bf16[32,32], index: 3, kind: input, shape index: {}]
  %s4 = inlined_call_operand.vmem [shape: f32[1,32], index: 4, kind: input, shape index: {}]
  %s5 = inlined_call_operand.vmem [shape: bf16[128,32], index: 5, kind: output, shape index: {}]
  %s6 = sld [smem:[#allocation0]]
  $region30: #{minifold_forward.7} parent=0
    _
  %s8 = ssub.s32 1, %s6
  %s9 = scalar_select 0, %s8, %s6
  // Predicated region
  $region2: #{minifold_forward.7} parent=0 // pred_check
    _
  $region3: #{minifold_forward.7} parent=0 // pred_check_branch
    %11 = sbr.rel (0) target = $region5
  $region4: #{minifold_forward.7} parent=0 // pred_region
    _
  $region5: #{minifold_forward.7} parent=0 // pred_fallthru
    _
  // Predicated region
  $region6: #{minifold_forward.7} parent=0 // pred_check
    _
  $region7: #{minifold_forward.7} parent=0 // pred_check_branch
    %13 = sbr.rel (0) target = $region9
  $region8: #{minifold_forward.7} parent=0 // pred_region
    _
  $region9: #{minifold_forward.7} parent=0 // pred_fallthru
    _
  // Predicated region
  $region10: #{minifold_forward.7} parent=0 // pred_check
    _
  $region11: #{minifold_forward.7} parent=0 // pred_check_branch
    %15 = sbr.rel (0) target = $region13
  $region12: #{minifold_forward.7} parent=0 // pred_region
    _
  $region13: #{minifold_forward.7} parent=0 // pred_fallthru
    _
  // Predicated region
  $region14: #{minifold_forward.7} parent=0 // pred_check
    _
  $region15: #{minifold_forward.7} parent=0 // pred_check_branch
    %17 = sbr.rel (0) target = $region17
  $region16: #{minifold_forward.7} parent=0 // pred_region
    _
  $region17: #{minifold_forward.7} parent=0 // pred_fallthru
    _
  // Predicated region
  $region18: #{minifold_forward.7} parent=0 // pred_check
    _
  $region19: #{minifold_forward.7} parent=0 // pred_check_branch
    %19 = sbr.rel (0) target = $region21
  $region20: #{minifold_forward.7} parent=0 // pred_region
    _
  $region21: #{minifold_forward.7} parent=0 // pred_fallthru
    _
  %v21 = vld [vmem:[%s0] sm:$0xf]
  %v22 = vld [vmem:[%s0 + $0x4] sm:$0xf]
  %v23 = vld [vmem:[%s0 + $0x8] sm:$0xf]
  %v24 = vld [vmem:[%s0 + $0xc] sm:$0xf]
  %v25 = vld [vmem:[%s0 + $0x10] sm:$0xf]
  %v26 = vld [vmem:[%s0 + $0x14] sm:$0xf]
  %v27 = vld [vmem:[%s0 + $0x18] sm:$0xf]
  %v28 = vld [vmem:[%s0 + $0x1c] sm:$0xf]
  %v29 = vld [vmem:[%s0 + $0x20] sm:$0xf]
  %v30 = vld [vmem:[%s0 + $0x24] sm:$0xf]
  %v31 = vld [vmem:[%s0 + $0x28] sm:$0xf]
  %v32 = vld [vmem:[%s0 + $0x2c] sm:$0xf]
  %v33 = vld [vmem:[%s0 + $0x30] sm:$0xf]
  %v34 = vld [vmem:[%s0 + $0x34] sm:$0xf]
  %v35 = vld [vmem:[%s0 + $0x38] sm:$0xf]
  %v36 = vld [vmem:[%s0 + $0x3c] sm:$0xf]
  %v37 = vld [vmem:[%s1] sm:$0xf]
  %v38 = vld [vmem:[%s1 + $0x4] sm:$0xf]
  %v39 = vld [vmem:[%s2] sm:$0x1]
  %v41 = vlaneseq
  %v42 = vshrl.u32 %v41, 7
  %v43 = vsub.s32 0, %v42
  %v44 = vrot.slane %v39, %v43
  %v62 = vunpack.c.l.b16 %v21
  %v63 = vunpack.c.l.b16 %v22
  %v64 = vunpack.c.l.b16 %v23
  %v65 = vunpack.c.l.b16 %v24
  %v66 = vunpack.c.l.b16 %v25
  %v67 = vunpack.c.l.b16 %v26
  %v68 = vunpack.c.l.b16 %v27
  %v69 = vunpack.c.l.b16 %v28
  %v70 = vunpack.c.l.b16 %v29
  %v71 = vunpack.c.l.b16 %v30
  %v72 = vunpack.c.l.b16 %v31
  %v73 = vunpack.c.l.b16 %v32
  %v74 = vunpack.c.l.b16 %v33
  %v75 = vunpack.c.l.b16 %v34
  %v76 = vunpack.c.l.b16 %v35
  %v77 = vunpack.c.l.b16 %v36
  %v78 = vpack.c.b16 %v63, %v62
  %v79 = vpack.c.b16 %v65, %v64
  %v80 = vpack.c.b16 %v67, %v66
  %v81 = vpack.c.b16 %v69, %v68
  %v82 = vpack.c.b16 %v71, %v70
  %v83 = vpack.c.b16 %v73, %v72
  %v84 = vpack.c.b16 %v75, %v74
  %v85 = vpack.c.b16 %v77, %v76
  %v88 = vunpack.c.l.b16 %v37
  %v89 = vunpack.c.l.b16 %v38
  %v90 = vpack.c.b16 %v89, %v88
  %vm92 = vcmask 130048
  %v94 = vsel %vm92, %v78, 0
  %v97 = vsel %vm92, %v79, 0
  %v100 = vsel %vm92, %v80, 0
  %v103 = vsel %vm92, %v81, 0
  %v106 = vsel %vm92, %v82, 0
  %v109 = vsel %vm92, %v83, 0
  %v112 = vsel %vm92, %v84, 0
  %v115 = vsel %vm92, %v85, 0
  %117 = vmatprep.subr.bf16.mxu0 0
  %118 = vmatpush1.bf16.msra.mxu0 %v90
  %119 = vmatprep.subr.bf16.mxu0 0
  %120 = vmatpush1.bf16.msra.mxu0 0
  %121 = vmatprep.subr.bf16.mxu0 0
  %122 = vmatpush1.bf16.msra.mxu0 0
  %123 = vmatprep.subr.bf16.mxu0 0
  %124 = vmatpush1.bf16.msra.mxu0 0
  %125 = vmatprep.subr.bf16.mxu0 0
  %126 = vmatpush1.bf16.msra.mxu0 0
  %127 = vmatprep.subr.bf16.mxu0 0
  %128 = vmatpush1.bf16.msra.mxu0 0
  %129 = vmatprep.subr.bf16.mxu0 0
  %130 = vmatpush1.bf16.msra.mxu0 0
  %131 = vmatprep.subr.bf16.mxu0 0
  %132 = vmatpush1.bf16.msra.mxu0 0
  %133 = vmatprep.subr.bf16.mxu0 0
  %134 = vmatpush1.bf16.msra.mxu0 0
  %135 = vmatprep.subr.bf16.mxu0 0
  %136 = vmatpush1.bf16.msra.mxu0 0
  %137 = vmatprep.subr.bf16.mxu0 0
  %138 = vmatpush1.bf16.msra.mxu0 0
  %139 = vmatprep.subr.bf16.mxu0 0
  %140 = vmatpush1.bf16.msra.mxu0 0
  %141 = vmatprep.subr.bf16.mxu0 0
  %142 = vmatpush1.bf16.msra.mxu0 0
  %143 = vmatprep.subr.bf16.mxu0 0
  %144 = vmatpush1.bf16.msra.mxu0 0
  %145 = vmatprep.subr.bf16.mxu0 0
  %146 = vmatpush1.bf16.msra.mxu0 0
  %147 = vmatprep.subr.bf16.mxu0 0
  %148 = vmatpush1.bf16.msra.mxu0 0
  %149 = vmatprep.mubr.bf16.mxu0 0
  %150 = vmatmul.mubr.bf16.gmra.mrb[0].mxu0 %v94
  %v151 = vpop.f32.mrb[0].mxu0
  %v152 = vadd.f32 %v44, %v151
  %v153 = vpop.f32.mrb[0].mxu0
  %v154 = vpop.f32.mrb[0].mxu0
  %v155 = vadd.f32 %v44, %v154
  %v156 = vpop.f32.mrb[0].mxu0
  %157 = vmatprep.mubr.bf16.mxu0 0
  %158 = vmatmul.mubr.bf16.gmra.mrb[0].mxu0 %v97
  %v159 = vpop.f32.mrb[0].mxu0
  %v160 = vadd.f32 %v44, %v159
  %v161 = vpop.f32.mrb[0].mxu0
  %v162 = vpop.f32.mrb[0].mxu0
  %v163 = vadd.f32 %v44, %v162
  %v164 = vpop.f32.mrb[0].mxu0
  %165 = vmatprep.mubr.bf16.mxu0 0
  %166 = vmatmul.mubr.bf16.gmra.mrb[0].mxu0 %v100
  %v167 = vpop.f32.mrb[0].mxu0
  %v168 = vadd.f32 %v44, %v167
  %v169 = vpop.f32.mrb[0].mxu0
  %v170 = vpop.f32.mrb[0].mxu0
  %v171 = vadd.f32 %v44, %v170
  %v172 = vpop.f32.mrb[0].mxu0
  %173 = vmatprep.mubr.bf16.mxu0 0
  %174 = vmatmul.mubr.bf16.gmra.mrb[0].mxu0 %v103
  %v175 = vpop.f32.mrb[0].mxu0
  %v176 = vadd.f32 %v44, %v175
  %v177 = vpop.f32.mrb[0].mxu0
  %v178 = vpop.f32.mrb[0].mxu0
  %v179 = vadd.f32 %v44, %v178
  %v180 = vpop.f32.mrb[0].mxu0
  %181 = vmatprep.mubr.bf16.mxu0 0
  %182 = vmatmul.mubr.bf16.gmra.mrb[0].mxu0 %v106
  %v183 = vpop.f32.mrb[0].mxu0
  %v184 = vadd.f32 %v44, %v183
  %v185 = vpop.f32.mrb[0].mxu0
  %v186 = vpop.f32.mrb[0].mxu0
  %v187 = vadd.f32 %v44, %v186
  %v188 = vpop.f32.mrb[0].mxu0
  %189 = vmatprep.mubr.bf16.mxu0 0
  %190 = vmatmul.mubr.bf16.gmra.mrb[0].mxu0 %v109
  %v191 = vpop.f32.mrb[0].mxu0
  %v192 = vadd.f32 %v44, %v191
  %v193 = vpop.f32.mrb[0].mxu0
  %v194 = vpop.f32.mrb[0].mxu0
  %v195 = vadd.f32 %v44, %v194
  %v196 = vpop.f32.mrb[0].mxu0
  %197 = vmatprep.mubr.bf16.mxu0 0
  %198 = vmatmul.mubr.bf16.gmra.mrb[0].mxu0 %v112
  %v199 = vpop.f32.mrb[0].mxu0
  %v200 = vadd.f32 %v44, %v199
  %v201 = vpop.f32.mrb[0].mxu0
  %v202 = vpop.f32.mrb[0].mxu0
  %v203 = vadd.f32 %v44, %v202
  %v204 = vpop.f32.mrb[0].mxu0
  %205 = vmatprep.mubr.bf16.mxu0 0
  %206 = vmatmul.mubr.bf16.gmra.mrb[0].mxu0 %v115
  %v207 = vpop.f32.mrb[0].mxu0
  %v208 = vadd.f32 %v44, %v207
  %v209 = vpop.f32.mrb[0].mxu0
  %v210 = vpop.f32.mrb[0].mxu0
  %v211 = vadd.f32 %v44, %v210
  %v212 = vpop.f32.mrb[0].mxu0
  %213 = vdwg.mxu0
  %v214 = vmax.f32 %v152, 0.0
  %v215 = vmax.f32 %v155, 0.0
  %v216 = vmax.f32 %v160, 0.0
  %v217 = vmax.f32 %v163, 0.0
  %v218 = vmax.f32 %v168, 0.0
  %v219 = vmax.f32 %v171, 0.0
  %v220 = vmax.f32 %v176, 0.0
  %v221 = vmax.f32 %v179, 0.0
  %v222 = vmax.f32 %v184, 0.0
  %v223 = vmax.f32 %v187, 0.0
  %v224 = vmax.f32 %v192, 0.0
  %v225 = vmax.f32 %v195, 0.0
  %v226 = vmax.f32 %v200, 0.0
  %v227 = vmax.f32 %v203, 0.0
  %v228 = vmax.f32 %v208, 0.0
  %v229 = vmax.f32 %v211, 0.0
  %v230 = vpack.c.bf16 %v215, %v214
  %v231 = vpack.c.bf16 %v217, %v216
  %v232 = vpack.c.bf16 %v219, %v218
  %v233 = vpack.c.bf16 %v221, %v220
  %v234 = vpack.c.bf16 %v223, %v222
  %v235 = vpack.c.bf16 %v225, %v224
  %v236 = vpack.c.bf16 %v227, %v226
  %v237 = vpack.c.bf16 %v229, %v228
  %v238 = vld [vmem:[%s3] sm:$0xf]
  %v239 = vld [vmem:[%s3 + $0x4] sm:$0xf]
  %v240 = vld [vmem:[%s3 + $0x8] sm:$0xf]
  %v241 = vld [vmem:[%s3 + $0xc] sm:$0xf]
  %v242 = vld [vmem:[%s4] sm:$0x1]
  %v244 = vlaneseq
  %v245 = vshrl.u32 %v244, 7
  %v246 = vsub.s32 0, %v245
  %v247 = vrot.slane %v242, %v246
  %v253 = vunpack.c.l.b16 %v238
  %v254 = vunpack.c.l.b16 %v239
  %v255 = vunpack.c.l.b16 %v240
  %v256 = vunpack.c.l.b16 %v241
  %v257 = vpack.c.b16 %v254, %v253
  %v258 = vpack.c.b16 %v256, %v255
  %vm261 = vcmask 261120
  %v263 = vsel %vm261, %v230, 0
  %v266 = vsel %vm261, %v231, 0
  %v269 = vsel %vm261, %v232, 0
  %v272 = vsel %vm261, %v233, 0
  %v275 = vsel %vm261, %v234, 0
  %v278 = vsel %vm261, %v235, 0
  %v281 = vsel %vm261, %v236, 0
  %v284 = vsel %vm261, %v237, 0
  %286 = vmatprep.subr.bf16.mxu0 0
  %287 = vmatpush1.bf16.msra.mxu0 %v257
  %288 = vmatprep.subr.bf16.mxu0 0
  %289 = vmatpush1.bf16.msra.mxu0 %v258
  %290 = vmatprep.subr.bf16.mxu0 0
  %291 = vmatpush1.bf16.msra.mxu0 0
  %292 = vmatprep.subr.bf16.mxu0 0
  %293 = vmatpush1.bf16.msra.mxu0 0
  %294 = vmatprep.subr.bf16.mxu0 0
  %295 = vmatpush1.bf16.msra.mxu0 0
  %296 = vmatprep.subr.bf16.mxu0 0
  %297 = vmatpush1.bf16.msra.mxu0 0
  %298 = vmatprep.subr.bf16.mxu0 0
  %299 = vmatpush1.bf16.msra.mxu0 0
  %300 = vmatprep.subr.bf16.mxu0 0
  %301 = vmatpush1.bf16.msra.mxu0 0
  %302 = vmatprep.subr.bf16.mxu0 0
  %303 = vmatpush1.bf16.msra.mxu0 0
  %304 = vmatprep.subr.bf16.mxu0 0
  %305 = vmatpush1.bf16.msra.mxu0 0
  %306 = vmatprep.subr.bf16.mxu0 0
  %307 = vmatpush1.bf16.msra.mxu0 0
  %308 = vmatprep.subr.bf16.mxu0 0
  %309 = vmatpush1.bf16.msra.mxu0 0
  %310 = vmatprep.subr.bf16.mxu0 0
  %311 = vmatpush1.bf16.msra.mxu0 0
  %312 = vmatprep.subr.bf16.mxu0 0
  %313 = vmatpush1.bf16.msra.mxu0 0
  %314 = vmatprep.subr.bf16.mxu0 0
  %315 = vmatpush1.bf16.msra.mxu0 0
  %316 = vmatprep.subr.bf16.mxu0 0
  %317 = vmatpush1.bf16.msra.mxu0 0
  %318 = vmatprep.mubr.bf16.mxu0 0
  %319 = vmatmul.mubr.bf16.gmra.mrb[0].mxu0 %v263
  %v320 = vpop.f32.mrb[0].mxu0
  %v321 = vadd.f32 %v247, %v320
  %v322 = vpop.f32.mrb[0].mxu0
  %v323 = vpop.f32.mrb[0].mxu0
  %v324 = vadd.f32 %v247, %v323
  %v325 = vpop.f32.mrb[0].mxu0
  %326 = vmatprep.mubr.bf16.mxu0 0
  %327 = vmatmul.mubr.bf16.gmra.mrb[0].mxu0 %v266
  %v328 = vpop.f32.mrb[0].mxu0
  %v329 = vadd.f32 %v247, %v328
  %v330 = vpop.f32.mrb[0].mxu0
  %v331 = vpop.f32.mrb[0].mxu0
  %v332 = vadd.f32 %v247, %v331
  %v333 = vpop.f32.mrb[0].mxu0
  %334 = vmatprep.mubr.bf16.mxu0 0
  %335 = vmatmul.mubr.bf16.gmra.mrb[0].mxu0 %v269
  %v336 = vpop.f32.mrb[0].mxu0
  %v337 = vadd.f32 %v247, %v336
  %v338 = vpop.f32.mrb[0].mxu0
  %v339 = vpop.f32.mrb[0].mxu0
  %v340 = vadd.f32 %v247, %v339
  %v341 = vpop.f32.mrb[0].mxu0
  %342 = vmatprep.mubr.bf16.mxu0 0
  %343 = vmatmul.mubr.bf16.gmra.mrb[0].mxu0 %v272
  %v344 = vpop.f32.mrb[0].mxu0
  %v345 = vadd.f32 %v247, %v344
  %v346 = vpop.f32.mrb[0].mxu0
  %v347 = vpop.f32.mrb[0].mxu0
  %v348 = vadd.f32 %v247, %v347
  %v349 = vpop.f32.mrb[0].mxu0
  %350 = vmatprep.mubr.bf16.mxu0 0
  %351 = vmatmul.mubr.bf16.gmra.mrb[0].mxu0 %v275
  %v352 = vpop.f32.mrb[0].mxu0
  %v353 = vadd.f32 %v247, %v352
  %v354 = vpop.f32.mrb[0].mxu0
  %v355 = vpop.f32.mrb[0].mxu0
  %v356 = vadd.f32 %v247, %v355
  %v357 = vpop.f32.mrb[0].mxu0
  %358 = vmatprep.mubr.bf16.mxu0 0
  %359 = vmatmul.mubr.bf16.gmra.mrb[0].mxu0 %v278
  %v360 = vpop.f32.mrb[0].mxu0
  %v361 = vadd.f32 %v247, %v360
  %v362 = vpop.f32.mrb[0].mxu0
  %v363 = vpop.f32.mrb[0].mxu0
  %v364 = vadd.f32 %v247, %v363
  %v365 = vpop.f32.mrb[0].mxu0
  %366 = vmatprep.mubr.bf16.mxu0 0
  %367 = vmatmul.mubr.bf16.gmra.mrb[0].mxu0 %v281
  %v368 = vpop.f32.mrb[0].mxu0
  %v369 = vadd.f32 %v247, %v368
  %v370 = vpop.f32.mrb[0].mxu0
  %v371 = vpop.f32.mrb[0].mxu0
  %v372 = vadd.f32 %v247, %v371
  %v373 = vpop.f32.mrb[0].mxu0
  %374 = vmatprep.mubr.bf16.mxu0 0
  %375 = vmatmul.mubr.bf16.gmra.mrb[0].mxu0 %v284
  %v376 = vpop.f32.mrb[0].mxu0
  %v377 = vadd.f32 %v247, %v376
  %v378 = vpop.f32.mrb[0].mxu0
  %v379 = vpop.f32.mrb[0].mxu0
  %v380 = vadd.f32 %v247, %v379
  %v381 = vpop.f32.mrb[0].mxu0
  %382 = vdwg.mxu0
  %v383 = vpack.c.bf16 %v324, %v321
  %v384 = vpack.c.bf16 %v332, %v329
  %v385 = vpack.c.bf16 %v340, %v337
  %v386 = vpack.c.bf16 %v348, %v345
  %v387 = vpack.c.bf16 %v356, %v353
  %v388 = vpack.c.bf16 %v364, %v361
  %v389 = vpack.c.bf16 %v372, %v369
  %v390 = vpack.c.bf16 %v380, %v377
  %v399 = vunpack.c.l.b16 %v383
  %v400 = vunpack.c.h.b16 %v383
  %v401 = vunpack.c.l.b16 %v384
  %v402 = vunpack.c.h.b16 %v384
  %v403 = vunpack.c.l.b16 %v385
  %v404 = vunpack.c.h.b16 %v385
  %v405 = vunpack.c.l.b16 %v386
  %v406 = vunpack.c.h.b16 %v386
  %v407 = vunpack.c.l.b16 %v387
  %v408 = vunpack.c.h.b16 %v387
  %v409 = vunpack.c.l.b16 %v388
  %v410 = vunpack.c.h.b16 %v388
  %v411 = vunpack.c.l.b16 %v389
  %v412 = vunpack.c.h.b16 %v389
  %v413 = vunpack.c.l.b16 %v390
  %v414 = vunpack.c.h.b16 %v390
  %v415 = vpack.c.b16 %v399, %v399
  %v416 = vpack.c.b16 %v400, %v400
  %v417 = vpack.c.b16 %v401, %v401
  %v418 = vpack.c.b16 %v402, %v402
  %v419 = vpack.c.b16 %v403, %v403
  %v420 = vpack.c.b16 %v404, %v404
  %v421 = vpack.c.b16 %v405, %v405
  %v422 = vpack.c.b16 %v406, %v406
  %v423 = vpack.c.b16 %v407, %v407
  %v424 = vpack.c.b16 %v408, %v408
  %v425 = vpack.c.b16 %v409, %v409
  %v426 = vpack.c.b16 %v410, %v410
  %v427 = vpack.c.b16 %v411, %v411
  %v428 = vpack.c.b16 %v412, %v412
  %v429 = vpack.c.b16 %v413, %v413
  %v430 = vpack.c.b16 %v414, %v414
  %vm447 = vcmask 257024
  %448 = vst.msk [vmem:[%s5] sm:$0xf] %vm447, %v415
  %449 = vst.msk [vmem:[%s5 + $0x4] sm:$0xf] %vm447, %v416
  %450 = vst.msk [vmem:[%s5 + $0x8] sm:$0xf] %vm447, %v417
  %451 = vst.msk [vmem:[%s5 + $0xc] sm:$0xf] %vm447, %v418
  %452 = vst.msk [vmem:[%s5 + $0x10] sm:$0xf] %vm447, %v419
  %453 = vst.msk [vmem:[%s5 + $0x14] sm:$0xf] %vm447, %v420
  %454 = vst.msk [vmem:[%s5 + $0x18] sm:$0xf] %vm447, %v421
  %455 = vst.msk [vmem:[%s5 + $0x1c] sm:$0xf] %vm447, %v422
  %456 = vst.msk [vmem:[%s5 + $0x20] sm:$0xf] %vm447, %v423
  %457 = vst.msk [vmem:[%s5 + $0x24] sm:$0xf] %vm447, %v424
  %458 = vst.msk [vmem:[%s5 + $0x28] sm:$0xf] %vm447, %v425
  %459 = vst.msk [vmem:[%s5 + $0x2c] sm:$0xf] %vm447, %v426
  %460 = vst.msk [vmem:[%s5 + $0x30] sm:$0xf] %vm447, %v427
  %461 = vst.msk [vmem:[%s5 + $0x34] sm:$0xf] %vm447, %v428
  %462 = vst.msk [vmem:[%s5 + $0x38] sm:$0xf] %vm447, %v429
  %463 = vst.msk [vmem:[%s5 + $0x3c] sm:$0xf] %vm447, %v430
  // Predicated region
  $region22: #{minifold_forward.7} parent=0 // pred_check
    _
  $region23: #{minifold_forward.7} parent=0 // pred_check_branch
    %465 = sbr.rel (0) target = $region25
  $region24: #{minifold_forward.7} parent=0 // pred_region
    _
  $region25: #{minifold_forward.7} parent=0 // pred_fallthru
    _
  // Predicated region
  $region26: #{minifold_forward.7} parent=0 // pred_check
    _
  $region27: #{minifold_forward.7} parent=0 // pred_check_branch
    %467 = sbr.rel (0) target = $region29
  $region28: #{minifold_forward.7} parent=0 // pred_region
    _
  $region29: #{minifold_forward.7} parent=0 // pred_fallthru
    _

// kernel: minifold_forward.9
$region0: #{minifold_forward.9}
  #allocation0 [shape = 'u32[]', space=smem, size = 0x4, offset = 0x4, fixed_abs, tag = 'smem constant byte address 0x4 - core index']
  #allocation1 [shape = 'u32[144,128]{1,0:T(1,128)}', space=vmem, size = 0x12000, scoped, tag = 'internal scratch']
  %s0 = inlined_call_operand.vmem [shape: f32[2,8,16], index: 0, kind: input, shape index: {}]
  %s1 = inlined_call_operand.vmem [shape: f32[2,8,16], index: 1, kind: input, shape index: {}]
  %s2 = inlined_call_operand.vmem [shape: f32[2,8,32], index: 2, kind: input, shape index: {}]
  %s3 = inlined_call_operand.vmem [shape: bf16[2,8,8,32], index: 3, kind: input, shape index: {}]
  %s4 = inlined_call_operand.vmem [shape: bf16[2,8,8,32], index: 4, kind: input, shape index: {}]
  %s5 = inlined_call_operand.vmem [shape: bf16[16,32], index: 5, kind: input, shape index: {}]
  %s6 = inlined_call_operand.vmem [shape: bf16[16,32], index: 6, kind: input, shape index: {}]
  %s7 = inlined_call_operand.vmem [shape: bf16[2,8,8,32], index: 7, kind: output, shape index: {}]
  %s8 = sld [smem:[#allocation0]]
  $region61: #{minifold_forward.9} parent=0
    _
  %s10 = ssub.s32 1, %s8
  %s11 = scalar_select 0, %s10, %s8
  loop: start=0, step=1, limit=4
  $region2: #{minifold_forward.9} parent=0 // loop_pre_header
    _
  $region3: #{minifold_forward.9} parent=0 // loop_header
    %s13 = sphi 0, %s17
    %p14 = scmp.ge.s32.totalorder %s13, 4
    %s20 = sphi 0, %s32
    %s21 = sphi 0, %s28
    %s22 = sphi 0, %s20
    %s23 = sphi 0, %s21
    %s24 = sphi 0, %s22
    %s25 = sphi 0, %s23
    %s35 = sphi 0, %s37
    %s38 = sphi 0, %s35
    %s39 = sphi 0, %s38
    %s55 = sphi 0, %s39
    %s63 = sphi 0, %s65
    %s66 = sphi 0, %s63
    %s67 = sphi 0, %s66
    %s83 = sphi 0, %s67
    %s89 = sphi 0, %s91
    %s92 = sphi 0, %s89
    %s93 = sphi 0, %s92
    %s109 = sphi 0, %s93
    %s117 = sphi 0, %s119
    %s120 = sphi 0, %s117
    %s121 = sphi 0, %s120
    %s137 = sphi 0, %s121
    %s145 = sphi 0, %s147
    %s148 = sphi 0, %s145
    %s149 = sphi 0, %s148
    %s165 = sphi 0, %s149
    %s169 = sphi 0, %s169
    %s171 = sphi 0, %s169
    %s172 = sphi 0, %s171
    %s186 = sphi 0, %s172
    %s190 = sphi 0, %s190
    %s192 = sphi 0, %s190
    %s193 = sphi 0, %s192
    %s207 = sphi 0, %s193
    %s215 = sphi 0, %s217
    %s218 = sphi 0, %s215
    %s219 = sphi 0, %s218
    %s235 = sphi 0, %s219
  $region4: #{minifold_forward.9} parent=0 // loop_header_branch
    %16 = sbr.rel (%p14) target = $region8
  $region5: #{minifold_forward.9} parent=0 // loop_body
    %s18 = ssub.s32 %s13, 1
    %s19 = ssub.s32 %s13, 2
    %s26 = sadd.s32 1, %s21
    %p27 = scmp.ge.s32.totalorder %s26, 1
    %s28 = scalar_select %p27, 0, %s26
    %s29 = sadd.s32 1, %s20
    %s30 = scalar_select %p27, %s29, %s20
    %p31 = scmp.ge.s32.totalorder %s30, 2
    %s32 = scalar_select %p31, 0, %s30
    %s33 = ssub.s32 %s20, %s32
    %p34 = scmp.eq.s32.totalorder %s33, 0
    %s36 = sadd.s32 %s35, 1
    %s37 = scalar_select %p34, %s35, %s36
    %p40 = pneg %p34
    %p41 = scmp.eq.s32.totalorder %s13, 1
    %p42 = por %p40, %p41
    %p43 = scmp.ne.s32.totalorder %s35, %s38
    %p44 = scmp.eq.s32.totalorder %s13, 0
    %p45 = por %p43, %p44
    %p46 = scmp.ne.s32.totalorder %s35, %s38
    %p47 = scmp.eq.s32.totalorder %s18, 1
    %p48 = por %p46, %p47
    %p49 = scmp.ne.s32.totalorder %s38, %s39
    %p50 = scmp.eq.s32.totalorder %s18, 0
    %p51 = por %p49, %p50
    %p52 = scmp.ne.s32.totalorder %s38, %s39
    %p53 = scmp.eq.s32.totalorder %s19, 1
    %p54 = por %p52, %p53
    %p56 = scmp.ne.s32.totalorder %s39, %s55
    %p57 = scmp.eq.s32.totalorder %s19, 0
    %p58 = por %p56, %p57
    %s59 = ssub.s32 %s20, %s32
    %s60 = ssub.s32 %s21, %s28
    %s61 = sor.u32 %s59, %s60
    %p62 = scmp.eq.s32.totalorder %s61, 0
    %s64 = sadd.s32 %s63, 1
    %s65 = scalar_select %p62, %s63, %s64
    %p68 = pneg %p62
    %p69 = scmp.eq.s32.totalorder %s13, 1
    %p70 = por %p68, %p69
    %p71 = scmp.ne.s32.totalorder %s63, %s66
    %p72 = scmp.eq.s32.totalorder %s13, 0
    %p73 = por %p71, %p72
    %p74 = scmp.ne.s32.totalorder %s63, %s66
    %p75 = scmp.eq.s32.totalorder %s18, 1
    %p76 = por %p74, %p75
    %p77 = scmp.ne.s32.totalorder %s66, %s67
    %p78 = scmp.eq.s32.totalorder %s18, 0
    %p79 = por %p77, %p78
    %p80 = scmp.ne.s32.totalorder %s66, %s67
    %p81 = scmp.eq.s32.totalorder %s19, 1
    %p82 = por %p80, %p81
    %p84 = scmp.ne.s32.totalorder %s67, %s83
    %p85 = scmp.eq.s32.totalorder %s19, 0
    %p86 = por %p84, %p85
    %s87 = ssub.s32 %s20, %s32
    %p88 = scmp.eq.s32.totalorder %s87, 0
    %s90 = sadd.s32 %s89, 1
    %s91 = scalar_select %p88, %s89, %s90
    %p94 = pneg %p88
    %p95 = scmp.eq.s32.totalorder %s13, 1
    %p96 = por %p94, %p95
    %p97 = scmp.ne.s32.totalorder %s89, %s92
    %p98 = scmp.eq.s32.totalorder %s13, 0
    %p99 = por %p97, %p98
    %p100 = scmp.ne.s32.totalorder %s89, %s92
    %p101 = scmp.eq.s32.totalorder %s18, 1
    %p102 = por %p100, %p101
    %p103 = scmp.ne.s32.totalorder %s92, %s93
    %p104 = scmp.eq.s32.totalorder %s18, 0
    %p105 = por %p103, %p104
    %p106 = scmp.ne.s32.totalorder %s92, %s93
    %p107 = scmp.eq.s32.totalorder %s19, 1
    %p108 = por %p106, %p107
    %p110 = scmp.ne.s32.totalorder %s93, %s109
    %p111 = scmp.eq.s32.totalorder %s19, 0
    %p112 = por %p110, %p111
    %s113 = ssub.s32 %s20, %s32
    %s114 = ssub.s32 %s21, %s28
    %s115 = sor.u32 %s113, %s114
    %p116 = scmp.eq.s32.totalorder %s115, 0
    %s118 = sadd.s32 %s117, 1
    %s119 = scalar_select %p116, %s117, %s118
    %p122 = pneg %p116
    %p123 = scmp.eq.s32.totalorder %s13, 1
    %p124 = por %p122, %p123
    %p125 = scmp.ne.s32.totalorder %s117, %s120
    %p126 = scmp.eq.s32.totalorder %s13, 0
    %p127 = por %p125, %p126
    %p128 = scmp.ne.s32.totalorder %s117, %s120
    %p129 = scmp.eq.s32.totalorder %s18, 1
    %p130 = por %p128, %p129
    %p131 = scmp.ne.s32.totalorder %s120, %s121
    %p132 = scmp.eq.s32.totalorder %s18, 0
    %p133 = por %p131, %p132
    %p134 = scmp.ne.s32.totalorder %s120, %s121
    %p135 = scmp.eq.s32.totalorder %s19, 1
    %p136 = por %p134, %p135
    %p138 = scmp.ne.s32.totalorder %s121, %s137
    %p139 = scmp.eq.s32.totalorder %s19, 0
    %p140 = por %p138, %p139
    %s141 = ssub.s32 %s20, %s32
    %s142 = ssub.s32 %s21, %s28
    %s143 = sor.u32 %s141, %s142
    %p144 = scmp.eq.s32.totalorder %s143, 0
    %s146 = sadd.s32 %s145, 1
    %s147 = scalar_select %p144, %s145, %s146
    %p150 = pneg %p144
    %p151 = scmp.eq.s32.totalorder %s13, 1
    %p152 = por %p150, %p151
    %p153 = scmp.ne.s32.totalorder %s145, %s148
    %p154 = scmp.eq.s32.totalorder %s13, 0
    %p155 = por %p153, %p154
    %p156 = scmp.ne.s32.totalorder %s145, %s148
    %p157 = scmp.eq.s32.totalorder %s18, 1
    %p158 = por %p156, %p157
    %p159 = scmp.ne.s32.totalorder %s148, %s149
    %p160 = scmp.eq.s32.totalorder %s18, 0
    %p161 = por %p159, %p160
    %p162 = scmp.ne.s32.totalorder %s148, %s149
    %p163 = scmp.eq.s32.totalorder %s19, 1
    %p164 = por %p162, %p163
    %p166 = scmp.ne.s32.totalorder %s149, %s165
    %p167 = scmp.eq.s32.totalorder %s19, 0
    %p168 = por %p166, %p167
    %s170 = sadd.s32 %s169, 1
    %p173 = scmp.eq.s32.totalorder %s13, 1
    %p174 = scmp.ne.s32.totalorder %s169, %s171
    %p175 = scmp.eq.s32.totalorder %s13, 0
    %p176 = por %p174, %p175
    %p177 = scmp.ne.s32.totalorder %s169, %s171
    %p178 = scmp.eq.s32.totalorder %s18, 1
    %p179 = por %p177, %p178
    %p180 = scmp.ne.s32.totalorder %s171, %s172
    %p181 = scmp.eq.s32.totalorder %s18, 0
    %p182 = por %p180, %p181
    %p183 = scmp.ne.s32.totalorder %s171, %s172
    %p184 = scmp.eq.s32.totalorder %s19, 1
    %p185 = por %p183, %p184
    %p187 = scmp.ne.s32.totalorder %s172, %s186
    %p188 = scmp.eq.s32.totalorder %s19, 0
    %p189 = por %p187, %p188
    %s191 = sadd.s32 %s190, 1
    %p194 = scmp.eq.s32.totalorder %s13, 1
    %p195 = scmp.ne.s32.totalorder %s190, %s192
    %p196 = scmp.eq.s32.totalorder %s13, 0
    %p197 = por %p195, %p196
    %p198 = scmp.ne.s32.totalorder %s190, %s192
    %p199 = scmp.eq.s32.totalorder %s18, 1
    %p200 = por %p198, %p199
    %p201 = scmp.ne.s32.totalorder %s192, %s193
    %p202 = scmp.eq.s32.totalorder %s18, 0
    %p203 = por %p201, %p202
    %p204 = scmp.ne.s32.totalorder %s192, %s193
    %p205 = scmp.eq.s32.totalorder %s19, 1
    %p206 = por %p204, %p205
    %p208 = scmp.ne.s32.totalorder %s193, %s207
    %p209 = scmp.eq.s32.totalorder %s19, 0
    %p210 = por %p208, %p209
    %s211 = ssub.s32 %s20, %s32
    %s212 = ssub.s32 %s21, %s28
    %s213 = sor.u32 %s211, %s212
    %p214 = scmp.eq.s32.totalorder %s213, 0
    %s216 = sadd.s32 %s215, 1
    %s217 = scalar_select %p214, %s215, %s216
    %p220 = pneg %p214
    %p221 = scmp.eq.s32.totalorder %s13, 1
    %p222 = por %p220, %p221
    %p223 = scmp.ne.s32.totalorder %s215, %s218
    %p224 = scmp.eq.s32.totalorder %s13, 0
    %p225 = por %p223, %p224
    %p226 = scmp.ne.s32.totalorder %s215, %s218
    %p227 = scmp.eq.s32.totalorder %s18, 1
    %p228 = por %p226, %p227
    %p229 = scmp.ne.s32.totalorder %s218, %s219
    %p230 = scmp.eq.s32.totalorder %s18, 0
    %p231 = por %p229, %p230
    %p232 = scmp.ne.s32.totalorder %s218, %s219
    %p233 = scmp.eq.s32.totalorder %s19, 1
    %p234 = por %p232, %p233
    %p236 = scmp.ne.s32.totalorder %s219, %s235
    %p237 = scmp.eq.s32.totalorder %s19, 0
    %p238 = por %p236, %p237
    %p239 = scmp.le.s32.totalorder 1, %s13
    %p240 = scmp.lt.s32.totalorder %s13, 3
    %p241 = pnand %p239, %p240
    %p242 = pneg %p241
    // Predicated region
    $region9: #{minifold_forward.9} parent=5 // pred_check
      _
    $region10: #{minifold_forward.9} parent=5 // pred_check_branch
      %244 = sbr.rel (%p241) target = $region12
    $region11: #{minifold_forward.9} parent=5 // pred_region
      %s245 = ssub.s32 %s13, 1
      // Predicated region
      $region13: #{minifold_forward.9} parent=11 // pred_check
        %p246 = pneg %p182
      $region14: #{minifold_forward.9} parent=11 // pred_check_branch
        %248 = sbr.rel (%p246) target = $region16
      $region15: #{minifold_forward.9} parent=11 // pred_region
        _
      $region16: #{minifold_forward.9} parent=11 // pred_fallthru
        _
      // Predicated region
      $region17: #{minifold_forward.9} parent=11 // pred_check
        %p249 = pneg %p203
      $region18: #{minifold_forward.9} parent=11 // pred_check_branch
        %251 = sbr.rel (%p249) target = $region20
      $region19: #{minifold_forward.9} parent=11 // pred_region
        _
      $region20: #{minifold_forward.9} parent=11 // pred_fallthru
        _
    $region12: #{minifold_forward.9} parent=5 // pred_fallthru
      _
    %p252 = scmp.lt.s32.totalorder %s13, 2
    // Predicated region
    $region21: #{minifold_forward.9} parent=5 // pred_check
      %p253 = pneg %p252
    $region22: #{minifold_forward.9} parent=5 // pred_check_branch
      %255 = sbr.rel (%p253) target = $region24
    $region23: #{minifold_forward.9} parent=5 // pred_region
      // Predicated region
      $region25: #{minifold_forward.9} parent=23 // pred_check
        %p256 = pneg %p45
      $region26: #{minifold_forward.9} parent=23 // pred_check_branch
        %258 = sbr.rel (%p256) target = $region28
      $region27: #{minifold_forward.9} parent=23 // pred_region
        %p259 = scmp.lt.s32.totalorder %s20, 1
        %s260 = scalar_select %p259, %s20, 1
        %s261 = smul.addr %s260, 8
        %s262 = scalar_lea.vmem %s0, %s261
      $region28: #{minifold_forward.9} parent=23 // pred_fallthru
        _
      // Predicated region
      $region29: #{minifold_forward.9} parent=23 // pred_check
        %p263 = pneg %p73
      $region30: #{minifold_forward.9} parent=23 // pred_check_branch
        %265 = sbr.rel (%p263) target = $region32
      $region31: #{minifold_forward.9} parent=23 // pred_region
        %p266 = scmp.lt.s32.totalorder %s20, 1
        %s267 = scalar_select %p266, %s20, 1
        %p268 = scmp.lt.s32.totalorder %s21, 0
        %s269 = scalar_select %p268, %s21, 0
        %s270 = sadd.s32 %s269, %s267
        %s271 = smul.addr %s270, 8
        %s272 = scalar_lea.vmem %s1, %s271
      $region32: #{minifold_forward.9} parent=23 // pred_fallthru
        _
      // Predicated region
      $region33: #{minifold_forward.9} parent=23 // pred_check
        %p273 = pneg %p99
      $region34: #{minifold_forward.9} parent=23 // pred_check_branch
        %275 = sbr.rel (%p273) target = $region36
      $region35: #{minifold_forward.9} parent=23 // pred_region
        %p276 = scmp.lt.s32.totalorder %s20, 1
        %s277 = scalar_select %p276, %s20, 1
        %s278 = smul.addr %s277, 8
        %s279 = scalar_lea.vmem %s2, %s278
      $region36: #{minifold_forward.9} parent=23 // pred_fallthru
        _
      // Predicated region
      $region37: #{minifold_forward.9} parent=23 // pred_check
        %p280 = pneg %p127
      $region38: #{minifold_forward.9} parent=23 // pred_check_branch
        %282 = sbr.rel (%p280) target = $region40
      $region39: #{minifold_forward.9} parent=23 // pred_region
        %s283 = smul.u32 8, %s21
        %p284 = scmp.lt.s32.totalorder %s20, 1
        %s285 = scalar_select %p284, %s20, 1
        %p286 = scmp.lt.s32.totalorder %s283, 7
        %s287 = scalar_select %p286, %s283, 7
        %s288 = smul.addr %s285, 8
        %s289 = sadd.s32 %s287, %s288
        %s290 = smul.addr %s289, 4
        %s291 = scalar_lea.vmem %s3, %s290
        %s292 = smul.u32 8, %s21
      $region40: #{minifold_forward.9} parent=23 // pred_fallthru
        _
      // Predicated region
      $region41: #{minifold_forward.9} parent=23 // pred_check
        %p293 = pneg %p155
      $region42: #{minifold_forward.9} parent=23 // pred_check_branch
        %295 = sbr.rel (%p293) target = $region44
      $region43: #{minifold_forward.9} parent=23 // pred_region
        %s296 = smul.u32 8, %s21
        %p297 = scmp.lt.s32.totalorder %s20, 1
        %s298 = scalar_select %p297, %s20, 1
        %p299 = scmp.lt.s32.totalorder %s296, 7
        %s300 = scalar_select %p299, %s296, 7
        %s301 = smul.addr %s298, 8
        %s302 = sadd.s32 %s300, %s301
        %s303 = smul.addr %s302, 4
        %s304 = scalar_lea.vmem %s4, %s303
        %s305 = smul.u32 8, %s21
      $region44: #{minifold_forward.9} parent=23 // pred_fallthru
        _
    $region24: #{minifold_forward.9} parent=5 // pred_fallthru
      _
    %p306 = scmp.le.s32.totalorder 1, %s13
    %p307 = scmp.lt.s32.totalorder %s13, 3
    %p308 = pnand %p306, %p307
    %p309 = pneg %p308
    // Predicated region
    $region45: #{minifold_forward.9} parent=5 // pred_check
      _
    $region46: #{minifold_forward.9} parent=5 // pred_check_branch
      %311 = sbr.rel (%p308) target = $region48
    $region47: #{minifold_forward.9} parent=5 // pred_region
      %s312 = ssub.s32 %s13, 1
      %p313 = scmp.lt.s32.totalorder %s22, 1
      %s314 = scalar_select %p313, %s22, 1
      %s315 = smul.addr %s314, 8
      %s316 = scalar_lea.vmem %s0, %s315
      %p317 = pneg %p51
      %p318 = pneg %p48
      %p319 = scmp.lt.s32.totalorder %s22, 1
      %s320 = scalar_select %p319, %s22, 1
      %p321 = scmp.lt.s32.totalorder %s23, 0
      %s322 = scalar_select %p321, %s23, 0
      %s323 = sadd.s32 %s322, %s320
      %s324 = smul.addr %s323, 8
      %s325 = scalar_lea.vmem %s1, %s324
      %p326 = pneg %p79
      %p327 = pneg %p76
      %p328 = scmp.lt.s32.totalorder %s22, 1
      %s329 = scalar_select %p328, %s22, 1
      %s330 = smul.addr %s329, 8
      %s331 = scalar_lea.vmem %s2, %s330
      %p332 = pneg %p105
      %p333 = pneg %p102
      %s334 = smul.u32 8, %s23
      %p335 = scmp.lt.s32.totalorder %s22, 1
      %s336 = scalar_select %p335, %s22, 1
      %p337 = scmp.lt.s32.totalorder %s334, 7
      %s338 = scalar_select %p337, %s334, 7
      %s339 = smul.addr %s336, 8
      %s340 = sadd.s32 %s338, %s339
      %s341 = smul.addr %s340, 4
      %s342 = scalar_lea.vmem %s3, %s341
      %p343 = pneg %p133
      %p344 = pneg %p130
      %s345 = smul.u32 8, %s23
      %p346 = scmp.lt.s32.totalorder %s22, 1
      %s347 = scalar_select %p346, %s22, 1
      %p348 = scmp.lt.s32.totalorder %s345, 7
      %s349 = scalar_select %p348, %s345, 7
      %s350 = smul.addr %s347, 8
      %s351 = sadd.s32 %s349, %s350
      %s352 = smul.addr %s351, 4
      %s353 = scalar_lea.vmem %s4, %s352
      %p354 = pneg %p161
      %p355 = pneg %p158
      %p356 = pneg %p182
      %p357 = pneg %p179
      %p358 = pneg %p203
      %p359 = pneg %p200
      %p360 = pneg %p231
      %p361 = pneg %p228
      %s362 = smul.u32 8, %s23
      %p363 = scmp.lt.s32.totalorder %s22, 1
      %s364 = scalar_select %p363, %s22, 1
      %p365 = scmp.lt.s32.totalorder %s362, 7
      %s366 = scalar_select %p365, %s362, 7
      %s367 = smul.addr %s364, 8
      %s368 = sadd.s32 %s366, %s367
      %s369 = smul.addr %s368, 4
      %s370 = scalar_lea.vmem %s7, %s369
      %p371 = scmp.lt.s32.totalorder %s22, 1
      %s372 = scalar_select %p371, %s22, 1
      %s373 = smul.addr %s372, 8
      %s374 = scalar_lea.vmem %s0, %s373
      %p375 = scmp.lt.s32.totalorder %s22, 1
      %s376 = scalar_select %p375, %s22, 1
      %p377 = scmp.lt.s32.totalorder %s23, 0
      %s378 = scalar_select %p377, %s23, 0
      %s379 = sadd.s32 %s378, %s376
      %s380 = smul.addr %s379, 8
      %s381 = scalar_lea.vmem %s1, %s380
      %p382 = scmp.lt.s32.totalorder %s22, 1
      %s383 = scalar_select %p382, %s22, 1
      %s384 = smul.addr %s383, 8
      %s385 = scalar_lea.vmem %s2, %s384
      %s386 = smul.u32 8, %s23
      %p387 = scmp.lt.s32.totalorder %s22, 1
      %s388 = scalar_select %p387, %s22, 1
      %p389 = scmp.lt.s32.totalorder %s386, 7
      %s390 = scalar_select %p389, %s386, 7
      %s391 = smul.addr %s388, 8
      %s392 = sadd.s32 %s390, %s391
      %s393 = smul.addr %s392, 4
      %s394 = scalar_lea.vmem %s3, %s393
      %s395 = smul.u32 8, %s23
      %s396 = smul.u32 8, %s23
      %p397 = scmp.lt.s32.totalorder %s22, 1
      %s398 = scalar_select %p397, %s22, 1
      %p399 = scmp.lt.s32.totalorder %s396, 7
      %s400 = scalar_select %p399, %s396, 7
      %s401 = smul.addr %s398, 8
      %s402 = sadd.s32 %s400, %s401
      %s403 = smul.addr %s402, 4
      %s404 = scalar_lea.vmem %s4, %s403
      %s405 = smul.u32 8, %s23
      %s406 = smul.u32 8, %s23
      %p407 = scmp.lt.s32.totalorder %s22, 1
      %s408 = scalar_select %p407, %s22, 1
      %p409 = scmp.lt.s32.totalorder %s406, 7
      %s410 = scalar_select %p409, %s406, 7
      %s411 = smul.addr %s408, 8
      %s412 = sadd.s32 %s410, %s411
      %s413 = smul.addr %s412, 4
      %s414 = scalar_lea.vmem %s7, %s413
      %s415 = smul.u32 8, %s23
      %v417 = vld [vmem:[%s374] sm:$0xff]
      %v418 = vld [vmem:[%s381] sm:$0xff]
      %v419 = vld [vmem:[%s385] sm:$0xff]
      %v420 = vpack.c.bf16 %v418, %v418
      %v421 = vld [vmem:[%s6] sm:$0xf]
      %v422 = vld [vmem:[%s6 + $0x4] sm:$0xf]
      %v425 = vunpack.c.l.b16 %v421
      %v426 = vunpack.c.l.b16 %v422
      %v427 = vpack.c.b16 %v426, %v425
      %vm429 = vcmask 130048
      %v431 = vsel %vm429, %v420, 0
      %433 = vmatprep.subr.bf16.mxu0 0
      %434 = vmatpush1.bf16.msra.mxu0 %v427
      %435 = vmatprep.subr.bf16.mxu0 0
      %436 = vmatpush1.bf16.msra.mxu0 0
      %437 = vmatprep.subr.bf16.mxu0 0
      %438 = vmatpush1.bf16.msra.mxu0 0
      %439 = vmatprep.subr.bf16.mxu0 0
      %440 = vmatpush1.bf16.msra.mxu0 0
      %441 = vmatprep.subr.bf16.mxu0 0
      %442 = vmatpush1.bf16.msra.mxu0 0
      %443 = vmatprep.subr.bf16.mxu0 0
      %444 = vmatpush1.bf16.msra.mxu0 0
      %445 = vmatprep.subr.bf16.mxu0 0
      %446 = vmatpush1.bf16.msra.mxu0 0
      %447 = vmatprep.subr.bf16.mxu0 0
      %448 = vmatpush1.bf16.msra.mxu0 0
      %449 = vmatprep.subr.bf16.mxu0 0
      %450 = vmatpush1.bf16.msra.mxu0 0
      %451 = vmatprep.subr.bf16.mxu0 0
      %452 = vmatpush1.bf16.msra.mxu0 0
      %453 = vmatprep.subr.bf16.mxu0 0
      %454 = vmatpush1.bf16.msra.mxu0 0
      %455 = vmatprep.subr.bf16.mxu0 0
      %456 = vmatpush1.bf16.msra.mxu0 0
      %457 = vmatprep.subr.bf16.mxu0 0
      %458 = vmatpush1.bf16.msra.mxu0 0
      %459 = vmatprep.subr.bf16.mxu0 0
      %460 = vmatpush1.bf16.msra.mxu0 0
      %461 = vmatprep.subr.bf16.mxu0 0
      %462 = vmatpush1.bf16.msra.mxu0 0
      %463 = vmatprep.subr.bf16.mxu0 0
      %464 = vmatpush1.bf16.msra.mxu0 0
      %465 = vmatprep.mubr.bf16.mxu0 0
      %466 = vmatmul.mubr.bf16.gmra.mrb[0].mxu0 %v431
      %v467 = vpop.f32.mrb[0].mxu0
      %v468 = vadd.f32 0.0, %v467
      %v469 = vpop.f32.mrb[0].mxu0
      %v470 = vpop.f32.mrb[0].mxu0
      %v471 = vpop.f32.mrb[0].mxu0
      %472 = vdwg.mxu0
      %v475 = vunpack.c.l.s4 1966171168
      %v476 = vunpack.c.0.s8 %v475
      %v477 = vlaneseq
      %v478 = vshrl.u32 %v477, 7
      %v479 = vsub.s32 %v476, %v478
      %v480 = vrot.slane %v420, %v479
      %v481 = vcombine.high %v480, %v480
      %v483 = vunpack.c.l.s4 1966171168
      %v484 = vunpack.c.0.s8 %v483
      %v485 = vlaneseq
      %v486 = vshrl.u32 %v485, 7
      %v487 = vsub.s32 %v484, %v486
      %v488 = vrot.slane %v480, %v487
      %v490 = vunpack.c.l.s4 1966171168
      %v491 = vunpack.c.0.s8 %v490
      %v492 = vlaneseq
      %v493 = vshrl.u32 %v492, 7
      %v494 = vsub.s32 %v491, %v493
      %v495 = vrot.slane %v481, %v494
      %v496 = vcombine.high %v488, %v488
      %v497 = vcombine.high %v495, %v495
      %v498 = vunpack.i.l.s16 %v488
      %v499 = vunpack.i.h.s16 %v488
      %v500 = vunpack.i.l.s16 %v495
      %v501 = vunpack.i.h.s16 %v495
      %v502 = vunpack.i.l.s16 %v496
      %v503 = vunpack.i.h.s16 %v496
      %v504 = vunpack.i.l.s16 %v497
      %v505 = vunpack.i.h.s16 %v497
      %v506 = vpack.c.bf16 %v417, %v417
      %v507 = vpack.i.b16 %v498, %v498
      %v508 = vpack.i.b16 %v499, %v499
      %v509 = vpack.i.b16 %v500, %v500
      %v510 = vpack.i.b16 %v501, %v501
      %v511 = vpack.i.b16 %v502, %v502
      %v512 = vpack.i.b16 %v503, %v503
      %v513 = vpack.i.b16 %v504, %v504
      %v514 = vpack.i.b16 %v505, %v505
      %v515 = vlaneseq
      %v516 = vshrl.u32 %v515, 7
      %v517 = vsub.s32 0, %v516
      %v518 = vrot.slane %v507, %v517
      %v519 = vlaneseq
      %v520 = vshrl.u32 %v519, 7
      %v521 = vsub.s32 0, %v520
      %v522 = vrot.slane %v508, %v521
      %v523 = vlaneseq
      %v524 = vshrl.u32 %v523, 7
      %v525 = vsub.s32 0, %v524
      %v526 = vrot.slane %v509, %v525
      %v527 = vlaneseq
      %v528 = vshrl.u32 %v527, 7
      %v529 = vsub.s32 0, %v528
      %v530 = vrot.slane %v510, %v529
      %v531 = vlaneseq
      %v532 = vshrl.u32 %v531, 7
      %v533 = vsub.s32 0, %v532
      %v534 = vrot.slane %v511, %v533
      %v535 = vlaneseq
      %v536 = vshrl.u32 %v535, 7
      %v537 = vsub.s32 0, %v536
      %v538 = vrot.slane %v512, %v537
      %v539 = vlaneseq
      %v540 = vshrl.u32 %v539, 7
      %v541 = vsub.s32 0, %v540
      %v542 = vrot.slane %v513, %v541
      %v543 = vlaneseq
      %v544 = vshrl.u32 %v543, 7
      %v545 = vsub.s32 0, %v544
      %v546 = vrot.slane %v514, %v545
      %v548 = vpack.i.b16 %v518, %v518
      %v550 = vlaneseq
      %v551 = vshrl.u32 %v550, 7
      %v552 = vsub.s32 0, %v551
      %v553 = vrot.slane %v548, %v552
      %v555 = vpack.i.b16 %v522, %v522
      %v557 = vlaneseq
      %v558 = vshrl.u32 %v557, 7
      %v559 = vsub.s32 0, %v558
      %v560 = vrot.slane %v555, %v559
      %v562 = vpack.i.b16 %v526, %v526
      %v564 = vlaneseq
      %v565 = vshrl.u32 %v564, 7
      %v566 = vsub.s32 0, %v565
      %v567 = vrot.slane %v562, %v566
      %v569 = vpack.i.b16 %v530, %v530
      %v571 = vlaneseq
      %v572 = vshrl.u32 %v571, 7
      %v573 = vsub.s32 0, %v572
      %v574 = vrot.slane %v569, %v573
      %v576 = vpack.i.b16 %v534, %v534
      %v578 = vlaneseq
      %v579 = vshrl.u32 %v578, 7
      %v580 = vsub.s32 0, %v579
      %v581 = vrot.slane %v576, %v580
      %v583 = vpack.i.b16 %v538, %v538
      %v585 = vlaneseq
      %v586 = vshrl.u32 %v585, 7
      %v587 = vsub.s32 0, %v586
      %v588 = vrot.slane %v583, %v587
      %v590 = vpack.i.b16 %v542, %v542
      %v592 = vlaneseq
      %v593 = vshrl.u32 %v592, 7
      %v594 = vsub.s32 0, %v593
      %v595 = vrot.slane %v590, %v594
      %v597 = vpack.i.b16 %v546, %v546
      %v599 = vlaneseq
      %v600 = vshrl.u32 %v599, 7
      %v601 = vsub.s32 0, %v600
      %v602 = vrot.slane %v597, %v601
      %v603 = vmul.bf16 %v553, %v506
      %v604 = vmul.bf16 %v560, %v506
      %v605 = vmul.bf16 %v567, %v506
      %v606 = vmul.bf16 %v574, %v506
      %v607 = vmul.bf16 %v581, %v506
      %v608 = vmul.bf16 %v588, %v506
      %v609 = vmul.bf16 %v595, %v506
      %v610 = vmul.bf16 %v602, %v506
      %v611 = vld [vmem:[%s5] sm:$0xf]
      %v612 = vld [vmem:[%s5 + $0x4] sm:$0xf]
      %v621 = vunpack.c.l.b16 %v603
      %v622 = vunpack.c.l.b16 %v604
      %v623 = vunpack.c.l.b16 %v605
      %v624 = vunpack.c.l.b16 %v606
      %v625 = vunpack.c.l.b16 %v607
      %v626 = vunpack.c.l.b16 %v608
      %v627 = vunpack.c.l.b16 %v609
      %v628 = vunpack.c.l.b16 %v610
      %v629 = vpack.c.b16 %v622, %v621
      %v630 = vpack.c.b16 %v624, %v623
      %v631 = vpack.c.b16 %v626, %v625
      %v632 = vpack.c.b16 %v628, %v627
      %v635 = vunpack.c.l.b16 %v611
      %v636 = vunpack.c.l.b16 %v612
      %v637 = vpack.c.b16 %v636, %v635
      %v640 = vsel %vm429, %v629, 0
      %v643 = vsel %vm429, %v630, 0
      %v646 = vsel %vm429, %v631, 0
      %v649 = vsel %vm429, %v632, 0
      %651 = vmatprep.subr.bf16.mxu0 0
      %652 = vmatpush1.bf16.msra.mxu0 %v637
      %653 = vmatprep.subr.bf16.mxu0 0
      %654 = vmatpush1.bf16.msra.mxu0 0
      %655 = vmatprep.subr.bf16.mxu0 0
      %656 = vmatpush1.bf16.msra.mxu0 0
      %657 = vmatprep.subr.bf16.mxu0 0
      %658 = vmatpush1.bf16.msra.mxu0 0
      %659 = vmatprep.subr.bf16.mxu0 0
      %660 = vmatpush1.bf16.msra.mxu0 0
      %661 = vmatprep.subr.bf16.mxu0 0
      %662 = vmatpush1.bf16.msra.mxu0 0
      %663 = vmatprep.subr.bf16.mxu0 0
      %664 = vmatpush1.bf16.msra.mxu0 0
      %665 = vmatprep.subr.bf16.mxu0 0
      %666 = vmatpush1.bf16.msra.mxu0 0
      %667 = vmatprep.subr.bf16.mxu0 0
      %668 = vmatpush1.bf16.msra.mxu0 0
      %669 = vmatprep.subr.bf16.mxu0 0
      %670 = vmatpush1.bf16.msra.mxu0 0
      %671 = vmatprep.subr.bf16.mxu0 0
      %672 = vmatpush1.bf16.msra.mxu0 0
      %673 = vmatprep.subr.bf16.mxu0 0
      %674 = vmatpush1.bf16.msra.mxu0 0
      %675 = vmatprep.subr.bf16.mxu0 0
      %676 = vmatpush1.bf16.msra.mxu0 0
      %677 = vmatprep.subr.bf16.mxu0 0
      %678 = vmatpush1.bf16.msra.mxu0 0
      %679 = vmatprep.subr.bf16.mxu0 0
      %680 = vmatpush1.bf16.msra.mxu0 0
      %681 = vmatprep.subr.bf16.mxu0 0
      %682 = vmatpush1.bf16.msra.mxu0 0
      %683 = vmatprep.mubr.bf16.mxu0 0
      %684 = vmatmul.mubr.bf16.gmra.mrb[0].mxu0 %v640
      %v685 = vpop.f32.mrb[0].mxu0
      %v686 = vadd.f32 0.0, %v685
      %v687 = vpop.f32.mrb[0].mxu0
      %v688 = vpop.f32.mrb[0].mxu0
      %v689 = vadd.f32 0.0, %v688
      %v690 = vpop.f32.mrb[0].mxu0
      %691 = vmatprep.mubr.bf16.mxu0 0
      %692 = vmatmul.mubr.bf16.gmra.mrb[0].mxu0 %v643
      %v693 = vpop.f32.mrb[0].mxu0
      %v694 = vadd.f32 0.0, %v693
      %v695 = vpop.f32.mrb[0].mxu0
      %v696 = vpop.f32.mrb[0].mxu0
      %v697 = vadd.f32 0.0, %v696
      %v698 = vpop.f32.mrb[0].mxu0
      %699 = vmatprep.mubr.bf16.mxu0 0
      %700 = vmatmul.mubr.bf16.gmra.mrb[0].mxu0 %v646
      %v701 = vpop.f32.mrb[0].mxu0
      %v702 = vadd.f32 0.0, %v701
      %v703 = vpop.f32.mrb[0].mxu0
      %v704 = vpop.f32.mrb[0].mxu0
      %v705 = vadd.f32 0.0, %v704
      %v706 = vpop.f32.mrb[0].mxu0
      %707 = vmatprep.mubr.bf16.mxu0 0
      %708 = vmatmul.mubr.bf16.gmra.mrb[0].mxu0 %v649
      %v709 = vpop.f32.mrb[0].mxu0
      %v710 = vadd.f32 0.0, %v709
      %v711 = vpop.f32.mrb[0].mxu0
      %v712 = vpop.f32.mrb[0].mxu0
      %v713 = vadd.f32 0.0, %v712
      %v714 = vpop.f32.mrb[0].mxu0
      %715 = vdwg.mxu0
      %v716 = vld [vmem:[%s394] sm:$0xf]
      %v717 = vld [vmem:[%s394 + $0x4] sm:$0xf]
      %v718 = vld [vmem:[%s394 + $0x8] sm:$0xf]
      %v719 = vld [vmem:[%s394 + $0xc] sm:$0xf]
      %v720 = vld [vmem:[%s394 + $0x10] sm:$0xf]
      %v721 = vld [vmem:[%s394 + $0x14] sm:$0xf]
      %v722 = vld [vmem:[%s394 + $0x18] sm:$0xf]
      %v723 = vld [vmem:[%s394 + $0x1c] sm:$0xf]
      %v724 = vunpack.c.l.bf16 %v716
      %v725 = vunpack.c.l.bf16 %v717
      %v726 = vunpack.c.l.bf16 %v718
      %v727 = vunpack.c.l.bf16 %v719
      %v728 = vunpack.c.l.bf16 %v720
      %v729 = vunpack.c.l.bf16 %v721
      %v730 = vunpack.c.l.bf16 %v722
      %v731 = vunpack.c.l.bf16 %v723
      %v732 = vadd.f32 %v686, %v724
      %v733 = vadd.f32 %v689, %v725
      %v734 = vadd.f32 %v694, %v726
      %v735 = vadd.f32 %v697, %v727
      %v736 = vadd.f32 %v702, %v728
      %v737 = vadd.f32 %v705, %v729
      %v738 = vadd.f32 %v710, %v730
      %v739 = vadd.f32 %v713, %v731
      %v740 = vld [vmem:[%s404] sm:$0xf]
      %v741 = vld [vmem:[%s404 + $0x4] sm:$0xf]
      %v742 = vld [vmem:[%s404 + $0x8] sm:$0xf]
      %v743 = vld [vmem:[%s404 + $0xc] sm:$0xf]
      %v744 = vld [vmem:[%s404 + $0x10] sm:$0xf]
      %v745 = vld [vmem:[%s404 + $0x14] sm:$0xf]
      %v746 = vld [vmem:[%s404 + $0x18] sm:$0xf]
      %v747 = vld [vmem:[%s404 + $0x1c] sm:$0xf]
      %v748 = vunpack.c.l.bf16 %v740
      %v749 = vunpack.c.l.bf16 %v741
      %v750 = vunpack.c.l.bf16 %v742
      %v751 = vunpack.c.l.bf16 %v743
      %v752 = vunpack.c.l.bf16 %v744
      %v753 = vunpack.c.l.bf16 %v745
      %v754 = vunpack.c.l.bf16 %v746
      %v755 = vunpack.c.l.bf16 %v747
      %v756 = vadd.f32 %v732, %v748
      %v757 = vadd.f32 %v733, %v749
      %v758 = vadd.f32 %v734, %v750
      %v759 = vadd.f32 %v735, %v751
      %v760 = vadd.f32 %v736, %v752
      %v761 = vadd.f32 %v737, %v753
      %v762 = vadd.f32 %v738, %v754
      %v763 = vadd.f32 %v739, %v755
      %v764 = vadd.f32 %v756, %v419
      %v765 = vadd.f32 %v757, %v419
      %v766 = vadd.f32 %v758, %v419
      %v767 = vadd.f32 %v759, %v419
      %v768 = vadd.f32 %v760, %v419
      %v769 = vadd.f32 %v761, %v419
      %v770 = vadd.f32 %v762, %v419
      %v771 = vadd.f32 %v763, %v419
      %v773 = vcombine.high %v468, %v468
      %v775 = vunpack.c.l.s4 1966171168
      %v776 = vunpack.c.0.s8 %v775
      %v777 = vlaneseq
      %v778 = vshrl.u32 %v777, 7
      %v779 = vsub.s32 %v776, %v778
      %v780 = vrot.slane %v468, %v779
      %v782 = vunpack.c.l.s4 1966171168
      %v783 = vunpack.c.0.s8 %v782
      %v784 = vlaneseq
      %v785 = vshrl.u32 %v784, 7
      %v786 = vsub.s32 %v783, %v785
      %v787 = vrot.slane %v773, %v786
      %v788 = vcombine.high %v780, %v780
      %v789 = vcombine.high %v787, %v787
      %v791 = vunpack.c.l.s4 1966171168
      %v792 = vunpack.c.0.s8 %v791
      %v793 = vlaneseq
      %v794 = vshrl.u32 %v793, 7
      %v795 = vsub.s32 %v792, %v794
      %v796 = vrot.slane %v780, %v795
      %v798 = vunpack.c.l.s4 1966171168
      %v799 = vunpack.c.0.s8 %v798
      %v800 = vlaneseq
      %v801 = vshrl.u32 %v800, 7
      %v802 = vsub.s32 %v799, %v801
      %v803 = vrot.slane %v787, %v802
      %v805 = vunpack.c.l.s4 1966171168
      %v806 = vunpack.c.0.s8 %v805
      %v807 = vlaneseq
      %v808 = vshrl.u32 %v807, 7
      %v809 = vsub.s32 %v806, %v808
      %v810 = vrot.slane %v788, %v809
      %v812 = vunpack.c.l.s4 1966171168
      %v813 = vunpack.c.0.s8 %v812
      %v814 = vlaneseq
      %v815 = vshrl.u32 %v814, 7
      %v816 = vsub.s32 %v813, %v815
      %v817 = vrot.slane %v789, %v816
      %v818 = vcombine.high %v796, %v796
      %v819 = vcombine.high %v803, %v803
      %v820 = vcombine.high %v810, %v810
      %v821 = vcombine.high %v817, %v817
      %v822 = vlaneseq
      %v823 = vshrl.u32 %v822, 7
      %v824 = vsub.s32 0, %v823
      %v825 = vrot.slane %v796, %v824
      %v826 = vlaneseq
      %v827 = vshrl.u32 %v826, 7
      %v828 = vsub.s32 0, %v827
      %v829 = vrot.slane %v810, %v828
      %v830 = vlaneseq
      %v831 = vshrl.u32 %v830, 7
      %v832 = vsub.s32 0, %v831
      %v833 = vrot.slane %v818, %v832
      %v834 = vlaneseq
      %v835 = vshrl.u32 %v834, 7
      %v836 = vsub.s32 0, %v835
      %v837 = vrot.slane %v820, %v836
      %v838 = vlaneseq
      %v839 = vshrl.u32 %v838, 7
      %v840 = vsub.s32 0, %v839
      %v841 = vrot.slane %v803, %v840
      %v842 = vlaneseq
      %v843 = vshrl.u32 %v842, 7
      %v844 = vsub.s32 0, %v843
      %v845 = vrot.slane %v817, %v844
      %v846 = vlaneseq
      %v847 = vshrl.u32 %v846, 7
      %v848 = vsub.s32 0, %v847
      %v849 = vrot.slane %v819, %v848
      %v850 = vlaneseq
      %v851 = vshrl.u32 %v850, 7
      %v852 = vsub.s32 0, %v851
      %v853 = vrot.slane %v821, %v852
      %v862 = vsub.f32 %v764, %v825
      %v863 = vsub.f32 %v765, %v829
      %v864 = vsub.f32 %v766, %v833
      %v865 = vsub.f32 %v767, %v837
      %v866 = vsub.f32 %v768, %v841
      %v867 = vsub.f32 %v769, %v845
      %v868 = vsub.f32 %v770, %v849
      %v869 = vsub.f32 %v771, %v853
      %v870 = vpack.c.bf16 %v862, %v862
      %v871 = vpack.c.bf16 %v863, %v863
      %v872 = vpack.c.bf16 %v864, %v864
      %v873 = vpack.c.bf16 %v865, %v865
      %v874 = vpack.c.bf16 %v866, %v866
      %v875 = vpack.c.bf16 %v867, %v867
      %v876 = vpack.c.bf16 %v868, %v868
      %v877 = vpack.c.bf16 %v869, %v869
      %vm878 = vcmask 257024
      %879 = vst.msk [vmem:[%s414] sm:$0xf] %vm878, %v870
      %880 = vst.msk [vmem:[%s414 + $0x4] sm:$0xf] %vm878, %v871
      %881 = vst.msk [vmem:[%s414 + $0x8] sm:$0xf] %vm878, %v872
      %882 = vst.msk [vmem:[%s414 + $0xc] sm:$0xf] %vm878, %v873
      %883 = vst.msk [vmem:[%s414 + $0x10] sm:$0xf] %vm878, %v874
      %884 = vst.msk [vmem:[%s414 + $0x14] sm:$0xf] %vm878, %v875
      %885 = vst.msk [vmem:[%s414 + $0x18] sm:$0xf] %vm878, %v876
      %886 = vst.msk [vmem:[%s414 + $0x1c] sm:$0xf] %vm878, %v877
      %s887 = smul.u32 8, %s23
      %p888 = scmp.lt.s32.totalorder %s22, 1
      %s889 = scalar_select %p888, %s22, 1
      %p890 = scmp.lt.s32.totalorder %s887, 7
      %s891 = scalar_select %p890, %s887, 7
      %s892 = smul.addr %s889, 8
      %s893 = sadd.s32 %s891, %s892
      %s894 = smul.addr %s893, 4
      %s895 = scalar_lea.vmem %s7, %s894
      // Predicated region
      $region49: #{minifold_forward.9} parent=47 // pred_check
        %p896 = pneg %p228
      $region50: #{minifold_forward.9} parent=47 // pred_check_branch
        %898 = sbr.rel (%p896) target = $region52
      $region51: #{minifold_forward.9} parent=47 // pred_region
        %s899 = smul.u32 8, %s23
      $region52: #{minifold_forward.9} parent=47 // pred_fallthru
        _
    $region48: #{minifold_forward.9} parent=5 // pred_fallthru
      _
    %p900 = scmp.le.s32.totalorder 2, %s13
    // Predicated region
    $region53: #{minifold_forward.9} parent=5 // pred_check
      %p901 = pneg %p900
    $region54: #{minifold_forward.9} parent=5 // pred_check_branch
      %903 = sbr.rel (%p901) target = $region56
    $region55: #{minifold_forward.9} parent=5 // pred_region
      %s904 = ssub.s32 %s13, 2
      // Predicated region
      $region57: #{minifold_forward.9} parent=55 // pred_check
        %p905 = pneg %p234
      $region58: #{minifold_forward.9} parent=55 // pred_check_branch
        %907 = sbr.rel (%p905) target = $region60
      $region59: #{minifold_forward.9} parent=55 // pred_region
        %s908 = smul.u32 8, %s25
        %p909 = scmp.lt.s32.totalorder %s24, 1
        %s910 = scalar_select %p909, %s24, 1
        %p911 = scmp.lt.s32.totalorder %s908, 7
        %s912 = scalar_select %p911, %s908, 7
        %s913 = smul.addr %s910, 8
        %s914 = sadd.s32 %s912, %s913
        %s915 = smul.addr %s914, 4
        %s916 = scalar_lea.vmem %s7, %s915
      $region60: #{minifold_forward.9} parent=55 // pred_fallthru
        _
    $region56: #{minifold_forward.9} parent=5 // pred_fallthru
      _
  $region6: #{minifold_forward.9} parent=0 // loop_footer
    %s17 = sadd.s32 1, %s13
  $region7: #{minifold_forward.9} parent=0 // loop_footer_branch
    %12 = sbr.rel target = $region3
  $region8: #{minifold_forward.9} parent=0 // loop_exit
    _

// kernel: minifold_forward.10
$region0: #{minifold_forward.10}
  #allocation0 [shape = 'u32[]', space=smem, size = 0x4, offset = 0x4, fixed_abs, tag = 'smem constant byte address 0x4 - core index']
  #allocation1 [shape = 'u32[144,128]{1,0:T(1,128)}', space=vmem, size = 0x12000, scoped, tag = 'internal scratch']
  %s0 = inlined_call_operand.vmem [shape: bf16[2,8,8,32], index: 0, kind: input, shape index: {}, may-alias: {0,1}]
  %s1 = inlined_call_operand.vmem [shape: bf16[2,8,8,32], index: 1, kind: input, shape index: {}, may-alias: {0,1}]
  %s2 = inlined_call_operand.vmem [shape: bf16[32,32], index: 2, kind: input, shape index: {}]
  %s3 = inlined_call_operand.vmem [shape: f32[1,32], index: 3, kind: input, shape index: {}]
  %s4 = inlined_call_operand.vmem [shape: bf16[32,16], index: 4, kind: input, shape index: {}]
  %s5 = inlined_call_operand.vmem [shape: f32[1,16], index: 5, kind: input, shape index: {}]
  %s6 = inlined_call_operand.hbm [shape: f32[2,8,8,16], index: 6, kind: output, shape index: {0}]
  %s7 = inlined_call_operand.vmem [shape: bf16[2,8,8,16], index: 7, kind: output, shape index: {1}]
  %8 = xla_tuple %s6, %s7
  %s9 = sld [smem:[#allocation0]]
  $region65: #{minifold_forward.10} parent=0
    _
  %s11 = ssub.s32 1, %s9
  %s12 = scalar_select 0, %s11, %s9
  $region1: #{minifold_forward.10} parent=0
    #allocation2 [shape = 'u8[65536]{0}', space=vmem, size = 0x10000, scoped, tag = 'output window, operand 0']
    #allocation3 [shape = 's32[2]{0}', space=sflag, size = 0x8, scoped, tag = 'scoped memory for minifold_forward.10']
    %13 = vsyncpa [#allocation3], 0
    %s14 = scalar_lea.sflag [#allocation3], 1
    %15 = vsyncpa %s14, 0
    loop: start=0, step=1, limit=4
    $region2: #{minifold_forward.10} parent=1 // loop_pre_header
      _
    $region3: #{minifold_forward.10} parent=1 // loop_header
      %s17 = sphi 0, %s21
      %p18 = scmp.ge.s32.totalorder %s17, 4
      %s24 = sphi 0, %s43
      %s25 = sphi 0, %s39
      %s26 = sphi 0, %s35
      %s27 = sphi 0, %s24
      %s28 = sphi 0, %s25
      %s29 = sphi 0, %s26
      %s30 = sphi 0, %s27
      %s31 = sphi 0, %s28
      %s32 = sphi 0, %s29
      %s50 = sphi 0, %s52
      %s53 = sphi 0, %s50
      %s54 = sphi 0, %s53
      %s70 = sphi 0, %s54
      %s80 = sphi 0, %s82
      %s83 = sphi 0, %s80
      %s84 = sphi 0, %s83
      %s100 = sphi 0, %s84
      %s104 = sphi 0, %s104
      %s106 = sphi 0, %s104
      %s107 = sphi 0, %s106
      %s121 = sphi 0, %s107
      %s125 = sphi 0, %s125
      %s127 = sphi 0, %s125
      %s128 = sphi 0, %s127
      %s142 = sphi 0, %s128
      %s146 = sphi 0, %s146
      %s148 = sphi 0, %s146
      %s149 = sphi 0, %s148
      %s163 = sphi 0, %s149
      %s167 = sphi 0, %s167
      %s169 = sphi 0, %s167
      %s170 = sphi 0, %s169
      %s184 = sphi 0, %s170
      %s194 = sphi 0, %s196
      %s197 = sphi 0, %s194
      %s198 = sphi 0, %s197
      %s214 = sphi 0, %s198
      %s224 = sphi 0, %s226
      %s227 = sphi 0, %s224
      %s228 = sphi 0, %s227
      %s244 = sphi 0, %s228
    $region4: #{minifold_forward.10} parent=1 // loop_header_branch
      %20 = sbr.rel (%p18) target = $region8
    $region5: #{minifold_forward.10} parent=1 // loop_body
      %s22 = ssub.s32 %s17, 1
      %s23 = ssub.s32 %s17, 2
      %s33 = sadd.s32 1, %s26
      %p34 = scmp.ge.s32.totalorder %s33, 1
      %s35 = scalar_select %p34, 0, %s33
      %s36 = sadd.s32 1, %s25
      %s37 = scalar_select %p34, %s36, %s25
      %p38 = scmp.ge.s32.totalorder %s37, 1
      %s39 = scalar_select %p38, 0, %s37
      %s40 = sadd.s32 1, %s24
      %s41 = scalar_select %p38, %s40, %s24
      %p42 = scmp.ge.s32.totalorder %s41, 2
      %s43 = scalar_select %p42, 0, %s41
      %s44 = ssub.s32 %s24, %s43
      %s45 = ssub.s32 %s25, %s39
      %s46 = sor.u32 %s44, %s45
      %s47 = ssub.s32 %s26, %s35
      %s48 = sor.u32 %s46, %s47
      %p49 = scmp.eq.s32.totalorder %s48, 0
      %s51 = sadd.s32 %s50, 1
      %s52 = scalar_select %p49, %s50, %s51
      %p55 = pneg %p49
      %p56 = scmp.eq.s32.totalorder %s17, 1
      %p57 = por %p55, %p56
      %p58 = scmp.ne.s32.totalorder %s50, %s53
      %p59 = scmp.eq.s32.totalorder %s17, 0
      %p60 = por %p58, %p59
      %p61 = scmp.ne.s32.totalorder %s50, %s53
      %p62 = scmp.eq.s32.totalorder %s22, 1
      %p63 = por %p61, %p62
      %p64 = scmp.ne.s32.totalorder %s53, %s54
      %p65 = scmp.eq.s32.totalorder %s22, 0
      %p66 = por %p64, %p65
      %p67 = scmp.ne.s32.totalorder %s53, %s54
      %p68 = scmp.eq.s32.totalorder %s23, 1
      %p69 = por %p67, %p68
      %p71 = scmp.ne.s32.totalorder %s54, %s70
      %p72 = scmp.eq.s32.totalorder %s23, 0
      %p73 = por %p71, %p72
      %s74 = ssub.s32 %s24, %s43
      %s75 = ssub.s32 %s26, %s35
      %s76 = sor.u32 %s74, %s75
      %s77 = ssub.s32 %s25, %s39
      %s78 = sor.u32 %s76, %s77
      %p79 = scmp.eq.s32.totalorder %s78, 0
      %s81 = sadd.s32 %s80, 1
      %s82 = scalar_select %p79, %s80, %s81
      %p85 = pneg %p79
      %p86 = scmp.eq.s32.totalorder %s17, 1
      %p87 = por %p85, %p86
      %p88 = scmp.ne.s32.totalorder %s80, %s83
      %p89 = scmp.eq.s32.totalorder %s17, 0
      %p90 = por %p88, %p89
      %p91 = scmp.ne.s32.totalorder %s80, %s83
      %p92 = scmp.eq.s32.totalorder %s22, 1
      %p93 = por %p91, %p92
      %p94 = scmp.ne.s32.totalorder %s83, %s84
      %p95 = scmp.eq.s32.totalorder %s22, 0
      %p96 = por %p94, %p95
      %p97 = scmp.ne.s32.totalorder %s83, %s84
      %p98 = scmp.eq.s32.totalorder %s23, 1
      %p99 = por %p97, %p98
      %p101 = scmp.ne.s32.totalorder %s84, %s100
      %p102 = scmp.eq.s32.totalorder %s23, 0
      %p103 = por %p101, %p102
      %s105 = sadd.s32 %s104, 1
      %p108 = scmp.eq.s32.totalorder %s17, 1
      %p109 = scmp.ne.s32.totalorder %s104, %s106
      %p110 = scmp.eq.s32.totalorder %s17, 0
      %p111 = por %p109, %p110
      %p112 = scmp.ne.s32.totalorder %s104, %s106
      %p113 = scmp.eq.s32.totalorder %s22, 1
      %p114 = por %p112, %p113
      %p115 = scmp.ne.s32.totalorder %s106, %s107
      %p116 = scmp.eq.s32.totalorder %s22, 0
      %p117 = por %p115, %p116
      %p118 = scmp.ne.s32.totalorder %s106, %s107
      %p119 = scmp.eq.s32.totalorder %s23, 1
      %p120 = por %p118, %p119
      %p122 = scmp.ne.s32.totalorder %s107, %s121
      %p123 = scmp.eq.s32.totalorder %s23, 0
      %p124 = por %p122, %p123
      %s126 = sadd.s32 %s125, 1
      %p129 = scmp.eq.s32.totalorder %s17, 1
      %p130 = scmp.ne.s32.totalorder %s125, %s127
      %p131 = scmp.eq.s32.totalorder %s17, 0
      %p132 = por %p130, %p131
      %p133 = scmp.ne.s32.totalorder %s125, %s127
      %p134 = scmp.eq.s32.totalorder %s22, 1
      %p135 = por %p133, %p134
      %p136 = scmp.ne.s32.totalorder %s127, %s128
      %p137 = scmp.eq.s32.totalorder %s22, 0
      %p138 = por %p136, %p137
      %p139 = scmp.ne.s32.totalorder %s127, %s128
      %p140 = scmp.eq.s32.totalorder %s23, 1
      %p141 = por %p139, %p140
      %p143 = scmp.ne.s32.totalorder %s128, %s142
      %p144 = scmp.eq.s32.totalorder %s23, 0
      %p145 = por %p143, %p144
      %s147 = sadd.s32 %s146, 1
      %p150 = scmp.eq.s32.totalorder %s17, 1
      %p151 = scmp.ne.s32.totalorder %s146, %s148
      %p152 = scmp.eq.s32.totalorder %s17, 0
      %p153 = por %p151, %p152
      %p154 = scmp.ne.s32.totalorder %s146, %s148
      %p155 = scmp.eq.s32.totalorder %s22, 1
      %p156 = por %p154, %p155
      %p157 = scmp.ne.s32.totalorder %s148, %s149
      %p158 = scmp.eq.s32.totalorder %s22, 0
      %p159 = por %p157, %p158
      %p160 = scmp.ne.s32.totalorder %s148, %s149
      %p161 = scmp.eq.s32.totalorder %s23, 1
      %p162 = por %p160, %p161
      %p164 = scmp.ne.s32.totalorder %s149, %s163
      %p165 = scmp.eq.s32.totalorder %s23, 0
      %p166 = por %p164, %p165
      %s168 = sadd.s32 %s167, 1
      %p171 = scmp.eq.s32.totalorder %s17, 1
      %p172 = scmp.ne.s32.totalorder %s167, %s169
      %p173 = scmp.eq.s32.totalorder %s17, 0
      %p174 = por %p172, %p173
      %p175 = scmp.ne.s32.totalorder %s167, %s169
      %p176 = scmp.eq.s32.totalorder %s22, 1
      %p177 = por %p175, %p176
      %p178 = scmp.ne.s32.totalorder %s169, %s170
      %p179 = scmp.eq.s32.totalorder %s22, 0
      %p180 = por %p178, %p179
      %p181 = scmp.ne.s32.totalorder %s169, %s170
      %p182 = scmp.eq.s32.totalorder %s23, 1
      %p183 = por %p181, %p182
      %p185 = scmp.ne.s32.totalorder %s170, %s184
      %p186 = scmp.eq.s32.totalorder %s23, 0
      %p187 = por %p185, %p186
      %s188 = ssub.s32 %s24, %s43
      %s189 = ssub.s32 %s25, %s39
      %s190 = sor.u32 %s188, %s189
      %s191 = ssub.s32 %s26, %s35
      %s192 = sor.u32 %s190, %s191
      %p193 = scmp.eq.s32.totalorder %s192, 0
      %s195 = sadd.s32 %s194, 1
      %s196 = scalar_select %p193, %s194, %s195
      %p199 = pneg %p193
      %p200 = scmp.eq.s32.totalorder %s17, 1
      %p201 = por %p199, %p200
      %p202 = scmp.ne.s32.totalorder %s194, %s197
      %p203 = scmp.eq.s32.totalorder %s17, 0
      %p204 = por %p202, %p203
      %p205 = scmp.ne.s32.totalorder %s194, %s197
      %p206 = scmp.eq.s32.totalorder %s22, 1
      %p207 = por %p205, %p206
      %p208 = scmp.ne.s32.totalorder %s197, %s198
      %p209 = scmp.eq.s32.totalorder %s22, 0
      %p210 = por %p208, %p209
      %p211 = scmp.ne.s32.totalorder %s197, %s198
      %p212 = scmp.eq.s32.totalorder %s23, 1
      %p213 = por %p211, %p212
      %p215 = scmp.ne.s32.totalorder %s198, %s214
      %p216 = scmp.eq.s32.totalorder %s23, 0
      %p217 = por %p215, %p216
      %s218 = ssub.s32 %s24, %s43
      %s219 = ssub.s32 %s25, %s39
      %s220 = sor.u32 %s218, %s219
      %s221 = ssub.s32 %s26, %s35
      %s222 = sor.u32 %s220, %s221
      %p223 = scmp.eq.s32.totalorder %s222, 0
      %s225 = sadd.s32 %s224, 1
      %s226 = scalar_select %p223, %s224, %s225
      %p229 = pneg %p223
      %p230 = scmp.eq.s32.totalorder %s17, 1
      %p231 = por %p229, %p230
      %p232 = scmp.ne.s32.totalorder %s224, %s227
      %p233 = scmp.eq.s32.totalorder %s17, 0
      %p234 = por %p232, %p233
      %p235 = scmp.ne.s32.totalorder %s224, %s227
      %p236 = scmp.eq.s32.totalorder %s22, 1
      %p237 = por %p235, %p236
      %p238 = scmp.ne.s32.totalorder %s227, %s228
      %p239 = scmp.eq.s32.totalorder %s22, 0
      %p240 = por %p238, %p239
      %p241 = scmp.ne.s32.totalorder %s227, %s228
      %p242 = scmp.eq.s32.totalorder %s23, 1
      %p243 = por %p241, %p242
      %p245 = scmp.ne.s32.totalorder %s228, %s244
      %p246 = scmp.eq.s32.totalorder %s23, 0
      %p247 = por %p245, %p246
      %p248 = scmp.le.s32.totalorder 1, %s17
      %p249 = scmp.lt.s32.totalorder %s17, 3
      %p250 = pnand %p248, %p249
      %p251 = pneg %p250
      // Predicated region
      $region9: #{minifold_forward.10} parent=5 // pred_check
        _
      $region10: #{minifold_forward.10} parent=5 // pred_check_branch
        %253 = sbr.rel (%p250) target = $region12
      $region11: #{minifold_forward.10} parent=5 // pred_region
        %s254 = ssub.s32 %s17, 1
        // Predicated region
        $region13: #{minifold_forward.10} parent=11 // pred_check
          %p255 = pneg %p117
        $region14: #{minifold_forward.10} parent=11 // pred_check_branch
          %257 = sbr.rel (%p255) target = $region16
        $region15: #{minifold_forward.10} parent=11 // pred_region
          _
        $region16: #{minifold_forward.10} parent=11 // pred_fallthru
          _
        // Predicated region
        $region17: #{minifold_forward.10} parent=11 // pred_check
          %p258 = pneg %p138
        $region18: #{minifold_forward.10} parent=11 // pred_check_branch
          %260 = sbr.rel (%p258) target = $region20
        $region19: #{minifold_forward.10} parent=11 // pred_region
          _
        $region20: #{minifold_forward.10} parent=11 // pred_fallthru
          _
        // Predicated region
        $region21: #{minifold_forward.10} parent=11 // pred_check
          %p261 = pneg %p159
        $region22: #{minifold_forward.10} parent=11 // pred_check_branch
          %263 = sbr.rel (%p261) target = $region24
        $region23: #{minifold_forward.10} parent=11 // pred_region
          _
        $region24: #{minifold_forward.10} parent=11 // pred_fallthru
          _
        // Predicated region
        $region25: #{minifold_forward.10} parent=11 // pred_check
          %p264 = pneg %p180
        $region26: #{minifold_forward.10} parent=11 // pred_check_branch
          %266 = sbr.rel (%p264) target = $region28
        $region27: #{minifold_forward.10} parent=11 // pred_region
          _
        $region28: #{minifold_forward.10} parent=11 // pred_fallthru
          _
      $region12: #{minifold_forward.10} parent=5 // pred_fallthru
        _
      %p267 = scmp.lt.s32.totalorder %s17, 2
      // Predicated region
      $region29: #{minifold_forward.10} parent=5 // pred_check
        %p268 = pneg %p267
      $region30: #{minifold_forward.10} parent=5 // pred_check_branch
        %270 = sbr.rel (%p268) target = $region32
      $region31: #{minifold_forward.10} parent=5 // pred_region
        // Predicated region
        $region33: #{minifold_forward.10} parent=31 // pred_check
          %p271 = pneg %p60
        $region34: #{minifold_forward.10} parent=31 // pred_check_branch
          %273 = sbr.rel (%p271) target = $region36
        $region35: #{minifold_forward.10} parent=31 // pred_region
          %s274 = smul.u32 8, %s25
          %p275 = scmp.lt.s32.totalorder %s24, 1
          %s276 = scalar_select %p275, %s24, 1
          %p277 = scmp.lt.s32.totalorder %s274, 7
          %s278 = scalar_select %p277, %s274, 7
          %p279 = scmp.lt.s32.totalorder %s26, 0
          %s280 = scalar_select %p279, %s26, 0
          %s281 = sadd.s32 %s280, %s278
          %s282 = smul.addr %s276, 8
          %s283 = sadd.s32 %s281, %s282
          %s284 = smul.addr %s283, 4
          %s285 = scalar_lea.vmem %s0, %s284
          %s286 = smul.u32 8, %s25
        $region36: #{minifold_forward.10} parent=31 // pred_fallthru
          _
        // Predicated region
        $region37: #{minifold_forward.10} parent=31 // pred_check
          %p287 = pneg %p90
        $region38: #{minifold_forward.10} parent=31 // pred_check_branch
          %289 = sbr.rel (%p287) target = $region40
        $region39: #{minifold_forward.10} parent=31 // pred_region
          %s290 = smul.u32 8, %s26
          %p291 = scmp.lt.s32.totalorder %s24, 1
          %s292 = scalar_select %p291, %s24, 1
          %p293 = scmp.lt.s32.totalorder %s290, 7
          %s294 = scalar_select %p293, %s290, 7
          %p295 = scmp.lt.s32.totalorder %s25, 0
          %s296 = scalar_select %p295, %s25, 0
          %s297 = sadd.s32 %s296, %s294
          %s298 = smul.addr %s292, 8
          %s299 = sadd.s32 %s297, %s298
          %s300 = smul.addr %s299, 4
          %s301 = scalar_lea.vmem %s1, %s300
          %s302 = smul.u32 8, %s26
        $region40: #{minifold_forward.10} parent=31 // pred_fallthru
          _
      $region32: #{minifold_forward.10} parent=5 // pred_fallthru
        _
      %p303 = scmp.le.s32.totalorder 1, %s17
      %p304 = scmp.lt.s32.totalorder %s17, 3
      %p305 = pnand %p303, %p304
      %p306 = pneg %p305
      // Predicated region
      $region41: #{minifold_forward.10} parent=5 // pred_check
        _
      $region42: #{minifold_forward.10} parent=5 // pred_check_branch
        %308 = sbr.rel (%p305) target = $region44
      $region43: #{minifold_forward.10} parent=5 // pred_region
        %s309 = ssub.s32 %s17, 1
        %s310 = smul.u32 8, %s28
        %p311 = scmp.lt.s32.totalorder %s27, 1
        %s312 = scalar_select %p311, %s27, 1
        %p313 = scmp.lt.s32.totalorder %s310, 7
        %s314 = scalar_select %p313, %s310, 7
        %p315 = scmp.lt.s32.totalorder %s29, 0
        %s316 = scalar_select %p315, %s29, 0
        %s317 = sadd.s32 %s316, %s314
        %s318 = smul.addr %s312, 8
        %s319 = sadd.s32 %s317, %s318
        %s320 = smul.addr %s319, 4
        %s321 = scalar_lea.vmem %s0, %s320
        %p322 = pneg %p66
        %p323 = pneg %p63
        %s324 = smul.u32 8, %s29
        %p325 = scmp.lt.s32.totalorder %s27, 1
        %s326 = scalar_select %p325, %s27, 1
        %p327 = scmp.lt.s32.totalorder %s324, 7
        %s328 = scalar_select %p327, %s324, 7
        %p329 = scmp.lt.s32.totalorder %s28, 0
        %s330 = scalar_select %p329, %s28, 0
        %s331 = sadd.s32 %s330, %s328
        %s332 = smul.addr %s326, 8
        %s333 = sadd.s32 %s331, %s332
        %s334 = smul.addr %s333, 4
        %s335 = scalar_lea.vmem %s1, %s334
        %p336 = pneg %p96
        %p337 = pneg %p93
        %p338 = pneg %p117
        %p339 = pneg %p114
        %p340 = pneg %p138
        %p341 = pneg %p135
        %p342 = pneg %p159
        %p343 = pneg %p156
        %p344 = pneg %p180
        %p345 = pneg %p177
        %p346 = pneg %p210
        %p347 = pneg %p207
        %s348 = sand.u32 %s197, 1
        %s349 = scalar_lea.sflag [#allocation3], %s348
        %s350 = sand.u32 %s197, 1
        %s351 = smul.addr %s350, 64
        %s352 = scalar_lea.vmem [#allocation2], %s351
        %p353 = pneg %p240
        %p354 = pneg %p237
        %s355 = smul.u32 8, %s28
        %p356 = scmp.lt.s32.totalorder %s27, 1
        %s357 = scalar_select %p356, %s27, 1
        %p358 = scmp.lt.s32.totalorder %s355, 7
        %s359 = scalar_select %p358, %s355, 7
        %p360 = scmp.lt.s32.totalorder %s29, 0
        %s361 = scalar_select %p360, %s29, 0
        %s362 = sadd.s32 %s361, %s359
        %s363 = smul.addr %s357, 8
        %s364 = sadd.s32 %s362, %s363
        %s365 = smul.addr %s364, 4
        %s366 = scalar_lea.vmem %s7, %s365
        %s367 = smul.u32 8, %s28
        %p368 = scmp.lt.s32.totalorder %s27, 1
        %s369 = scalar_select %p368, %s27, 1
        %p370 = scmp.lt.s32.totalorder %s367, 7
        %s371 = scalar_select %p370, %s367, 7
        %p372 = scmp.lt.s32.totalorder %s29, 0
        %s373 = scalar_select %p372, %s29, 0
        %s374 = sadd.s32 %s373, %s371
        %s375 = smul.addr %s369, 8
        %s376 = sadd.s32 %s374, %s375
        %s377 = smul.addr %s376, 4
        %s378 = scalar_lea.vmem %s0, %s377
        %s379 = smul.u32 8, %s28
        %s380 = smul.u32 8, %s29
        %p381 = scmp.lt.s32.totalorder %s27, 1
        %s382 = scalar_select %p381, %s27, 1
        %p383 = scmp.lt.s32.totalorder %s380, 7
        %s384 = scalar_select %p383, %s380, 7
        %p385 = scmp.lt.s32.totalorder %s28, 0
        %s386 = scalar_select %p385, %s28, 0
        %s387 = sadd.s32 %s386, %s384
        %s388 = smul.addr %s382, 8
        %s389 = sadd.s32 %s387, %s388
        %s390 = smul.addr %s389, 4
        %s391 = scalar_lea.vmem %s1, %s390
        %s392 = smul.u32 8, %s29
        %s393 = smul.u32 8, %s28
        %s394 = smul.u32 8, %s28
        %p395 = scmp.lt.s32.totalorder %s27, 1
        %s396 = scalar_select %p395, %s27, 1
        %p397 = scmp.lt.s32.totalorder %s394, 7
        %s398 = scalar_select %p397, %s394, 7
        %p399 = scmp.lt.s32.totalorder %s29, 0
        %s400 = scalar_select %p399, %s29, 0
        %s401 = sadd.s32 %s400, %s398
        %s402 = smul.addr %s396, 8
        %s403 = sadd.s32 %s401, %s402
        %s404 = smul.addr %s403, 4
        %s405 = scalar_lea.vmem %s7, %s404
        %s406 = smul.u32 8, %s28
        %v408 = vld [vmem:[%s378] sm:$0xf]
        %v409 = vld [vmem:[%s378 + $0x4] sm:$0xf]
        %v410 = vld [vmem:[%s378 + $0x8] sm:$0xf]
        %v411 = vld [vmem:[%s378 + $0xc] sm:$0xf]
        %v412 = vld [vmem:[%s378 + $0x10] sm:$0xf]
        %v413 = vld [vmem:[%s378 + $0x14] sm:$0xf]
        %v414 = vld [vmem:[%s378 + $0x18] sm:$0xf]
        %v415 = vld [vmem:[%s378 + $0x1c] sm:$0xf]
        %v416 = vunpack.c.l.bf16 %v408
        %v417 = vunpack.c.l.bf16 %v409
        %v418 = vunpack.c.l.bf16 %v410
        %v419 = vunpack.c.l.bf16 %v411
        %v420 = vunpack.c.l.bf16 %v412
        %v421 = vunpack.c.l.bf16 %v413
        %v422 = vunpack.c.l.bf16 %v414
        %v423 = vunpack.c.l.bf16 %v415
        %v424 = vld [vmem:[%s391] sm:$0xf]
        %v425 = vld [vmem:[%s391 + $0x4] sm:$0xf]
        %v426 = vld [vmem:[%s391 + $0x8] sm:$0xf]
        %v427 = vld [vmem:[%s391 + $0xc] sm:$0xf]
        %v428 = vld [vmem:[%s391 + $0x10] sm:$0xf]
        %v429 = vld [vmem:[%s391 + $0x14] sm:$0xf]
        %v430 = vld [vmem:[%s391 + $0x18] sm:$0xf]
        %v431 = vld [vmem:[%s391 + $0x1c] sm:$0xf]
        %v432 = vunpack.c.l.bf16 %v424
        %v433 = vunpack.c.l.bf16 %v425
        %v434 = vunpack.c.l.bf16 %v426
        %v435 = vunpack.c.l.bf16 %v427
        %v436 = vunpack.c.l.bf16 %v428
        %v437 = vunpack.c.l.bf16 %v429
        %v438 = vunpack.c.l.bf16 %v430
        %v439 = vunpack.c.l.bf16 %v431
        %v440 = vcombine.low %v432, %v434
        %v441 = vcombine.high %v432, %v434
        %v443 = vunpack.c.l.s4 1983009808
        %v444 = vunpack.c.0.s8 %v443
        %v445 = vlaneseq
        %v446 = vshrl.u32 %v445, 7
        %v447 = vsub.s32 %v444, %v446
        %v448 = vrot.slane %v440, %v447
        %v450 = vunpack.c.l.s4 1983009808
        %v451 = vunpack.c.0.s8 %v450
        %v452 = vlaneseq
        %v453 = vshrl.u32 %v452, 7
        %v454 = vsub.s32 %v451, %v453
        %v455 = vrot.slane %v441, %v454
        %v456 = vcombine.low %v433, %v435
        %v457 = vcombine.high %v433, %v435
        %v459 = vunpack.c.l.s4 1983009808
        %v460 = vunpack.c.0.s8 %v459
        %v461 = vlaneseq
        %v462 = vshrl.u32 %v461, 7
        %v463 = vsub.s32 %v460, %v462
        %v464 = vrot.slane %v456, %v463
        %v466 = vunpack.c.l.s4 1983009808
        %v467 = vunpack.c.0.s8 %v466
        %v468 = vlaneseq
        %v469 = vshrl.u32 %v468, 7
        %v470 = vsub.s32 %v467, %v469
        %v471 = vrot.slane %v457, %v470
        %v472 = vcombine.low %v436, %v438
        %v473 = vcombine.high %v436, %v438
        %v475 = vunpack.c.l.s4 1983009808
        %v476 = vunpack.c.0.s8 %v475
        %v477 = vlaneseq
        %v478 = vshrl.u32 %v477, 7
        %v479 = vsub.s32 %v476, %v478
        %v480 = vrot.slane %v472, %v479
        %v482 = vunpack.c.l.s4 1983009808
        %v483 = vunpack.c.0.s8 %v482
        %v484 = vlaneseq
        %v485 = vshrl.u32 %v484, 7
        %v486 = vsub.s32 %v483, %v485
        %v487 = vrot.slane %v473, %v486
        %v488 = vcombine.low %v437, %v439
        %v489 = vcombine.high %v437, %v439
        %v491 = vunpack.c.l.s4 1983009808
        %v492 = vunpack.c.0.s8 %v491
        %v493 = vlaneseq
        %v494 = vshrl.u32 %v493, 7
        %v495 = vsub.s32 %v492, %v494
        %v496 = vrot.slane %v488, %v495
        %v498 = vunpack.c.l.s4 1983009808
        %v499 = vunpack.c.0.s8 %v498
        %v500 = vlaneseq
        %v501 = vshrl.u32 %v500, 7
        %v502 = vsub.s32 %v499, %v501
        %v503 = vrot.slane %v489, %v502
        %v504 = vcombine.low %v448, %v464
        %v505 = vcombine.high %v448, %v464
        %v507 = vunpack.c.l.s4 1934713408
        %v508 = vunpack.c.0.s8 %v507
        %v509 = vlaneseq
        %v510 = vshrl.u32 %v509, 7
        %v511 = vsub.s32 %v508, %v510
        %v512 = vrot.slane %v504, %v511
        %v514 = vunpack.c.l.s4 1934713408
        %v515 = vunpack.c.0.s8 %v514
        %v516 = vlaneseq
        %v517 = vshrl.u32 %v516, 7
        %v518 = vsub.s32 %v515, %v517
        %v519 = vrot.slane %v505, %v518
        %v520 = vcombine.low %v455, %v471
        %v521 = vcombine.high %v455, %v471
        %v523 = vunpack.c.l.s4 1934713408
        %v524 = vunpack.c.0.s8 %v523
        %v525 = vlaneseq
        %v526 = vshrl.u32 %v525, 7
        %v527 = vsub.s32 %v524, %v526
        %v528 = vrot.slane %v520, %v527
        %v530 = vunpack.c.l.s4 1934713408
        %v531 = vunpack.c.0.s8 %v530
        %v532 = vlaneseq
        %v533 = vshrl.u32 %v532, 7
        %v534 = vsub.s32 %v531, %v533
        %v535 = vrot.slane %v521, %v534
        %v536 = vcombine.low %v480, %v496
        %v537 = vcombine.high %v480, %v496
        %v539 = vunpack.c.l.s4 1934713408
        %v540 = vunpack.c.0.s8 %v539
        %v541 = vlaneseq
        %v542 = vshrl.u32 %v541, 7
        %v543 = vsub.s32 %v540, %v542
        %v544 = vrot.slane %v536, %v543
        %v546 = vunpack.c.l.s4 1934713408
        %v547 = vunpack.c.0.s8 %v546
        %v548 = vlaneseq
        %v549 = vshrl.u32 %v548, 7
        %v550 = vsub.s32 %v547, %v549
        %v551 = vrot.slane %v537, %v550
        %v552 = vcombine.low %v487, %v503
        %v553 = vcombine.high %v487, %v503
        %v555 = vunpack.c.l.s4 1934713408
        %v556 = vunpack.c.0.s8 %v555
        %v557 = vlaneseq
        %v558 = vshrl.u32 %v557, 7
        %v559 = vsub.s32 %v556, %v558
        %v560 = vrot.slane %v552, %v559
        %v562 = vunpack.c.l.s4 1934713408
        %v563 = vunpack.c.0.s8 %v562
        %v564 = vlaneseq
        %v565 = vshrl.u32 %v564, 7
        %v566 = vsub.s32 %v563, %v565
        %v567 = vrot.slane %v553, %v566
        %v568 = vcombine.low %v512, %v544
        %v569 = vcombine.high %v512, %v544
        %v570 = vcombine.low %v519, %v551
        %v571 = vcombine.high %v519, %v551
        %v572 = vcombine.low %v528, %v560
        %v573 = vcombine.high %v528, %v560
        %v574 = vcombine.low %v535, %v567
        %v575 = vcombine.high %v535, %v567
        %v576 = vadd.f32 %v416, %v568
        %v577 = vadd.f32 %v417, %v569
        %v578 = vadd.f32 %v418, %v570
        %v579 = vadd.f32 %v419, %v571
        %v580 = vadd.f32 %v420, %v572
        %v581 = vadd.f32 %v421, %v573
        %v582 = vadd.f32 %v422, %v574
        %v583 = vadd.f32 %v423, %v575
        %v584 = vpack.c.bf16 %v577, %v576
        %v585 = vpack.c.bf16 %v579, %v578
        %v586 = vpack.c.bf16 %v581, %v580
        %v587 = vpack.c.bf16 %v583, %v582
        %v588 = vld [vmem:[%s2] sm:$0xf]
        %v589 = vld [vmem:[%s2 + $0x4] sm:$0xf]
        %v590 = vld [vmem:[%s2 + $0x8] sm:$0xf]
        %v591 = vld [vmem:[%s2 + $0xc] sm:$0xf]
        %v592 = vld [vmem:[%s3] sm:$0x1]
        %v594 = vlaneseq
        %v595 = vshrl.u32 %v594, 7
        %v596 = vsub.s32 0, %v595
        %v597 = vrot.slane %v592, %v596
        %v603 = vunpack.c.l.b16 %v588
        %v604 = vunpack.c.l.b16 %v589
        %v605 = vunpack.c.l.b16 %v590
        %v606 = vunpack.c.l.b16 %v591
        %v607 = vpack.c.b16 %v604, %v603
        %v608 = vpack.c.b16 %v606, %v605
        %vm611 = vcmask 261120
        %v613 = vsel %vm611, %v584, 0
        %v616 = vsel %vm611, %v585, 0
        %v619 = vsel %vm611, %v586, 0
        %v622 = vsel %vm611, %v587, 0
        %624 = vmatprep.subr.bf16.mxu0 0
        %625 = vmatpush1.bf16.msra.mxu0 %v607
        %626 = vmatprep.subr.bf16.mxu0 0
        %627 = vmatpush1.bf16.msra.mxu0 %v608
        %628 = vmatprep.subr.bf16.mxu0 0
        %629 = vmatpush1.bf16.msra.mxu0 0
        %630 = vmatprep.subr.bf16.mxu0 0
        %631 = vmatpush1.bf16.msra.mxu0 0
        %632 = vmatprep.subr.bf16.mxu0 0
        %633 = vmatpush1.bf16.msra.mxu0 0
        %634 = vmatprep.subr.bf16.mxu0 0
        %635 = vmatpush1.bf16.msra.mxu0 0
        %636 = vmatprep.subr.bf16.mxu0 0
        %637 = vmatpush1.bf16.msra.mxu0 0
        %638 = vmatprep.subr.bf16.mxu0 0
        %639 = vmatpush1.bf16.msra.mxu0 0
        %640 = vmatprep.subr.bf16.mxu0 0
        %641 = vmatpush1.bf16.msra.mxu0 0
        %642 = vmatprep.subr.bf16.mxu0 0
        %643 = vmatpush1.bf16.msra.mxu0 0
        %644 = vmatprep.subr.bf16.mxu0 0
        %645 = vmatpush1.bf16.msra.mxu0 0
        %646 = vmatprep.subr.bf16.mxu0 0
        %647 = vmatpush1.bf16.msra.mxu0 0
        %648 = vmatprep.subr.bf16.mxu0 0
        %649 = vmatpush1.bf16.msra.mxu0 0
        %650 = vmatprep.subr.bf16.mxu0 0
        %651 = vmatpush1.bf16.msra.mxu0 0
        %652 = vmatprep.subr.bf16.mxu0 0
        %653 = vmatpush1.bf16.msra.mxu0 0
        %654 = vmatprep.subr.bf16.mxu0 0
        %655 = vmatpush1.bf16.msra.mxu0 0
        %656 = vmatprep.mubr.bf16.mxu0 0
        %657 = vmatmul.mubr.bf16.gmra.mrb[0].mxu0 %v613
        %v658 = vpop.f32.mrb[0].mxu0
        %v659 = vadd.f32 %v597, %v658
        %v660 = vpop.f32.mrb[0].mxu0
        %v661 = vpop.f32.mrb[0].mxu0
        %v662 = vadd.f32 %v597, %v661
        %v663 = vpop.f32.mrb[0].mxu0
        %664 = vmatprep.mubr.bf16.mxu0 0
        %665 = vmatmul.mubr.bf16.gmra.mrb[0].mxu0 %v616
        %v666 = vpop.f32.mrb[0].mxu0
        %v667 = vadd.f32 %v597, %v666
        %v668 = vpop.f32.mrb[0].mxu0
        %v669 = vpop.f32.mrb[0].mxu0
        %v670 = vadd.f32 %v597, %v669
        %v671 = vpop.f32.mrb[0].mxu0
        %672 = vmatprep.mubr.bf16.mxu0 0
        %673 = vmatmul.mubr.bf16.gmra.mrb[0].mxu0 %v619
        %v674 = vpop.f32.mrb[0].mxu0
        %v675 = vadd.f32 %v597, %v674
        %v676 = vpop.f32.mrb[0].mxu0
        %v677 = vpop.f32.mrb[0].mxu0
        %v678 = vadd.f32 %v597, %v677
        %v679 = vpop.f32.mrb[0].mxu0
        %680 = vmatprep.mubr.bf16.mxu0 0
        %681 = vmatmul.mubr.bf16.gmra.mrb[0].mxu0 %v622
        %v682 = vpop.f32.mrb[0].mxu0
        %v683 = vadd.f32 %v597, %v682
        %v684 = vpop.f32.mrb[0].mxu0
        %v685 = vpop.f32.mrb[0].mxu0
        %v686 = vadd.f32 %v597, %v685
        %v687 = vpop.f32.mrb[0].mxu0
        %688 = vdwg.mxu0
        %v689 = vmax.f32 %v659, 0.0
        %v690 = vmax.f32 %v662, 0.0
        %v691 = vmax.f32 %v667, 0.0
        %v692 = vmax.f32 %v670, 0.0
        %v693 = vmax.f32 %v675, 0.0
        %v694 = vmax.f32 %v678, 0.0
        %v695 = vmax.f32 %v683, 0.0
        %v696 = vmax.f32 %v686, 0.0
        %v697 = vpack.c.bf16 %v690, %v689
        %v698 = vpack.c.bf16 %v692, %v691
        %v699 = vpack.c.bf16 %v694, %v693
        %v700 = vpack.c.bf16 %v696, %v695
        %v701 = vld [vmem:[%s4] sm:$0xf]
        %v702 = vld [vmem:[%s4 + $0x4] sm:$0xf]
        %v703 = vld [vmem:[%s4 + $0x8] sm:$0xf]
        %v704 = vld [vmem:[%s4 + $0xc] sm:$0xf]
        %v705 = vld [vmem:[%s5] sm:$0x1]
        %v707 = vlaneseq
        %v708 = vshrl.u32 %v707, 7
        %v709 = vsub.s32 0, %v708
        %v710 = vrot.slane %v705, %v709
        %v716 = vunpack.c.l.b16 %v701
        %v717 = vunpack.c.l.b16 %v702
        %v718 = vunpack.c.l.b16 %v703
        %v719 = vunpack.c.l.b16 %v704
        %v720 = vpack.c.b16 %v717, %v716
        %v721 = vpack.c.b16 %v719, %v718
        %v725 = vsel %vm611, %v697, 0
        %v728 = vsel %vm611, %v698, 0
        %v731 = vsel %vm611, %v699, 0
        %v734 = vsel %vm611, %v700, 0
        %736 = vmatprep.subr.bf16.mxu0 0
        %737 = vmatpush1.bf16.msra.mxu0 %v720
        %738 = vmatprep.subr.bf16.mxu0 0
        %739 = vmatpush1.bf16.msra.mxu0 %v721
        %740 = vmatprep.subr.bf16.mxu0 0
        %741 = vmatpush1.bf16.msra.mxu0 0
        %742 = vmatprep.subr.bf16.mxu0 0
        %743 = vmatpush1.bf16.msra.mxu0 0
        %744 = vmatprep.subr.bf16.mxu0 0
        %745 = vmatpush1.bf16.msra.mxu0 0
        %746 = vmatprep.subr.bf16.mxu0 0
        %747 = vmatpush1.bf16.msra.mxu0 0
        %748 = vmatprep.subr.bf16.mxu0 0
        %749 = vmatpush1.bf16.msra.mxu0 0
        %750 = vmatprep.subr.bf16.mxu0 0
        %751 = vmatpush1.bf16.msra.mxu0 0
        %752 = vmatprep.subr.bf16.mxu0 0
        %753 = vmatpush1.bf16.msra.mxu0 0
        %754 = vmatprep.subr.bf16.mxu0 0
        %755 = vmatpush1.bf16.msra.mxu0 0
        %756 = vmatprep.subr.bf16.mxu0 0
        %757 = vmatpush1.bf16.msra.mxu0 0
        %758 = vmatprep.subr.bf16.mxu0 0
        %759 = vmatpush1.bf16.msra.mxu0 0
        %760 = vmatprep.subr.bf16.mxu0 0
        %761 = vmatpush1.bf16.msra.mxu0 0
        %762 = vmatprep.subr.bf16.mxu0 0
        %763 = vmatpush1.bf16.msra.mxu0 0
        %764 = vmatprep.subr.bf16.mxu0 0
        %765 = vmatpush1.bf16.msra.mxu0 0
        %766 = vmatprep.subr.bf16.mxu0 0
        %767 = vmatpush1.bf16.msra.mxu0 0
        %768 = vmatprep.mubr.bf16.mxu0 0
        %769 = vmatmul.mubr.bf16.gmra.mrb[0].mxu0 %v725
        %v770 = vpop.f32.mrb[0].mxu0
        %v771 = vadd.f32 %v710, %v770
        %v772 = vpop.f32.mrb[0].mxu0
        %v773 = vpop.f32.mrb[0].mxu0
        %v774 = vadd.f32 %v710, %v773
        %v775 = vpop.f32.mrb[0].mxu0
        %776 = vmatprep.mubr.bf16.mxu0 0
        %777 = vmatmul.mubr.bf16.gmra.mrb[0].mxu0 %v728
        %v778 = vpop.f32.mrb[0].mxu0
        %v779 = vadd.f32 %v710, %v778
        %v780 = vpop.f32.mrb[0].mxu0
        %v781 = vpop.f32.mrb[0].mxu0
        %v782 = vadd.f32 %v710, %v781
        %v783 = vpop.f32.mrb[0].mxu0
        %784 = vmatprep.mubr.bf16.mxu0 0
        %785 = vmatmul.mubr.bf16.gmra.mrb[0].mxu0 %v731
        %v786 = vpop.f32.mrb[0].mxu0
        %v787 = vadd.f32 %v710, %v786
        %v788 = vpop.f32.mrb[0].mxu0
        %v789 = vpop.f32.mrb[0].mxu0
        %v790 = vadd.f32 %v710, %v789
        %v791 = vpop.f32.mrb[0].mxu0
        %792 = vmatprep.mubr.bf16.mxu0 0
        %793 = vmatmul.mubr.bf16.gmra.mrb[0].mxu0 %v734
        %v794 = vpop.f32.mrb[0].mxu0
        %v795 = vadd.f32 %v710, %v794
        %v796 = vpop.f32.mrb[0].mxu0
        %v797 = vpop.f32.mrb[0].mxu0
        %v798 = vadd.f32 %v710, %v797
        %v799 = vpop.f32.mrb[0].mxu0
        %800 = vdwg.mxu0
        %vm801 = vcmask 130048
        %802 = vst.msk [vmem:[%s352] sm:$0xff] %vm801, %v771
        %803 = vst.msk [vmem:[%s352 + $0x8] sm:$0xff] %vm801, %v774
        %804 = vst.msk [vmem:[%s352 + $0x10] sm:$0xff] %vm801, %v779
        %805 = vst.msk [vmem:[%s352 + $0x18] sm:$0xff] %vm801, %v782
        %806 = vst.msk [vmem:[%s352 + $0x20] sm:$0xff] %vm801, %v787
        %807 = vst.msk [vmem:[%s352 + $0x28] sm:$0xff] %vm801, %v790
        %808 = vst.msk [vmem:[%s352 + $0x30] sm:$0xff] %vm801, %v795
        %809 = vst.msk [vmem:[%s352 + $0x38] sm:$0xff] %vm801, %v798
        %v810 = vlaneseq
        %v811 = vand.u32 %v810, 127
        %v812 = vcvt.s32.f32 %v811
        %v813 = vsel %vm801, %v771, -inf
        %814 = vmax.xlane.f32.xlu0 %v813
        %v815 = vpop.xlane.xlu0 %814
        %v816 = vsel %vm801, %v774, -inf
        %817 = vmax.xlane.f32.xlu0 %v816
        %v818 = vpop.xlane.xlu0 %817
        %v819 = vsel %vm801, %v779, -inf
        %820 = vmax.xlane.f32.xlu0 %v819
        %v821 = vpop.xlane.xlu0 %820
        %v822 = vsel %vm801, %v782, -inf
        %823 = vmax.xlane.f32.xlu0 %v822
        %v824 = vpop.xlane.xlu0 %823
        %v825 = vsel %vm801, %v787, -inf
        %826 = vmax.xlane.f32.xlu0 %v825
        %v827 = vpop.xlane.xlu0 %826
        %v828 = vsel %vm801, %v790, -inf
        %829 = vmax.xlane.f32.xlu0 %v828
        %v830 = vpop.xlane.xlu0 %829
        %v831 = vsel %vm801, %v795, -inf
        %832 = vmax.xlane.f32.xlu0 %v831
        %v833 = vpop.xlane.xlu0 %832
        %v834 = vsel %vm801, %v798, -inf
        %835 = vmax.xlane.f32.xlu0 %v834
        %v836 = vpop.xlane.xlu0 %835
        %vm837 = vcmp.ge.f32.partialorder %v771, %v815
        %vm838 = vcmp.ge.f32.partialorder %v774, %v818
        %vm839 = vcmp.ge.f32.partialorder %v779, %v821
        %vm840 = vcmp.ge.f32.partialorder %v782, %v824
        %vm841 = vcmp.ge.f32.partialorder %v787, %v827
        %vm842 = vcmp.ge.f32.partialorder %v790, %v830
        %vm843 = vcmp.ge.f32.partialorder %v795, %v833
        %vm844 = vcmp.ge.f32.partialorder %v798, %v836
        %v845 = vsel %vm837, %v812, 16.0
        %v846 = vsel %vm838, %v812, 16.0
        %v847 = vsel %vm839, %v812, 16.0
        %v848 = vsel %vm840, %v812, 16.0
        %v849 = vsel %vm841, %v812, 16.0
        %v850 = vsel %vm842, %v812, 16.0
        %v851 = vsel %vm843, %v812, 16.0
        %v852 = vsel %vm844, %v812, 16.0
        %v853 = vsel %vm801, %v845, inf
        %854 = vmin.xlane.f32.xlu0 %v853
        %v855 = vpop.xlane.xlu0 %854
        %v856 = vsel %vm801, %v846, inf
        %857 = vmin.xlane.f32.xlu0 %v856
        %v858 = vpop.xlane.xlu0 %857
        %v859 = vsel %vm801, %v847, inf
        %860 = vmin.xlane.f32.xlu0 %v859
        %v861 = vpop.xlane.xlu0 %860
        %v862 = vsel %vm801, %v848, inf
        %863 = vmin.xlane.f32.xlu0 %v862
        %v864 = vpop.xlane.xlu0 %863
        %v865 = vsel %vm801, %v849, inf
        %866 = vmin.xlane.f32.xlu0 %v865
        %v867 = vpop.xlane.xlu0 %866
        %v868 = vsel %vm801, %v850, inf
        %869 = vmin.xlane.f32.xlu0 %v868
        %v870 = vpop.xlane.xlu0 %869
        %v871 = vsel %vm801, %v851, inf
        %872 = vmin.xlane.f32.xlu0 %v871
        %v873 = vpop.xlane.xlu0 %872
        %v874 = vsel %vm801, %v852, inf
        %875 = vmin.xlane.f32.xlu0 %v874
        %v876 = vpop.xlane.xlu0 %875
        %vm877 = vcmp.eq.f32.partialorder %v812, %v855
        %vm878 = vcmp.eq.f32.partialorder %v812, %v858
        %vm879 = vcmp.eq.f32.partialorder %v812, %v861
        %vm880 = vcmp.eq.f32.partialorder %v812, %v864
        %vm881 = vcmp.eq.f32.partialorder %v812, %v867
        %vm882 = vcmp.eq.f32.partialorder %v812, %v870
        %vm883 = vcmp.eq.f32.partialorder %v812, %v873
        %vm884 = vcmp.eq.f32.partialorder %v812, %v876
        %v885 = vsel %vm877, 1, 0
        %v886 = vsel %vm878, 1, 0
        %v887 = vsel %vm879, 1, 0
        %v888 = vsel %vm880, 1, 0
        %v889 = vsel %vm881, 1, 0
        %v890 = vsel %vm882, 1, 0
        %v891 = vsel %vm883, 1, 0
        %v892 = vsel %vm884, 1, 0
        %v893 = vcvt.s32.f32 %v885
        %v894 = vcvt.s32.f32 %v886
        %v895 = vcvt.s32.f32 %v887
        %v896 = vcvt.s32.f32 %v888
        %v897 = vcvt.s32.f32 %v889
        %v898 = vcvt.s32.f32 %v890
        %v899 = vcvt.s32.f32 %v891
        %v900 = vcvt.s32.f32 %v892
        %v901 = vpack.c.bf16 %v894, %v893
        %v902 = vpack.c.bf16 %v896, %v895
        %v903 = vpack.c.bf16 %v898, %v897
        %v904 = vpack.c.bf16 %v900, %v899
        %v909 = vunpack.c.l.b16 %v901
        %v910 = vunpack.c.h.b16 %v901
        %v911 = vunpack.c.l.b16 %v902
        %v912 = vunpack.c.h.b16 %v902
        %v913 = vunpack.c.l.b16 %v903
        %v914 = vunpack.c.h.b16 %v903
        %v915 = vunpack.c.l.b16 %v904
        %v916 = vunpack.c.h.b16 %v904
        %v917 = vpack.c.b16 %v909, %v909
        %v918 = vpack.c.b16 %v910, %v910
        %v919 = vpack.c.b16 %v911, %v911
        %v920 = vpack.c.b16 %v912, %v912
        %v921 = vpack.c.b16 %v913, %v913
        %v922 = vpack.c.b16 %v914, %v914
        %v923 = vpack.c.b16 %v915, %v915
        %v924 = vpack.c.b16 %v916, %v916
        %vm933 = vcmask 125952
        %934 = vst.msk [vmem:[%s405] sm:$0xf] %vm933, %v917
        %935 = vst.msk [vmem:[%s405 + $0x4] sm:$0xf] %vm933, %v918
        %936 = vst.msk [vmem:[%s405 + $0x8] sm:$0xf] %vm933, %v919
        %937 = vst.msk [vmem:[%s405 + $0xc] sm:$0xf] %vm933, %v920
        %938 = vst.msk [vmem:[%s405 + $0x10] sm:$0xf] %vm933, %v921
        %939 = vst.msk [vmem:[%s405 + $0x14] sm:$0xf] %vm933, %v922
        %940 = vst.msk [vmem:[%s405 + $0x18] sm:$0xf] %vm933, %v923
        %941 = vst.msk [vmem:[%s405 + $0x1c] sm:$0xf] %vm933, %v924
        %s942 = sand.u32 %s197, 1
        %s943 = scalar_lea.sflag [#allocation3], %s942
        %s944 = sand.u32 %s197, 1
        %s945 = smul.addr %s944, 64
        %s946 = scalar_lea.vmem [#allocation2], %s945
        %s947 = smul.u32 8, %s28
        %p948 = scmp.lt.s32.totalorder %s27, 1
        %s949 = scalar_select %p948, %s27, 1
        %p950 = scmp.lt.s32.totalorder %s947, 7
        %s951 = scalar_select %p950, %s947, 7
        %p952 = scmp.lt.s32.totalorder %s29, 0
        %s953 = scalar_select %p952, %s29, 0
        %s954 = sadd.s32 %s953, %s951
        %s955 = smul.addr %s949, 8
        %s956 = sadd.s32 %s954, %s955
        %s957 = smul.addr %s956, 4
        %s958 = scalar_lea.vmem %s7, %s957
        // Predicated region
        $region45: #{minifold_forward.10} parent=43 // pred_check
          %p959 = pneg %p207
        $region46: #{minifold_forward.10} parent=43 // pred_check_branch
          %961 = sbr.rel (%p959) target = $region48
        $region47: #{minifold_forward.10} parent=43 // pred_region
          %s962 = smul.u32 8, %s28
          %s964 = ssub.s32 1024, 1024
          %965 = vsyncadd %s943, %s964
          %s966 = sadd.s32 %s29, %s962
          %s967 = smul.addr %s27, 8
          %s968 = sadd.s32 %s966, %s967
          %s969 = smul.addr %s968, 128
          %s970 = scalar_lea.hbm %s6, %s969
          %s971 = sshll.u32 %s946, 4
          %s972 = int_to_ptr.vmem [resolvable:$true] %s971
          %977 = dma.vmem_to_hbm [thread:$0]  %s972, 1024, %s970, %s943, 128, 128, 8
        $region48: #{minifold_forward.10} parent=43 // pred_fallthru
          _
        // Predicated region
        $region49: #{minifold_forward.10} parent=43 // pred_check
          %p978 = pneg %p237
        $region50: #{minifold_forward.10} parent=43 // pred_check_branch
          %980 = sbr.rel (%p978) target = $region52
        $region51: #{minifold_forward.10} parent=43 // pred_region
          %s981 = smul.u32 8, %s28
        $region52: #{minifold_forward.10} parent=43 // pred_fallthru
          _
      $region44: #{minifold_forward.10} parent=5 // pred_fallthru
        _
      %p982 = scmp.le.s32.totalorder 2, %s17
      // Predicated region
      $region53: #{minifold_forward.10} parent=5 // pred_check
        %p983 = pneg %p982
      $region54: #{minifold_forward.10} parent=5 // pred_check_branch
        %985 = sbr.rel (%p983) target = $region56
      $region55: #{minifold_forward.10} parent=5 // pred_region
        %s986 = ssub.s32 %s17, 2
        // Predicated region
        $region57: #{minifold_forward.10} parent=55 // pred_check
          %p987 = pneg %p213
        $region58: #{minifold_forward.10} parent=55 // pred_check_branch
          %989 = sbr.rel (%p987) target = $region60
        $region59: #{minifold_forward.10} parent=55 // pred_region
          %s990 = sand.u32 %s198, 1
          %s991 = scalar_lea.sflag [#allocation3], %s990
          %s992 = sand.u32 %s198, 1
          %s993 = smul.addr %s992, 64
          %s994 = scalar_lea.vmem [#allocation2], %s993
          %995 = dma.done %s991, 1024
        $region60: #{minifold_forward.10} parent=55 // pred_fallthru
          _
        // Predicated region
        $region61: #{minifold_forward.10} parent=55 // pred_check
          %p996 = pneg %p243
        $region62: #{minifold_forward.10} parent=55 // pred_check_branch
          %998 = sbr.rel (%p996) target = $region64
        $region63: #{minifold_forward.10} parent=55 // pred_region
          %s999 = smul.u32 8, %s31
          %p1000 = scmp.lt.s32.totalorder %s30, 1
          %s1001 = scalar_select %p1000, %s30, 1
          %p1002 = scmp.lt.s32.totalorder %s999, 7
          %s1003 = scalar_select %p1002, %s999, 7
          %p1004 = scmp.lt.s32.totalorder %s32, 0
          %s1005 = scalar_select %p1004, %s32, 0
          %s1006 = sadd.s32 %s1005, %s1003
          %s1007 = smul.addr %s1001, 8
          %s1008 = sadd.s32 %s1006, %s1007
          %s1009 = smul.addr %s1008, 4
          %s1010 = scalar_lea.vmem %s7, %s1009
        $region64: #{minifold_forward.10} parent=55 // pred_fallthru
          _
      $region56: #{minifold_forward.10} parent=5 // pred_fallthru
        _
    $region6: #{minifold_forward.10} parent=1 // loop_footer
      %s21 = sadd.s32 1, %s17
    $region7: #{minifold_forward.10} parent=1 // loop_footer_branch
      %16 = sbr.rel target = $region3
    $region8: #{minifold_forward.10} parent=1 // loop_exit
      _
    %1011 = vsyncpa [#allocation3], 1
    %s1012 = scalar_lea.sflag [#allocation3], 1
    %1013 = vsyncpa %s1012, 1

// kernel: minifold_forward.11
$region0: #{minifold_forward.11}
  #allocation0 [shape = 'u32[]', space=smem, size = 0x4, offset = 0x4, fixed_abs, tag = 'smem constant byte address 0x4 - core index']
  #allocation1 [shape = 'u32[144,128]{1,0:T(1,128)}', space=vmem, size = 0x12000, scoped, tag = 'internal scratch']
  %s0 = inlined_call_operand.vmem [shape: bf16[2,8,8,32], index: 0, kind: input, shape index: {}, may-alias: {0,1}]
  %s1 = inlined_call_operand.vmem [shape: bf16[2,8,8,32], index: 1, kind: input, shape index: {}, may-alias: {0,1}]
  %s2 = inlined_call_operand.vmem [shape: bf16[2,8,8,16], index: 2, kind: input, shape index: {}, may-alias: {2,3}]
  %s3 = inlined_call_operand.vmem [shape: bf16[2,8,8,16], index: 3, kind: input, shape index: {}, may-alias: {2,3}]
  %s4 = inlined_call_operand.vmem [shape: bf16[16,32], index: 4, kind: input, shape index: {}]
  %s5 = inlined_call_operand.vmem [shape: bf16[32,32], index: 5, kind: input, shape index: {}]
  %s6 = inlined_call_operand.vmem [shape: f32[1,32], index: 6, kind: input, shape index: {}]
  %s7 = inlined_call_operand.vmem [shape: bf16[32,16], index: 7, kind: input, shape index: {}]
  %s8 = inlined_call_operand.vmem [shape: f32[1,16], index: 8, kind: input, shape index: {}]
  %s9 = inlined_call_operand.hbm [shape: f32[2,8,8,16], index: 9, kind: output, shape index: {}]
  %s10 = sld [smem:[#allocation0]]
  $region69: #{minifold_forward.11} parent=0
    _
  %s12 = ssub.s32 1, %s10
  %s13 = scalar_select 0, %s12, %s10
  $region1: #{minifold_forward.11} parent=0
    #allocation2 [shape = 'u8[65536]{0}', space=vmem, size = 0x10000, scoped, tag = 'output window, operand 0']
    #allocation3 [shape = 's32[2]{0}', space=sflag, size = 0x8, scoped, tag = 'scoped memory for minifold_forward.11']
    %14 = vsyncpa [#allocation3], 0
    %s15 = scalar_lea.sflag [#allocation3], 1
    %16 = vsyncpa %s15, 0
    loop: start=0, step=1, limit=4
    $region2: #{minifold_forward.11} parent=1 // loop_pre_header
      _
    $region3: #{minifold_forward.11} parent=1 // loop_header
      %s18 = sphi 0, %s22
      %p19 = scmp.ge.s32.totalorder %s18, 4
      %s25 = sphi 0, %s44
      %s26 = sphi 0, %s40
      %s27 = sphi 0, %s36
      %s28 = sphi 0, %s25
      %s29 = sphi 0, %s26
      %s30 = sphi 0, %s27
      %s31 = sphi 0, %s28
      %s32 = sphi 0, %s29
      %s33 = sphi 0, %s30
      %s51 = sphi 0, %s53
      %s54 = sphi 0, %s51
      %s55 = sphi 0, %s54
      %s71 = sphi 0, %s55
      %s81 = sphi 0, %s83
      %s84 = sphi 0, %s81
      %s85 = sphi 0, %s84
      %s101 = sphi 0, %s85
      %s111 = sphi 0, %s113
      %s114 = sphi 0, %s111
      %s115 = sphi 0, %s114
      %s131 = sphi 0, %s115
      %s141 = sphi 0, %s143
      %s144 = sphi 0, %s141
      %s145 = sphi 0, %s144
      %s161 = sphi 0, %s145
      %s165 = sphi 0, %s165
      %s167 = sphi 0, %s165
      %s168 = sphi 0, %s167
      %s182 = sphi 0, %s168
      %s186 = sphi 0, %s186
      %s188 = sphi 0, %s186
      %s189 = sphi 0, %s188
      %s203 = sphi 0, %s189
      %s207 = sphi 0, %s207
      %s209 = sphi 0, %s207
      %s210 = sphi 0, %s209
      %s224 = sphi 0, %s210
      %s228 = sphi 0, %s228
      %s230 = sphi 0, %s228
      %s231 = sphi 0, %s230
      %s245 = sphi 0, %s231
      %s249 = sphi 0, %s249
      %s251 = sphi 0, %s249
      %s252 = sphi 0, %s251
      %s266 = sphi 0, %s252
      %s276 = sphi 0, %s278
      %s279 = sphi 0, %s276
      %s280 = sphi 0, %s279
      %s296 = sphi 0, %s280
    $region4: #{minifold_forward.11} parent=1 // loop_header_branch
      %21 = sbr.rel (%p19) target = $region8
    $region5: #{minifold_forward.11} parent=1 // loop_body
      %s23 = ssub.s32 %s18, 1
      %s24 = ssub.s32 %s18, 2
      %s34 = sadd.s32 1, %s27
      %p35 = scmp.ge.s32.totalorder %s34, 1
      %s36 = scalar_select %p35, 0, %s34
      %s37 = sadd.s32 1, %s26
      %s38 = scalar_select %p35, %s37, %s26
      %p39 = scmp.ge.s32.totalorder %s38, 1
      %s40 = scalar_select %p39, 0, %s38
      %s41 = sadd.s32 1, %s25
      %s42 = scalar_select %p39, %s41, %s25
      %p43 = scmp.ge.s32.totalorder %s42, 2
      %s44 = scalar_select %p43, 0, %s42
      %s45 = ssub.s32 %s25, %s44
      %s46 = ssub.s32 %s26, %s40
      %s47 = sor.u32 %s45, %s46
      %s48 = ssub.s32 %s27, %s36
      %s49 = sor.u32 %s47, %s48
      %p50 = scmp.eq.s32.totalorder %s49, 0
      %s52 = sadd.s32 %s51, 1
      %s53 = scalar_select %p50, %s51, %s52
      %p56 = pneg %p50
      %p57 = scmp.eq.s32.totalorder %s18, 1
      %p58 = por %p56, %p57
      %p59 = scmp.ne.s32.totalorder %s51, %s54
      %p60 = scmp.eq.s32.totalorder %s18, 0
      %p61 = por %p59, %p60
      %p62 = scmp.ne.s32.totalorder %s51, %s54
      %p63 = scmp.eq.s32.totalorder %s23, 1
      %p64 = por %p62, %p63
      %p65 = scmp.ne.s32.totalorder %s54, %s55
      %p66 = scmp.eq.s32.totalorder %s23, 0
      %p67 = por %p65, %p66
      %p68 = scmp.ne.s32.totalorder %s54, %s55
      %p69 = scmp.eq.s32.totalorder %s24, 1
      %p70 = por %p68, %p69
      %p72 = scmp.ne.s32.totalorder %s55, %s71
      %p73 = scmp.eq.s32.totalorder %s24, 0
      %p74 = por %p72, %p73
      %s75 = ssub.s32 %s25, %s44
      %s76 = ssub.s32 %s27, %s36
      %s77 = sor.u32 %s75, %s76
      %s78 = ssub.s32 %s26, %s40
      %s79 = sor.u32 %s77, %s78
      %p80 = scmp.eq.s32.totalorder %s79, 0
      %s82 = sadd.s32 %s81, 1
      %s83 = scalar_select %p80, %s81, %s82
      %p86 = pneg %p80
      %p87 = scmp.eq.s32.totalorder %s18, 1
      %p88 = por %p86, %p87
      %p89 = scmp.ne.s32.totalorder %s81, %s84
      %p90 = scmp.eq.s32.totalorder %s18, 0
      %p91 = por %p89, %p90
      %p92 = scmp.ne.s32.totalorder %s81, %s84
      %p93 = scmp.eq.s32.totalorder %s23, 1
      %p94 = por %p92, %p93
      %p95 = scmp.ne.s32.totalorder %s84, %s85
      %p96 = scmp.eq.s32.totalorder %s23, 0
      %p97 = por %p95, %p96
      %p98 = scmp.ne.s32.totalorder %s84, %s85
      %p99 = scmp.eq.s32.totalorder %s24, 1
      %p100 = por %p98, %p99
      %p102 = scmp.ne.s32.totalorder %s85, %s101
      %p103 = scmp.eq.s32.totalorder %s24, 0
      %p104 = por %p102, %p103
      %s105 = ssub.s32 %s25, %s44
      %s106 = ssub.s32 %s26, %s40
      %s107 = sor.u32 %s105, %s106
      %s108 = ssub.s32 %s27, %s36
      %s109 = sor.u32 %s107, %s108
      %p110 = scmp.eq.s32.totalorder %s109, 0
      %s112 = sadd.s32 %s111, 1
      %s113 = scalar_select %p110, %s111, %s112
      %p116 = pneg %p110
      %p117 = scmp.eq.s32.totalorder %s18, 1
      %p118 = por %p116, %p117
      %p119 = scmp.ne.s32.totalorder %s111, %s114
      %p120 = scmp.eq.s32.totalorder %s18, 0
      %p121 = por %p119, %p120
      %p122 = scmp.ne.s32.totalorder %s111, %s114
      %p123 = scmp.eq.s32.totalorder %s23, 1
      %p124 = por %p122, %p123
      %p125 = scmp.ne.s32.totalorder %s114, %s115
      %p126 = scmp.eq.s32.totalorder %s23, 0
      %p127 = por %p125, %p126
      %p128 = scmp.ne.s32.totalorder %s114, %s115
      %p129 = scmp.eq.s32.totalorder %s24, 1
      %p130 = por %p128, %p129
      %p132 = scmp.ne.s32.totalorder %s115, %s131
      %p133 = scmp.eq.s32.totalorder %s24, 0
      %p134 = por %p132, %p133
      %s135 = ssub.s32 %s25, %s44
      %s136 = ssub.s32 %s27, %s36
      %s137 = sor.u32 %s135, %s136
      %s138 = ssub.s32 %s26, %s40
      %s139 = sor.u32 %s137, %s138
      %p140 = scmp.eq.s32.totalorder %s139, 0
      %s142 = sadd.s32 %s141, 1
      %s143 = scalar_select %p140, %s141, %s142
      %p146 = pneg %p140
      %p147 = scmp.eq.s32.totalorder %s18, 1
      %p148 = por %p146, %p147
      %p149 = scmp.ne.s32.totalorder %s141, %s144
      %p150 = scmp.eq.s32.totalorder %s18, 0
      %p151 = por %p149, %p150
      %p152 = scmp.ne.s32.totalorder %s141, %s144
      %p153 = scmp.eq.s32.totalorder %s23, 1
      %p154 = por %p152, %p153
      %p155 = scmp.ne.s32.totalorder %s144, %s145
      %p156 = scmp.eq.s32.totalorder %s23, 0
      %p157 = por %p155, %p156
      %p158 = scmp.ne.s32.totalorder %s144, %s145
      %p159 = scmp.eq.s32.totalorder %s24, 1
      %p160 = por %p158, %p159
      %p162 = scmp.ne.s32.totalorder %s145, %s161
      %p163 = scmp.eq.s32.totalorder %s24, 0
      %p164 = por %p162, %p163
      %s166 = sadd.s32 %s165, 1
      %p169 = scmp.eq.s32.totalorder %s18, 1
      %p170 = scmp.ne.s32.totalorder %s165, %s167
      %p171 = scmp.eq.s32.totalorder %s18, 0
      %p172 = por %p170, %p171
      %p173 = scmp.ne.s32.totalorder %s165, %s167
      %p174 = scmp.eq.s32.totalorder %s23, 1
      %p175 = por %p173, %p174
      %p176 = scmp.ne.s32.totalorder %s167, %s168
      %p177 = scmp.eq.s32.totalorder %s23, 0
      %p178 = por %p176, %p177
      %p179 = scmp.ne.s32.totalorder %s167, %s168
      %p180 = scmp.eq.s32.totalorder %s24, 1
      %p181 = por %p179, %p180
      %p183 = scmp.ne.s32.totalorder %s168, %s182
      %p184 = scmp.eq.s32.totalorder %s24, 0
      %p185 = por %p183, %p184
      %s187 = sadd.s32 %s186, 1
      %p190 = scmp.eq.s32.totalorder %s18, 1
      %p191 = scmp.ne.s32.totalorder %s186, %s188
      %p192 = scmp.eq.s32.totalorder %s18, 0
      %p193 = por %p191, %p192
      %p194 = scmp.ne.s32.totalorder %s186, %s188
      %p195 = scmp.eq.s32.totalorder %s23, 1
      %p196 = por %p194, %p195
      %p197 = scmp.ne.s32.totalorder %s188, %s189
      %p198 = scmp.eq.s32.totalorder %s23, 0
      %p199 = por %p197, %p198
      %p200 = scmp.ne.s32.totalorder %s188, %s189
      %p201 = scmp.eq.s32.totalorder %s24, 1
      %p202 = por %p200, %p201
      %p204 = scmp.ne.s32.totalorder %s189, %s203
      %p205 = scmp.eq.s32.totalorder %s24, 0
      %p206 = por %p204, %p205
      %s208 = sadd.s32 %s207, 1
      %p211 = scmp.eq.s32.totalorder %s18, 1
      %p212 = scmp.ne.s32.totalorder %s207, %s209
      %p213 = scmp.eq.s32.totalorder %s18, 0
      %p214 = por %p212, %p213
      %p215 = scmp.ne.s32.totalorder %s207, %s209
      %p216 = scmp.eq.s32.totalorder %s23, 1
      %p217 = por %p215, %p216
      %p218 = scmp.ne.s32.totalorder %s209, %s210
      %p219 = scmp.eq.s32.totalorder %s23, 0
      %p220 = por %p218, %p219
      %p221 = scmp.ne.s32.totalorder %s209, %s210
      %p222 = scmp.eq.s32.totalorder %s24, 1
      %p223 = por %p221, %p222
      %p225 = scmp.ne.s32.totalorder %s210, %s224
      %p226 = scmp.eq.s32.totalorder %s24, 0
      %p227 = por %p225, %p226
      %s229 = sadd.s32 %s228, 1
      %p232 = scmp.eq.s32.totalorder %s18, 1
      %p233 = scmp.ne.s32.totalorder %s228, %s230
      %p234 = scmp.eq.s32.totalorder %s18, 0
      %p235 = por %p233, %p234
      %p236 = scmp.ne.s32.totalorder %s228, %s230
      %p237 = scmp.eq.s32.totalorder %s23, 1
      %p238 = por %p236, %p237
      %p239 = scmp.ne.s32.totalorder %s230, %s231
      %p240 = scmp.eq.s32.totalorder %s23, 0
      %p241 = por %p239, %p240
      %p242 = scmp.ne.s32.totalorder %s230, %s231
      %p243 = scmp.eq.s32.totalorder %s24, 1
      %p244 = por %p242, %p243
      %p246 = scmp.ne.s32.totalorder %s231, %s245
      %p247 = scmp.eq.s32.totalorder %s24, 0
      %p248 = por %p246, %p247
      %s250 = sadd.s32 %s249, 1
      %p253 = scmp.eq.s32.totalorder %s18, 1
      %p254 = scmp.ne.s32.totalorder %s249, %s251
      %p255 = scmp.eq.s32.totalorder %s18, 0
      %p256 = por %p254, %p255
      %p257 = scmp.ne.s32.totalorder %s249, %s251
      %p258 = scmp.eq.s32.totalorder %s23, 1
      %p259 = por %p257, %p258
      %p260 = scmp.ne.s32.totalorder %s251, %s252
      %p261 = scmp.eq.s32.totalorder %s23, 0
      %p262 = por %p260, %p261
      %p263 = scmp.ne.s32.totalorder %s251, %s252
      %p264 = scmp.eq.s32.totalorder %s24, 1
      %p265 = por %p263, %p264
      %p267 = scmp.ne.s32.totalorder %s252, %s266
      %p268 = scmp.eq.s32.totalorder %s24, 0
      %p269 = por %p267, %p268
      %s270 = ssub.s32 %s25, %s44
      %s271 = ssub.s32 %s26, %s40
      %s272 = sor.u32 %s270, %s271
      %s273 = ssub.s32 %s27, %s36
      %s274 = sor.u32 %s272, %s273
      %p275 = scmp.eq.s32.totalorder %s274, 0
      %s277 = sadd.s32 %s276, 1
      %s278 = scalar_select %p275, %s276, %s277
      %p281 = pneg %p275
      %p282 = scmp.eq.s32.totalorder %s18, 1
      %p283 = por %p281, %p282
      %p284 = scmp.ne.s32.totalorder %s276, %s279
      %p285 = scmp.eq.s32.totalorder %s18, 0
      %p286 = por %p284, %p285
      %p287 = scmp.ne.s32.totalorder %s276, %s279
      %p288 = scmp.eq.s32.totalorder %s23, 1
      %p289 = por %p287, %p288
      %p290 = scmp.ne.s32.totalorder %s279, %s280
      %p291 = scmp.eq.s32.totalorder %s23, 0
      %p292 = por %p290, %p291
      %p293 = scmp.ne.s32.totalorder %s279, %s280
      %p294 = scmp.eq.s32.totalorder %s24, 1
      %p295 = por %p293, %p294
      %p297 = scmp.ne.s32.totalorder %s280, %s296
      %p298 = scmp.eq.s32.totalorder %s24, 0
      %p299 = por %p297, %p298
      %p300 = scmp.le.s32.totalorder 1, %s18
      %p301 = scmp.lt.s32.totalorder %s18, 3
      %p302 = pnand %p300, %p301
      %p303 = pneg %p302
      // Predicated region
      $region9: #{minifold_forward.11} parent=5 // pred_check
        _
      $region10: #{minifold_forward.11} parent=5 // pred_check_branch
        %305 = sbr.rel (%p302) target = $region12
      $region11: #{minifold_forward.11} parent=5 // pred_region
        %s306 = ssub.s32 %s18, 1
        // Predicated region
        $region13: #{minifold_forward.11} parent=11 // pred_check
          %p307 = pneg %p178
        $region14: #{minifold_forward.11} parent=11 // pred_check_branch
          %309 = sbr.rel (%p307) target = $region16
        $region15: #{minifold_forward.11} parent=11 // pred_region
          _
        $region16: #{minifold_forward.11} parent=11 // pred_fallthru
          _
        // Predicated region
        $region17: #{minifold_forward.11} parent=11 // pred_check
          %p310 = pneg %p199
        $region18: #{minifold_forward.11} parent=11 // pred_check_branch
          %312 = sbr.rel (%p310) target = $region20
        $region19: #{minifold_forward.11} parent=11 // pred_region
          _
        $region20: #{minifold_forward.11} parent=11 // pred_fallthru
          _
        // Predicated region
        $region21: #{minifold_forward.11} parent=11 // pred_check
          %p313 = pneg %p220
        $region22: #{minifold_forward.11} parent=11 // pred_check_branch
          %315 = sbr.rel (%p313) target = $region24
        $region23: #{minifold_forward.11} parent=11 // pred_region
          _
        $region24: #{minifold_forward.11} parent=11 // pred_fallthru
          _
        // Predicated region
        $region25: #{minifold_forward.11} parent=11 // pred_check
          %p316 = pneg %p241
        $region26: #{minifold_forward.11} parent=11 // pred_check_branch
          %318 = sbr.rel (%p316) target = $region28
        $region27: #{minifold_forward.11} parent=11 // pred_region
          _
        $region28: #{minifold_forward.11} parent=11 // pred_fallthru
          _
        // Predicated region
        $region29: #{minifold_forward.11} parent=11 // pred_check
          %p319 = pneg %p262
        $region30: #{minifold_forward.11} parent=11 // pred_check_branch
          %321 = sbr.rel (%p319) target = $region32
        $region31: #{minifold_forward.11} parent=11 // pred_region
          _
        $region32: #{minifold_forward.11} parent=11 // pred_fallthru
          _
      $region12: #{minifold_forward.11} parent=5 // pred_fallthru
        _
      %p322 = scmp.lt.s32.totalorder %s18, 2
      // Predicated region
      $region33: #{minifold_forward.11} parent=5 // pred_check
        %p323 = pneg %p322
      $region34: #{minifold_forward.11} parent=5 // pred_check_branch
        %325 = sbr.rel (%p323) target = $region36
      $region35: #{minifold_forward.11} parent=5 // pred_region
        // Predicated region
        $region37: #{minifold_forward.11} parent=35 // pred_check
          %p326 = pneg %p61
        $region38: #{minifold_forward.11} parent=35 // pred_check_branch
          %328 = sbr.rel (%p326) target = $region40
        $region39: #{minifold_forward.11} parent=35 // pred_region
          %s329 = smul.u32 8, %s26
          %p330 = scmp.lt.s32.totalorder %s25, 1
          %s331 = scalar_select %p330, %s25, 1
          %p332 = scmp.lt.s32.totalorder %s329, 7
          %s333 = scalar_select %p332, %s329, 7
          %p334 = scmp.lt.s32.totalorder %s27, 0
          %s335 = scalar_select %p334, %s27, 0
          %s336 = sadd.s32 %s335, %s333
          %s337 = smul.addr %s331, 8
          %s338 = sadd.s32 %s336, %s337
          %s339 = smul.addr %s338, 4
          %s340 = scalar_lea.vmem %s0, %s339
          %s341 = smul.u32 8, %s26
        $region40: #{minifold_forward.11} parent=35 // pred_fallthru
          _
        // Predicated region
        $region41: #{minifold_forward.11} parent=35 // pred_check
          %p342 = pneg %p91
        $region42: #{minifold_forward.11} parent=35 // pred_check_branch
          %344 = sbr.rel (%p342) target = $region44
        $region43: #{minifold_forward.11} parent=35 // pred_region
          %s345 = smul.u32 8, %s27
          %p346 = scmp.lt.s32.totalorder %s25, 1
          %s347 = scalar_select %p346, %s25, 1
          %p348 = scmp.lt.s32.totalorder %s345, 7
          %s349 = scalar_select %p348, %s345, 7
          %p350 = scmp.lt.s32.totalorder %s26, 0
          %s351 = scalar_select %p350, %s26, 0
          %s352 = sadd.s32 %s351, %s349
          %s353 = smul.addr %s347, 8
          %s354 = sadd.s32 %s352, %s353
          %s355 = smul.addr %s354, 4
          %s356 = scalar_lea.vmem %s1, %s355
          %s357 = smul.u32 8, %s27
        $region44: #{minifold_forward.11} parent=35 // pred_fallthru
          _
        // Predicated region
        $region45: #{minifold_forward.11} parent=35 // pred_check
          %p358 = pneg %p121
        $region46: #{minifold_forward.11} parent=35 // pred_check_branch
          %360 = sbr.rel (%p358) target = $region48
        $region47: #{minifold_forward.11} parent=35 // pred_region
          %s361 = smul.u32 8, %s26
          %p362 = scmp.lt.s32.totalorder %s25, 1
          %s363 = scalar_select %p362, %s25, 1
          %p364 = scmp.lt.s32.totalorder %s361, 7
          %s365 = scalar_select %p364, %s361, 7
          %p366 = scmp.lt.s32.totalorder %s27, 0
          %s367 = scalar_select %p366, %s27, 0
          %s368 = sadd.s32 %s367, %s365
          %s369 = smul.addr %s363, 8
          %s370 = sadd.s32 %s368, %s369
          %s371 = smul.addr %s370, 4
          %s372 = scalar_lea.vmem %s2, %s371
          %s373 = smul.u32 8, %s26
        $region48: #{minifold_forward.11} parent=35 // pred_fallthru
          _
        // Predicated region
        $region49: #{minifold_forward.11} parent=35 // pred_check
          %p374 = pneg %p151
        $region50: #{minifold_forward.11} parent=35 // pred_check_branch
          %376 = sbr.rel (%p374) target = $region52
        $region51: #{minifold_forward.11} parent=35 // pred_region
          %s377 = smul.u32 8, %s27
          %p378 = scmp.lt.s32.totalorder %s25, 1
          %s379 = scalar_select %p378, %s25, 1
          %p380 = scmp.lt.s32.totalorder %s377, 7
          %s381 = scalar_select %p380, %s377, 7
          %p382 = scmp.lt.s32.totalorder %s26, 0
          %s383 = scalar_select %p382, %s26, 0
          %s384 = sadd.s32 %s383, %s381
          %s385 = smul.addr %s379, 8
          %s386 = sadd.s32 %s384, %s385
          %s387 = smul.addr %s386, 4
          %s388 = scalar_lea.vmem %s3, %s387
          %s389 = smul.u32 8, %s27
        $region52: #{minifold_forward.11} parent=35 // pred_fallthru
          _
      $region36: #{minifold_forward.11} parent=5 // pred_fallthru
        _
      %p390 = scmp.le.s32.totalorder 1, %s18
      %p391 = scmp.lt.s32.totalorder %s18, 3
      %p392 = pnand %p390, %p391
      %p393 = pneg %p392
      // Predicated region
      $region53: #{minifold_forward.11} parent=5 // pred_check
        _
      $region54: #{minifold_forward.11} parent=5 // pred_check_branch
        %395 = sbr.rel (%p392) target = $region56
      $region55: #{minifold_forward.11} parent=5 // pred_region
        %s396 = ssub.s32 %s18, 1
        %s397 = smul.u32 8, %s29
        %p398 = scmp.lt.s32.totalorder %s28, 1
        %s399 = scalar_select %p398, %s28, 1
        %p400 = scmp.lt.s32.totalorder %s397, 7
        %s401 = scalar_select %p400, %s397, 7
        %p402 = scmp.lt.s32.totalorder %s30, 0
        %s403 = scalar_select %p402, %s30, 0
        %s404 = sadd.s32 %s403, %s401
        %s405 = smul.addr %s399, 8
        %s406 = sadd.s32 %s404, %s405
        %s407 = smul.addr %s406, 4
        %s408 = scalar_lea.vmem %s0, %s407
        %p409 = pneg %p67
        %p410 = pneg %p64
        %s411 = smul.u32 8, %s30
        %p412 = scmp.lt.s32.totalorder %s28, 1
        %s413 = scalar_select %p412, %s28, 1
        %p414 = scmp.lt.s32.totalorder %s411, 7
        %s415 = scalar_select %p414, %s411, 7
        %p416 = scmp.lt.s32.totalorder %s29, 0
        %s417 = scalar_select %p416, %s29, 0
        %s418 = sadd.s32 %s417, %s415
        %s419 = smul.addr %s413, 8
        %s420 = sadd.s32 %s418, %s419
        %s421 = smul.addr %s420, 4
        %s422 = scalar_lea.vmem %s1, %s421
        %p423 = pneg %p97
        %p424 = pneg %p94
        %s425 = smul.u32 8, %s29
        %p426 = scmp.lt.s32.totalorder %s28, 1
        %s427 = scalar_select %p426, %s28, 1
        %p428 = scmp.lt.s32.totalorder %s425, 7
        %s429 = scalar_select %p428, %s425, 7
        %p430 = scmp.lt.s32.totalorder %s30, 0
        %s431 = scalar_select %p430, %s30, 0
        %s432 = sadd.s32 %s431, %s429
        %s433 = smul.addr %s427, 8
        %s434 = sadd.s32 %s432, %s433
        %s435 = smul.addr %s434, 4
        %s436 = scalar_lea.vmem %s2, %s435
        %p437 = pneg %p127
        %p438 = pneg %p124
        %s439 = smul.u32 8, %s30
        %p440 = scmp.lt.s32.totalorder %s28, 1
        %s441 = scalar_select %p440, %s28, 1
        %p442 = scmp.lt.s32.totalorder %s439, 7
        %s443 = scalar_select %p442, %s439, 7
        %p444 = scmp.lt.s32.totalorder %s29, 0
        %s445 = scalar_select %p444, %s29, 0
        %s446 = sadd.s32 %s445, %s443
        %s447 = smul.addr %s441, 8
        %s448 = sadd.s32 %s446, %s447
        %s449 = smul.addr %s448, 4
        %s450 = scalar_lea.vmem %s3, %s449
        %p451 = pneg %p157
        %p452 = pneg %p154
        %p453 = pneg %p178
        %p454 = pneg %p175
        %p455 = pneg %p199
        %p456 = pneg %p196
        %p457 = pneg %p220
        %p458 = pneg %p217
        %p459 = pneg %p241
        %p460 = pneg %p238
        %p461 = pneg %p262
        %p462 = pneg %p259
        %p463 = pneg %p292
        %p464 = pneg %p289
        %s465 = sand.u32 %s279, 1
        %s466 = scalar_lea.sflag [#allocation3], %s465
        %s467 = sand.u32 %s279, 1
        %s468 = smul.addr %s467, 64
        %s469 = scalar_lea.vmem [#allocation2], %s468
        %s470 = smul.u32 8, %s29
        %p471 = scmp.lt.s32.totalorder %s28, 1
        %s472 = scalar_select %p471, %s28, 1
        %p473 = scmp.lt.s32.totalorder %s470, 7
        %s474 = scalar_select %p473, %s470, 7
        %p475 = scmp.lt.s32.totalorder %s30, 0
        %s476 = scalar_select %p475, %s30, 0
        %s477 = sadd.s32 %s476, %s474
        %s478 = smul.addr %s472, 8
        %s479 = sadd.s32 %s477, %s478
        %s480 = smul.addr %s479, 4
        %s481 = scalar_lea.vmem %s0, %s480
        %s482 = smul.u32 8, %s29
        %s483 = smul.u32 8, %s30
        %p484 = scmp.lt.s32.totalorder %s28, 1
        %s485 = scalar_select %p484, %s28, 1
        %p486 = scmp.lt.s32.totalorder %s483, 7
        %s487 = scalar_select %p486, %s483, 7
        %p488 = scmp.lt.s32.totalorder %s29, 0
        %s489 = scalar_select %p488, %s29, 0
        %s490 = sadd.s32 %s489, %s487
        %s491 = smul.addr %s485, 8
        %s492 = sadd.s32 %s490, %s491
        %s493 = smul.addr %s492, 4
        %s494 = scalar_lea.vmem %s1, %s493
        %s495 = smul.u32 8, %s30
        %s496 = smul.u32 8, %s29
        %p497 = scmp.lt.s32.totalorder %s28, 1
        %s498 = scalar_select %p497, %s28, 1
        %p499 = scmp.lt.s32.totalorder %s496, 7
        %s500 = scalar_select %p499, %s496, 7
        %p501 = scmp.lt.s32.totalorder %s30, 0
        %s502 = scalar_select %p501, %s30, 0
        %s503 = sadd.s32 %s502, %s500
        %s504 = smul.addr %s498, 8
        %s505 = sadd.s32 %s503, %s504
        %s506 = smul.addr %s505, 4
        %s507 = scalar_lea.vmem %s2, %s506
        %s508 = smul.u32 8, %s29
        %s509 = smul.u32 8, %s30
        %p510 = scmp.lt.s32.totalorder %s28, 1
        %s511 = scalar_select %p510, %s28, 1
        %p512 = scmp.lt.s32.totalorder %s509, 7
        %s513 = scalar_select %p512, %s509, 7
        %p514 = scmp.lt.s32.totalorder %s29, 0
        %s515 = scalar_select %p514, %s29, 0
        %s516 = sadd.s32 %s515, %s513
        %s517 = smul.addr %s511, 8
        %s518 = sadd.s32 %s516, %s517
        %s519 = smul.addr %s518, 4
        %s520 = scalar_lea.vmem %s3, %s519
        %s521 = smul.u32 8, %s30
        %s522 = smul.u32 8, %s29
        %v524 = vld [vmem:[%s481] sm:$0xf]
        %v525 = vld [vmem:[%s481 + $0x4] sm:$0xf]
        %v526 = vld [vmem:[%s481 + $0x8] sm:$0xf]
        %v527 = vld [vmem:[%s481 + $0xc] sm:$0xf]
        %v528 = vld [vmem:[%s481 + $0x10] sm:$0xf]
        %v529 = vld [vmem:[%s481 + $0x14] sm:$0xf]
        %v530 = vld [vmem:[%s481 + $0x18] sm:$0xf]
        %v531 = vld [vmem:[%s481 + $0x1c] sm:$0xf]
        %v532 = vunpack.c.l.bf16 %v524
        %v533 = vunpack.c.l.bf16 %v525
        %v534 = vunpack.c.l.bf16 %v526
        %v535 = vunpack.c.l.bf16 %v527
        %v536 = vunpack.c.l.bf16 %v528
        %v537 = vunpack.c.l.bf16 %v529
        %v538 = vunpack.c.l.bf16 %v530
        %v539 = vunpack.c.l.bf16 %v531
        %v540 = vld [vmem:[%s494] sm:$0xf]
        %v541 = vld [vmem:[%s494 + $0x4] sm:$0xf]
        %v542 = vld [vmem:[%s494 + $0x8] sm:$0xf]
        %v543 = vld [vmem:[%s494 + $0xc] sm:$0xf]
        %v544 = vld [vmem:[%s494 + $0x10] sm:$0xf]
        %v545 = vld [vmem:[%s494 + $0x14] sm:$0xf]
        %v546 = vld [vmem:[%s494 + $0x18] sm:$0xf]
        %v547 = vld [vmem:[%s494 + $0x1c] sm:$0xf]
        %v548 = vunpack.c.l.bf16 %v540
        %v549 = vunpack.c.l.bf16 %v541
        %v550 = vunpack.c.l.bf16 %v542
        %v551 = vunpack.c.l.bf16 %v543
        %v552 = vunpack.c.l.bf16 %v544
        %v553 = vunpack.c.l.bf16 %v545
        %v554 = vunpack.c.l.bf16 %v546
        %v555 = vunpack.c.l.bf16 %v547
        %v556 = vcombine.low %v548, %v550
        %v557 = vcombine.high %v548, %v550
        %v559 = vunpack.c.l.s4 1983009808
        %v560 = vunpack.c.0.s8 %v559
        %v561 = vlaneseq
        %v562 = vshrl.u32 %v561, 7
        %v563 = vsub.s32 %v560, %v562
        %v564 = vrot.slane %v556, %v563
        %v566 = vunpack.c.l.s4 1983009808
        %v567 = vunpack.c.0.s8 %v566
        %v568 = vlaneseq
        %v569 = vshrl.u32 %v568, 7
        %v570 = vsub.s32 %v567, %v569
        %v571 = vrot.slane %v557, %v570
        %v572 = vcombine.low %v549, %v551
        %v573 = vcombine.high %v549, %v551
        %v575 = vunpack.c.l.s4 1983009808
        %v576 = vunpack.c.0.s8 %v575
        %v577 = vlaneseq
        %v578 = vshrl.u32 %v577, 7
        %v579 = vsub.s32 %v576, %v578
        %v580 = vrot.slane %v572, %v579
        %v582 = vunpack.c.l.s4 1983009808
        %v583 = vunpack.c.0.s8 %v582
        %v584 = vlaneseq
        %v585 = vshrl.u32 %v584, 7
        %v586 = vsub.s32 %v583, %v585
        %v587 = vrot.slane %v573, %v586
        %v588 = vcombine.low %v552, %v554
        %v589 = vcombine.high %v552, %v554
        %v591 = vunpack.c.l.s4 1983009808
        %v592 = vunpack.c.0.s8 %v591
        %v593 = vlaneseq
        %v594 = vshrl.u32 %v593, 7
        %v595 = vsub.s32 %v592, %v594
        %v596 = vrot.slane %v588, %v595
        %v598 = vunpack.c.l.s4 1983009808
        %v599 = vunpack.c.0.s8 %v598
        %v600 = vlaneseq
        %v601 = vshrl.u32 %v600, 7
        %v602 = vsub.s32 %v599, %v601
        %v603 = vrot.slane %v589, %v602
        %v604 = vcombine.low %v553, %v555
        %v605 = vcombine.high %v553, %v555
        %v607 = vunpack.c.l.s4 1983009808
        %v608 = vunpack.c.0.s8 %v607
        %v609 = vlaneseq
        %v610 = vshrl.u32 %v609, 7
        %v611 = vsub.s32 %v608, %v610
        %v612 = vrot.slane %v604, %v611
        %v614 = vunpack.c.l.s4 1983009808
        %v615 = vunpack.c.0.s8 %v614
        %v616 = vlaneseq
        %v617 = vshrl.u32 %v616, 7
        %v618 = vsub.s32 %v615, %v617
        %v619 = vrot.slane %v605, %v618
        %v620 = vcombine.low %v564, %v580
        %v621 = vcombine.high %v564, %v580
        %v623 = vunpack.c.l.s4 1934713408
        %v624 = vunpack.c.0.s8 %v623
        %v625 = vlaneseq
        %v626 = vshrl.u32 %v625, 7
        %v627 = vsub.s32 %v624, %v626
        %v628 = vrot.slane %v620, %v627
        %v630 = vunpack.c.l.s4 1934713408
        %v631 = vunpack.c.0.s8 %v630
        %v632 = vlaneseq
        %v633 = vshrl.u32 %v632, 7
        %v634 = vsub.s32 %v631, %v633
        %v635 = vrot.slane %v621, %v634
        %v636 = vcombine.low %v571, %v587
        %v637 = vcombine.high %v571, %v587
        %v639 = vunpack.c.l.s4 1934713408
        %v640 = vunpack.c.0.s8 %v639
        %v641 = vlaneseq
        %v642 = vshrl.u32 %v641, 7
        %v643 = vsub.s32 %v640, %v642
        %v644 = vrot.slane %v636, %v643
        %v646 = vunpack.c.l.s4 1934713408
        %v647 = vunpack.c.0.s8 %v646
        %v648 = vlaneseq
        %v649 = vshrl.u32 %v648, 7
        %v650 = vsub.s32 %v647, %v649
        %v651 = vrot.slane %v637, %v650
        %v652 = vcombine.low %v596, %v612
        %v653 = vcombine.high %v596, %v612
        %v655 = vunpack.c.l.s4 1934713408
        %v656 = vunpack.c.0.s8 %v655
        %v657 = vlaneseq
        %v658 = vshrl.u32 %v657, 7
        %v659 = vsub.s32 %v656, %v658
        %v660 = vrot.slane %v652, %v659
        %v662 = vunpack.c.l.s4 1934713408
        %v663 = vunpack.c.0.s8 %v662
        %v664 = vlaneseq
        %v665 = vshrl.u32 %v664, 7
        %v666 = vsub.s32 %v663, %v665
        %v667 = vrot.slane %v653, %v666
        %v668 = vcombine.low %v603, %v619
        %v669 = vcombine.high %v603, %v619
        %v671 = vunpack.c.l.s4 1934713408
        %v672 = vunpack.c.0.s8 %v671
        %v673 = vlaneseq
        %v674 = vshrl.u32 %v673, 7
        %v675 = vsub.s32 %v672, %v674
        %v676 = vrot.slane %v668, %v675
        %v678 = vunpack.c.l.s4 1934713408
        %v679 = vunpack.c.0.s8 %v678
        %v680 = vlaneseq
        %v681 = vshrl.u32 %v680, 7
        %v682 = vsub.s32 %v679, %v681
        %v683 = vrot.slane %v669, %v682
        %v684 = vcombine.low %v628, %v660
        %v685 = vcombine.high %v628, %v660
        %v686 = vcombine.low %v635, %v667
        %v687 = vcombine.high %v635, %v667
        %v688 = vcombine.low %v644, %v676
        %v689 = vcombine.high %v644, %v676
        %v690 = vcombine.low %v651, %v683
        %v691 = vcombine.high %v651, %v683
        %v692 = vadd.f32 %v532, %v684
        %v693 = vadd.f32 %v533, %v685
        %v694 = vadd.f32 %v534, %v686
        %v695 = vadd.f32 %v535, %v687
        %v696 = vadd.f32 %v536, %v688
        %v697 = vadd.f32 %v537, %v689
        %v698 = vadd.f32 %v538, %v690
        %v699 = vadd.f32 %v539, %v691
        %v700 = vpack.c.bf16 %v693, %v692
        %v701 = vpack.c.bf16 %v695, %v694
        %v702 = vpack.c.bf16 %v697, %v696
        %v703 = vpack.c.bf16 %v699, %v698
        %v704 = vld [vmem:[%s5] sm:$0xf]
        %v705 = vld [vmem:[%s5 + $0x4] sm:$0xf]
        %v706 = vld [vmem:[%s5 + $0x8] sm:$0xf]
        %v707 = vld [vmem:[%s5 + $0xc] sm:$0xf]
        %v708 = vld [vmem:[%s6] sm:$0x1]
        %v710 = vlaneseq
        %v711 = vshrl.u32 %v710, 7
        %v712 = vsub.s32 0, %v711
        %v713 = vrot.slane %v708, %v712
        %v719 = vunpack.c.l.b16 %v704
        %v720 = vunpack.c.l.b16 %v705
        %v721 = vunpack.c.l.b16 %v706
        %v722 = vunpack.c.l.b16 %v707
        %v723 = vpack.c.b16 %v720, %v719
        %v724 = vpack.c.b16 %v722, %v721
        %vm727 = vcmask 261120
        %v729 = vsel %vm727, %v700, 0
        %v732 = vsel %vm727, %v701, 0
        %v735 = vsel %vm727, %v702, 0
        %v738 = vsel %vm727, %v703, 0
        %740 = vmatprep.subr.bf16.mxu0 0
        %741 = vmatpush1.bf16.msra.mxu0 %v723
        %742 = vmatprep.subr.bf16.mxu0 0
        %743 = vmatpush1.bf16.msra.mxu0 %v724
        %744 = vmatprep.subr.bf16.mxu0 0
        %745 = vmatpush1.bf16.msra.mxu0 0
        %746 = vmatprep.subr.bf16.mxu0 0
        %747 = vmatpush1.bf16.msra.mxu0 0
        %748 = vmatprep.subr.bf16.mxu0 0
        %749 = vmatpush1.bf16.msra.mxu0 0
        %750 = vmatprep.subr.bf16.mxu0 0
        %751 = vmatpush1.bf16.msra.mxu0 0
        %752 = vmatprep.subr.bf16.mxu0 0
        %753 = vmatpush1.bf16.msra.mxu0 0
        %754 = vmatprep.subr.bf16.mxu0 0
        %755 = vmatpush1.bf16.msra.mxu0 0
        %756 = vmatprep.subr.bf16.mxu0 0
        %757 = vmatpush1.bf16.msra.mxu0 0
        %758 = vmatprep.subr.bf16.mxu0 0
        %759 = vmatpush1.bf16.msra.mxu0 0
        %760 = vmatprep.subr.bf16.mxu0 0
        %761 = vmatpush1.bf16.msra.mxu0 0
        %762 = vmatprep.subr.bf16.mxu0 0
        %763 = vmatpush1.bf16.msra.mxu0 0
        %764 = vmatprep.subr.bf16.mxu0 0
        %765 = vmatpush1.bf16.msra.mxu0 0
        %766 = vmatprep.subr.bf16.mxu0 0
        %767 = vmatpush1.bf16.msra.mxu0 0
        %768 = vmatprep.subr.bf16.mxu0 0
        %769 = vmatpush1.bf16.msra.mxu0 0
        %770 = vmatprep.subr.bf16.mxu0 0
        %771 = vmatpush1.bf16.msra.mxu0 0
        %772 = vmatprep.mubr.bf16.mxu0 0
        %773 = vmatmul.mubr.bf16.gmra.mrb[0].mxu0 %v729
        %v774 = vpop.f32.mrb[0].mxu0
        %v775 = vadd.f32 %v713, %v774
        %v776 = vpop.f32.mrb[0].mxu0
        %v777 = vpop.f32.mrb[0].mxu0
        %v778 = vadd.f32 %v713, %v777
        %v779 = vpop.f32.mrb[0].mxu0
        %780 = vmatprep.mubr.bf16.mxu0 0
        %781 = vmatmul.mubr.bf16.gmra.mrb[0].mxu0 %v732
        %v782 = vpop.f32.mrb[0].mxu0
        %v783 = vadd.f32 %v713, %v782
        %v784 = vpop.f32.mrb[0].mxu0
        %v785 = vpop.f32.mrb[0].mxu0
        %v786 = vadd.f32 %v713, %v785
        %v787 = vpop.f32.mrb[0].mxu0
        %788 = vmatprep.mubr.bf16.mxu0 0
        %789 = vmatmul.mubr.bf16.gmra.mrb[0].mxu0 %v735
        %v790 = vpop.f32.mrb[0].mxu0
        %v791 = vadd.f32 %v713, %v790
        %v792 = vpop.f32.mrb[0].mxu0
        %v793 = vpop.f32.mrb[0].mxu0
        %v794 = vadd.f32 %v713, %v793
        %v795 = vpop.f32.mrb[0].mxu0
        %796 = vmatprep.mubr.bf16.mxu0 0
        %797 = vmatmul.mubr.bf16.gmra.mrb[0].mxu0 %v738
        %v798 = vpop.f32.mrb[0].mxu0
        %v799 = vadd.f32 %v713, %v798
        %v800 = vpop.f32.mrb[0].mxu0
        %v801 = vpop.f32.mrb[0].mxu0
        %v802 = vadd.f32 %v713, %v801
        %v803 = vpop.f32.mrb[0].mxu0
        %804 = vdwg.mxu0
        %v805 = vld [vmem:[%s507] sm:$0xf]
        %v806 = vld [vmem:[%s507 + $0x4] sm:$0xf]
        %v807 = vld [vmem:[%s507 + $0x8] sm:$0xf]
        %v808 = vld [vmem:[%s507 + $0xc] sm:$0xf]
        %v809 = vld [vmem:[%s507 + $0x10] sm:$0xf]
        %v810 = vld [vmem:[%s507 + $0x14] sm:$0xf]
        %v811 = vld [vmem:[%s507 + $0x18] sm:$0xf]
        %v812 = vld [vmem:[%s507 + $0x1c] sm:$0xf]
        %v813 = vunpack.c.l.bf16 %v805
        %v814 = vunpack.c.l.bf16 %v806
        %v815 = vunpack.c.l.bf16 %v807
        %v816 = vunpack.c.l.bf16 %v808
        %v817 = vunpack.c.l.bf16 %v809
        %v818 = vunpack.c.l.bf16 %v810
        %v819 = vunpack.c.l.bf16 %v811
        %v820 = vunpack.c.l.bf16 %v812
        %v821 = vld [vmem:[%s520] sm:$0xf]
        %v822 = vld [vmem:[%s520 + $0x4] sm:$0xf]
        %v823 = vld [vmem:[%s520 + $0x8] sm:$0xf]
        %v824 = vld [vmem:[%s520 + $0xc] sm:$0xf]
        %v825 = vld [vmem:[%s520 + $0x10] sm:$0xf]
        %v826 = vld [vmem:[%s520 + $0x14] sm:$0xf]
        %v827 = vld [vmem:[%s520 + $0x18] sm:$0xf]
        %v828 = vld [vmem:[%s520 + $0x1c] sm:$0xf]
        %v829 = vunpack.c.l.bf16 %v821
        %v830 = vunpack.c.l.bf16 %v822
        %v831 = vunpack.c.l.bf16 %v823
        %v832 = vunpack.c.l.bf16 %v824
        %v833 = vunpack.c.l.bf16 %v825
        %v834 = vunpack.c.l.bf16 %v826
        %v835 = vunpack.c.l.bf16 %v827
        %v836 = vunpack.c.l.bf16 %v828
        %v837 = vcombine.low %v829, %v831
        %v838 = vcombine.high %v829, %v831
        %v840 = vunpack.c.l.s4 1983009808
        %v841 = vunpack.c.0.s8 %v840
        %v842 = vlaneseq
        %v843 = vshrl.u32 %v842, 7
        %v844 = vsub.s32 %v841, %v843
        %v845 = vrot.slane %v837, %v844
        %v847 = vunpack.c.l.s4 1983009808
        %v848 = vunpack.c.0.s8 %v847
        %v849 = vlaneseq
        %v850 = vshrl.u32 %v849, 7
        %v851 = vsub.s32 %v848, %v850
        %v852 = vrot.slane %v838, %v851
        %v853 = vcombine.low %v830, %v832
        %v854 = vcombine.high %v830, %v832
        %v856 = vunpack.c.l.s4 1983009808
        %v857 = vunpack.c.0.s8 %v856
        %v858 = vlaneseq
        %v859 = vshrl.u32 %v858, 7
        %v860 = vsub.s32 %v857, %v859
        %v861 = vrot.slane %v853, %v860
        %v863 = vunpack.c.l.s4 1983009808
        %v864 = vunpack.c.0.s8 %v863
        %v865 = vlaneseq
        %v866 = vshrl.u32 %v865, 7
        %v867 = vsub.s32 %v864, %v866
        %v868 = vrot.slane %v854, %v867
        %v869 = vcombine.low %v833, %v835
        %v870 = vcombine.high %v833, %v835
        %v872 = vunpack.c.l.s4 1983009808
        %v873 = vunpack.c.0.s8 %v872
        %v874 = vlaneseq
        %v875 = vshrl.u32 %v874, 7
        %v876 = vsub.s32 %v873, %v875
        %v877 = vrot.slane %v869, %v876
        %v879 = vunpack.c.l.s4 1983009808
        %v880 = vunpack.c.0.s8 %v879
        %v881 = vlaneseq
        %v882 = vshrl.u32 %v881, 7
        %v883 = vsub.s32 %v880, %v882
        %v884 = vrot.slane %v870, %v883
        %v885 = vcombine.low %v834, %v836
        %v886 = vcombine.high %v834, %v836
        %v888 = vunpack.c.l.s4 1983009808
        %v889 = vunpack.c.0.s8 %v888
        %v890 = vlaneseq
        %v891 = vshrl.u32 %v890, 7
        %v892 = vsub.s32 %v889, %v891
        %v893 = vrot.slane %v885, %v892
        %v895 = vunpack.c.l.s4 1983009808
        %v896 = vunpack.c.0.s8 %v895
        %v897 = vlaneseq
        %v898 = vshrl.u32 %v897, 7
        %v899 = vsub.s32 %v896, %v898
        %v900 = vrot.slane %v886, %v899
        %v901 = vcombine.low %v845, %v861
        %v902 = vcombine.high %v845, %v861
        %v904 = vunpack.c.l.s4 1934713408
        %v905 = vunpack.c.0.s8 %v904
        %v906 = vlaneseq
        %v907 = vshrl.u32 %v906, 7
        %v908 = vsub.s32 %v905, %v907
        %v909 = vrot.slane %v901, %v908
        %v911 = vunpack.c.l.s4 1934713408
        %v912 = vunpack.c.0.s8 %v911
        %v913 = vlaneseq
        %v914 = vshrl.u32 %v913, 7
        %v915 = vsub.s32 %v912, %v914
        %v916 = vrot.slane %v902, %v915
        %v917 = vcombine.low %v852, %v868
        %v918 = vcombine.high %v852, %v868
        %v920 = vunpack.c.l.s4 1934713408
        %v921 = vunpack.c.0.s8 %v920
        %v922 = vlaneseq
        %v923 = vshrl.u32 %v922, 7
        %v924 = vsub.s32 %v921, %v923
        %v925 = vrot.slane %v917, %v924
        %v927 = vunpack.c.l.s4 1934713408
        %v928 = vunpack.c.0.s8 %v927
        %v929 = vlaneseq
        %v930 = vshrl.u32 %v929, 7
        %v931 = vsub.s32 %v928, %v930
        %v932 = vrot.slane %v918, %v931
        %v933 = vcombine.low %v877, %v893
        %v934 = vcombine.high %v877, %v893
        %v936 = vunpack.c.l.s4 1934713408
        %v937 = vunpack.c.0.s8 %v936
        %v938 = vlaneseq
        %v939 = vshrl.u32 %v938, 7
        %v940 = vsub.s32 %v937, %v939
        %v941 = vrot.slane %v933, %v940
        %v943 = vunpack.c.l.s4 1934713408
        %v944 = vunpack.c.0.s8 %v943
        %v945 = vlaneseq
        %v946 = vshrl.u32 %v945, 7
        %v947 = vsub.s32 %v944, %v946
        %v948 = vrot.slane %v934, %v947
        %v949 = vcombine.low %v884, %v900
        %v950 = vcombine.high %v884, %v900
        %v952 = vunpack.c.l.s4 1934713408
        %v953 = vunpack.c.0.s8 %v952
        %v954 = vlaneseq
        %v955 = vshrl.u32 %v954, 7
        %v956 = vsub.s32 %v953, %v955
        %v957 = vrot.slane %v949, %v956
        %v959 = vunpack.c.l.s4 1934713408
        %v960 = vunpack.c.0.s8 %v959
        %v961 = vlaneseq
        %v962 = vshrl.u32 %v961, 7
        %v963 = vsub.s32 %v960, %v962
        %v964 = vrot.slane %v950, %v963
        %v965 = vcombine.low %v909, %v941
        %v966 = vcombine.high %v909, %v941
        %v967 = vcombine.low %v916, %v948
        %v968 = vcombine.high %v916, %v948
        %v969 = vcombine.low %v925, %v957
        %v970 = vcombine.high %v925, %v957
        %v971 = vcombine.low %v932, %v964
        %v972 = vcombine.high %v932, %v964
        %v973 = vadd.f32 %v813, %v965
        %v974 = vadd.f32 %v814, %v966
        %v975 = vadd.f32 %v815, %v967
        %v976 = vadd.f32 %v816, %v968
        %v977 = vadd.f32 %v817, %v969
        %v978 = vadd.f32 %v818, %v970
        %v979 = vadd.f32 %v819, %v971
        %v980 = vadd.f32 %v820, %v972
        %v981 = vpack.c.bf16 %v974, %v973
        %v982 = vpack.c.bf16 %v976, %v975
        %v983 = vpack.c.bf16 %v978, %v977
        %v984 = vpack.c.bf16 %v980, %v979
        %v985 = vld [vmem:[%s4] sm:$0xf]
        %v986 = vld [vmem:[%s4 + $0x4] sm:$0xf]
        %v989 = vunpack.c.l.b16 %v985
        %v990 = vunpack.c.l.b16 %v986
        %v991 = vpack.c.b16 %v990, %v989
        %vm993 = vcmask 130048
        %v995 = vsel %vm993, %v981, 0
        %v998 = vsel %vm993, %v982, 0
        %v1001 = vsel %vm993, %v983, 0
        %v1004 = vsel %vm993, %v984, 0
        %1006 = vmatprep.subr.bf16.mxu0 0
        %1007 = vmatpush1.bf16.msra.mxu0 %v991
        %1008 = vmatprep.subr.bf16.mxu0 0
        %1009 = vmatpush1.bf16.msra.mxu0 0
        %1010 = vmatprep.subr.bf16.mxu0 0
        %1011 = vmatpush1.bf16.msra.mxu0 0
        %1012 = vmatprep.subr.bf16.mxu0 0
        %1013 = vmatpush1.bf16.msra.mxu0 0
        %1014 = vmatprep.subr.bf16.mxu0 0
        %1015 = vmatpush1.bf16.msra.mxu0 0
        %1016 = vmatprep.subr.bf16.mxu0 0
        %1017 = vmatpush1.bf16.msra.mxu0 0
        %1018 = vmatprep.subr.bf16.mxu0 0
        %1019 = vmatpush1.bf16.msra.mxu0 0
        %1020 = vmatprep.subr.bf16.mxu0 0
        %1021 = vmatpush1.bf16.msra.mxu0 0
        %1022 = vmatprep.subr.bf16.mxu0 0
        %1023 = vmatpush1.bf16.msra.mxu0 0
        %1024 = vmatprep.subr.bf16.mxu0 0
        %1025 = vmatpush1.bf16.msra.mxu0 0
        %1026 = vmatprep.subr.bf16.mxu0 0
        %1027 = vmatpush1.bf16.msra.mxu0 0
        %1028 = vmatprep.subr.bf16.mxu0 0
        %1029 = vmatpush1.bf16.msra.mxu0 0
        %1030 = vmatprep.subr.bf16.mxu0 0
        %1031 = vmatpush1.bf16.msra.mxu0 0
        %1032 = vmatprep.subr.bf16.mxu0 0
        %1033 = vmatpush1.bf16.msra.mxu0 0
        %1034 = vmatprep.subr.bf16.mxu0 0
        %1035 = vmatpush1.bf16.msra.mxu0 0
        %1036 = vmatprep.subr.bf16.mxu0 0
        %1037 = vmatpush1.bf16.msra.mxu0 0
        %1038 = vmatprep.mubr.bf16.mxu0 0
        %1039 = vmatmul.mubr.bf16.gmra.mrb[0].mxu0 %v995
        %v1040 = vpop.f32.mrb[0].mxu0
        %v1041 = vadd.f32 0.0, %v1040
        %v1042 = vpop.f32.mrb[0].mxu0
        %v1043 = vpop.f32.mrb[0].mxu0
        %v1044 = vadd.f32 0.0, %v1043
        %v1045 = vpop.f32.mrb[0].mxu0
        %1046 = vmatprep.mubr.bf16.mxu0 0
        %1047 = vmatmul.mubr.bf16.gmra.mrb[0].mxu0 %v998
        %v1048 = vpop.f32.mrb[0].mxu0
        %v1049 = vadd.f32 0.0, %v1048
        %v1050 = vpop.f32.mrb[0].mxu0
        %v1051 = vpop.f32.mrb[0].mxu0
        %v1052 = vadd.f32 0.0, %v1051
        %v1053 = vpop.f32.mrb[0].mxu0
        %1054 = vmatprep.mubr.bf16.mxu0 0
        %1055 = vmatmul.mubr.bf16.gmra.mrb[0].mxu0 %v1001
        %v1056 = vpop.f32.mrb[0].mxu0
        %v1057 = vadd.f32 0.0, %v1056
        %v1058 = vpop.f32.mrb[0].mxu0
        %v1059 = vpop.f32.mrb[0].mxu0
        %v1060 = vadd.f32 0.0, %v1059
        %v1061 = vpop.f32.mrb[0].mxu0
        %1062 = vmatprep.mubr.bf16.mxu0 0
        %1063 = vmatmul.mubr.bf16.gmra.mrb[0].mxu0 %v1004
        %v1064 = vpop.f32.mrb[0].mxu0
        %v1065 = vadd.f32 0.0, %v1064
        %v1066 = vpop.f32.mrb[0].mxu0
        %v1067 = vpop.f32.mrb[0].mxu0
        %v1068 = vadd.f32 0.0, %v1067
        %v1069 = vpop.f32.mrb[0].mxu0
        %1070 = vdwg.mxu0
        %v1071 = vadd.f32 %v775, %v1041
        %v1072 = vadd.f32 %v778, %v1044
        %v1073 = vadd.f32 %v783, %v1049
        %v1074 = vadd.f32 %v786, %v1052
        %v1075 = vadd.f32 %v791, %v1057
        %v1076 = vadd.f32 %v794, %v1060
        %v1077 = vadd.f32 %v799, %v1065
        %v1078 = vadd.f32 %v802, %v1068
        %v1079 = vmax.f32 %v1071, 0.0
        %v1080 = vmax.f32 %v1072, 0.0
        %v1081 = vmax.f32 %v1073, 0.0
        %v1082 = vmax.f32 %v1074, 0.0
        %v1083 = vmax.f32 %v1075, 0.0
        %v1084 = vmax.f32 %v1076, 0.0
        %v1085 = vmax.f32 %v1077, 0.0
        %v1086 = vmax.f32 %v1078, 0.0
        %v1087 = vpack.c.bf16 %v1080, %v1079
        %v1088 = vpack.c.bf16 %v1082, %v1081
        %v1089 = vpack.c.bf16 %v1084, %v1083
        %v1090 = vpack.c.bf16 %v1086, %v1085
        %v1091 = vld [vmem:[%s7] sm:$0xf]
        %v1092 = vld [vmem:[%s7 + $0x4] sm:$0xf]
        %v1093 = vld [vmem:[%s7 + $0x8] sm:$0xf]
        %v1094 = vld [vmem:[%s7 + $0xc] sm:$0xf]
        %v1095 = vld [vmem:[%s8] sm:$0x1]
        %v1097 = vlaneseq
        %v1098 = vshrl.u32 %v1097, 7
        %v1099 = vsub.s32 0, %v1098
        %v1100 = vrot.slane %v1095, %v1099
        %v1106 = vunpack.c.l.b16 %v1091
        %v1107 = vunpack.c.l.b16 %v1092
        %v1108 = vunpack.c.l.b16 %v1093
        %v1109 = vunpack.c.l.b16 %v1094
        %v1110 = vpack.c.b16 %v1107, %v1106
        %v1111 = vpack.c.b16 %v1109, %v1108
        %v1115 = vsel %vm727, %v1087, 0
        %v1118 = vsel %vm727, %v1088, 0
        %v1121 = vsel %vm727, %v1089, 0
        %v1124 = vsel %vm727, %v1090, 0
        %1126 = vmatprep.subr.bf16.mxu0 0
        %1127 = vmatpush1.bf16.msra.mxu0 %v1110
        %1128 = vmatprep.subr.bf16.mxu0 0
        %1129 = vmatpush1.bf16.msra.mxu0 %v1111
        %1130 = vmatprep.subr.bf16.mxu0 0
        %1131 = vmatpush1.bf16.msra.mxu0 0
        %1132 = vmatprep.subr.bf16.mxu0 0
        %1133 = vmatpush1.bf16.msra.mxu0 0
        %1134 = vmatprep.subr.bf16.mxu0 0
        %1135 = vmatpush1.bf16.msra.mxu0 0
        %1136 = vmatprep.subr.bf16.mxu0 0
        %1137 = vmatpush1.bf16.msra.mxu0 0
        %1138 = vmatprep.subr.bf16.mxu0 0
        %1139 = vmatpush1.bf16.msra.mxu0 0
        %1140 = vmatprep.subr.bf16.mxu0 0
        %1141 = vmatpush1.bf16.msra.mxu0 0
        %1142 = vmatprep.subr.bf16.mxu0 0
        %1143 = vmatpush1.bf16.msra.mxu0 0
        %1144 = vmatprep.subr.bf16.mxu0 0
        %1145 = vmatpush1.bf16.msra.mxu0 0
        %1146 = vmatprep.subr.bf16.mxu0 0
        %1147 = vmatpush1.bf16.msra.mxu0 0
        %1148 = vmatprep.subr.bf16.mxu0 0
        %1149 = vmatpush1.bf16.msra.mxu0 0
        %1150 = vmatprep.subr.bf16.mxu0 0
        %1151 = vmatpush1.bf16.msra.mxu0 0
        %1152 = vmatprep.subr.bf16.mxu0 0
        %1153 = vmatpush1.bf16.msra.mxu0 0
        %1154 = vmatprep.subr.bf16.mxu0 0
        %1155 = vmatpush1.bf16.msra.mxu0 0
        %1156 = vmatprep.subr.bf16.mxu0 0
        %1157 = vmatpush1.bf16.msra.mxu0 0
        %1158 = vmatprep.mubr.bf16.mxu0 0
        %1159 = vmatmul.mubr.bf16.gmra.mrb[0].mxu0 %v1115
        %v1160 = vpop.f32.mrb[0].mxu0
        %v1161 = vadd.f32 %v1100, %v1160
        %v1162 = vpop.f32.mrb[0].mxu0
        %v1163 = vpop.f32.mrb[0].mxu0
        %v1164 = vadd.f32 %v1100, %v1163
        %v1165 = vpop.f32.mrb[0].mxu0
        %1166 = vmatprep.mubr.bf16.mxu0 0
        %1167 = vmatmul.mubr.bf16.gmra.mrb[0].mxu0 %v1118
        %v1168 = vpop.f32.mrb[0].mxu0
        %v1169 = vadd.f32 %v1100, %v1168
        %v1170 = vpop.f32.mrb[0].mxu0
        %v1171 = vpop.f32.mrb[0].mxu0
        %v1172 = vadd.f32 %v1100, %v1171
        %v1173 = vpop.f32.mrb[0].mxu0
        %1174 = vmatprep.mubr.bf16.mxu0 0
        %1175 = vmatmul.mubr.bf16.gmra.mrb[0].mxu0 %v1121
        %v1176 = vpop.f32.mrb[0].mxu0
        %v1177 = vadd.f32 %v1100, %v1176
        %v1178 = vpop.f32.mrb[0].mxu0
        %v1179 = vpop.f32.mrb[0].mxu0
        %v1180 = vadd.f32 %v1100, %v1179
        %v1181 = vpop.f32.mrb[0].mxu0
        %1182 = vmatprep.mubr.bf16.mxu0 0
        %1183 = vmatmul.mubr.bf16.gmra.mrb[0].mxu0 %v1124
        %v1184 = vpop.f32.mrb[0].mxu0
        %v1185 = vadd.f32 %v1100, %v1184
        %v1186 = vpop.f32.mrb[0].mxu0
        %v1187 = vpop.f32.mrb[0].mxu0
        %v1188 = vadd.f32 %v1100, %v1187
        %v1189 = vpop.f32.mrb[0].mxu0
        %1190 = vdwg.mxu0
        %1191 = vst.msk [vmem:[%s469] sm:$0xff] %vm993, %v1161
        %1192 = vst.msk [vmem:[%s469 + $0x8] sm:$0xff] %vm993, %v1164
        %1193 = vst.msk [vmem:[%s469 + $0x10] sm:$0xff] %vm993, %v1169
        %1194 = vst.msk [vmem:[%s469 + $0x18] sm:$0xff] %vm993, %v1172
        %1195 = vst.msk [vmem:[%s469 + $0x20] sm:$0xff] %vm993, %v1177
        %1196 = vst.msk [vmem:[%s469 + $0x28] sm:$0xff] %vm993, %v1180
        %1197 = vst.msk [vmem:[%s469 + $0x30] sm:$0xff] %vm993, %v1185
        %1198 = vst.msk [vmem:[%s469 + $0x38] sm:$0xff] %vm993, %v1188
        %s1199 = sand.u32 %s279, 1
        %s1200 = scalar_lea.sflag [#allocation3], %s1199
        %s1201 = sand.u32 %s279, 1
        %s1202 = smul.addr %s1201, 64
        %s1203 = scalar_lea.vmem [#allocation2], %s1202
        // Predicated region
        $region57: #{minifold_forward.11} parent=55 // pred_check
          %p1204 = pneg %p289
        $region58: #{minifold_forward.11} parent=55 // pred_check_branch
          %1206 = sbr.rel (%p1204) target = $region60
        $region59: #{minifold_forward.11} parent=55 // pred_region
          %s1207 = smul.u32 8, %s29
          %s1209 = ssub.s32 1024, 1024
          %1210 = vsyncadd %s1200, %s1209
          %s1211 = sadd.s32 %s30, %s1207
          %s1212 = smul.addr %s28, 8
          %s1213 = sadd.s32 %s1211, %s1212
          %s1214 = smul.addr %s1213, 128
          %s1215 = scalar_lea.hbm %s9, %s1214
          %s1216 = sshll.u32 %s1203, 4
          %s1217 = int_to_ptr.vmem [resolvable:$true] %s1216
          %1222 = dma.vmem_to_hbm [thread:$0]  %s1217, 1024, %s1215, %s1200, 128, 128, 8
        $region60: #{minifold_forward.11} parent=55 // pred_fallthru
          _
      $region56: #{minifold_forward.11} parent=5 // pred_fallthru
        _
      %p1223 = scmp.le.s32.totalorder 2, %s18
      // Predicated region
      $region61: #{minifold_forward.11} parent=5 // pred_check
        %p1224 = pneg %p1223
      $region62: #{minifold_forward.11} parent=5 // pred_check_branch
        %1226 = sbr.rel (%p1224) target = $region64
      $region63: #{minifold_forward.11} parent=5 // pred_region
        %s1227 = ssub.s32 %s18, 2
        // Predicated region
        $region65: #{minifold_forward.11} parent=63 // pred_check
          %p1228 = pneg %p295
        $region66: #{minifold_forward.11} parent=63 // pred_check_branch
          %1230 = sbr.rel (%p1228) target = $region68
        $region67: #{minifold_forward.11} parent=63 // pred_region
          %s1231 = sand.u32 %s280, 1
          %s1232 = scalar_lea.sflag [#allocation3], %s1231
          %s1233 = sand.u32 %s280, 1
          %s1234 = smul.addr %s1233, 64
          %s1235 = scalar_lea.vmem [#allocation2], %s1234
          %1236 = dma.done %s1232, 1024
        $region68: #{minifold_forward.11} parent=63 // pred_fallthru
          _
      $region64: #{minifold_forward.11} parent=5 // pred_fallthru
        _
    $region6: #{minifold_forward.11} parent=1 // loop_footer
      %s22 = sadd.s32 1, %s18
    $region7: #{minifold_forward.11} parent=1 // loop_footer_branch
      %17 = sbr.rel target = $region3
    $region8: #{minifold_forward.11} parent=1 // loop_exit
      _
    %1237 = vsyncpa [#allocation3], 1
    %s1238 = scalar_lea.sflag [#allocation3], 1
    %1239 = vsyncpa %s1238, 1

</llo_original>
